<compile_context>
chip_gen: v5e
topology: v5e:2x2
jax: 0.10.0
libtpu: 0.0.40
codegen_flags: <defaults>
</compile_context>

<pallas_src>
import math
import numpy as np
import jax
import jax.numpy as jnp
from jax.experimental import pallas as pl
from jax.experimental.pallas import tpu as pltpu

_F32 = jnp.float32
_BF16 = jnp.bfloat16


def _vmem_limit_bytes():
    # ~96 MiB on v5e/v6e (128 MiB physical), ~48 MiB on v7x (64 MiB physical);
    # leaves headroom for double-buffered constant-index weight blocks.
    try:
        cap = int(pltpu.get_tpu_info().vmem_capacity_bytes)
    except Exception:
        cap = 64 << 20
    return max(32 << 20, min((cap * 3) // 4, 96 << 20))


_VMEM_LIMIT = _vmem_limit_bytes()


def _cparams(n_grid_dims=1):
    return pltpu.CompilerParams(
        dimension_semantics=("parallel",) * n_grid_dims,
        vmem_limit_bytes=_VMEM_LIMIT,
    )


def _gelu(x):
    # Exact (erf) GELU, matching torch.nn.GELU() default.
    return 0.5 * x * (1.0 + jax.lax.erf(x * (1.0 / math.sqrt(2.0))))


def _layernorm(x, g, b, eps=1e-5):
    mu = jnp.mean(x, axis=-1, keepdims=True)
    xc = x - mu
    var = jnp.mean(xc * xc, axis=-1, keepdims=True)
    return xc * jax.lax.rsqrt(var + eps) * g + b


def _tile_rows(m, cap=256):
    # Row tile: multiple of 8, <= cap, and chosen so the grid has >= 2 steps
    # whenever m allows it (so both v7x TensorCores get work).
    if m <= 8:
        return m
    n_tiles = max(2, -(-m // cap))
    tm = -(-m // n_tiles)
    tm = max(8, ((tm + 7) // 8) * 8)
    return min(tm, m)


# ---------------------------------------------------------------------------
# 1) Fused instance-norm + feature-patch embedding (single lane-dense matmul)
# ---------------------------------------------------------------------------
def make_embed_kernel(use_norm, has_marks):
    def body(x_ref, mk_ref, w_ref, tok_ref, mean_ref, std_ref):
        x = x_ref[0]                                    # (L, N) f32, time on sublanes
        if use_norm:
            mean = jnp.mean(x, axis=0, keepdims=True)   # (1, N) sublane reduce
            xc = x - mean
            var = jnp.mean(xc * xc, axis=0, keepdims=True)
            std = jnp.sqrt(var + 1e-4)                  # eps matches torch (0.0001)
            series = xc / std
        else:
            mean = jnp.zeros((1, x.shape[1]), _F32)
            std = jnp.ones((1, x.shape[1]), _F32)
            series = x
        mean_ref[0] = mean
        std_ref[0] = std
        w = w_ref[...]                                  # (L, P*E) bf16, banded (im2col folded)
        toks = jnp.dot(series.T.astype(_BF16), w, preferred_element_type=_F32)
        if has_marks:
            mk = mk_ref[0]                              # (L, M) raw (marks not normalized)
            mtok = jnp.dot(mk.T.astype(_BF16), w, preferred_element_type=_F32)
            toks = jnp.concatenate([toks, mtok], axis=0)
        tok_ref[0] = toks                               # (N_, P*E) lane-dense

    if has_marks:
        return body

    def body_nomark(x_ref, w_ref, tok_ref, mean_ref, std_ref):
        return body(x_ref, None, w_ref, tok_ref, mean_ref, std_ref)
    return body_nomark


def pallas_embed(x_enc, x_mark_enc, w_exp, cfg):
    B, L, N = x_enc.shape
    patch = cfg["patch_size"]
    stride = patch // 2
    P = (L - patch) // stride + 1
    E = cfg["embed_dim"]
    PE = P * E
    use_norm = bool(cfg.get("use_norm", True))
    has_marks = x_mark_enc is not None
    Mk = x_mark_enc.shape[2] if has_marks else 0
    N_ = N + Mk

    in_specs = [pl.BlockSpec((1, L, N), lambda b: (b, 0, 0))]
    args = [x_enc.astype(_F32)]
    if has_marks:
        in_specs.append(pl.BlockSpec((1, L, Mk), lambda b: (b, 0, 0)))
        args.append(x_mark_enc.astype(_F32))
    in_specs.append(pl.BlockSpec((L, PE), lambda b: (0, 0)))
    args.append(w_exp)

    tok, mean, std = pl.pallas_call(
        make_embed_kernel(use_norm, has_marks),
        grid=(B,),
        in_specs=in_specs,
        out_specs=(pl.BlockSpec((1, N_, PE), lambda b: (b, 0, 0)),
                   pl.BlockSpec((1, 1, N), lambda b: (b, 0, 0)),
                   pl.BlockSpec((1, 1, N), lambda b: (b, 0, 0))),
        out_shape=(jax.ShapeDtypeStruct((B, N_, PE), _F32),
                   jax.ShapeDtypeStruct((B, 1, N), _F32),
                   jax.ShapeDtypeStruct((B, 1, N), _F32)),
        compiler_params=_cparams(1),
    )(*args)
    return tok, mean, std


# ---------------------------------------------------------------------------
# 2) Fused encoder layer: QKV -> attention -> out proj -> LN1 -> FFN -> LN2
#    (+ optional final encoder LayerNorm)
# ---------------------------------------------------------------------------
def make_layer_kernel(E, H, dff, dff_chunk, activation, final_norm):
    Dh = E // H
    scale = 1.0 / math.sqrt(Dh)
    act = _gelu if activation == "gelu" else (lambda v: jnp.maximum(v, 0.0))

    def kernel(*refs):
        if final_norm:
            (x_ref, wqkv_ref, bqkv_ref, wo_ref, bo_ref, g1_ref, b1_ref,
             w1_ref, bc1_ref, w2_ref, bc2_ref, g2_ref, b2_ref,
             gf_ref, bf_ref, o_ref, ctx_ref) = refs
        else:
            (x_ref, wqkv_ref, bqkv_ref, wo_ref, bo_ref, g1_ref, b1_ref,
             w1_ref, bc1_ref, w2_ref, bc2_ref, g2_ref, b2_ref,
             o_ref, ctx_ref) = refs

        x = x_ref[0]                                        # (Ltok, E) f32
        xb = x.astype(_BF16)
        # ---- fused QKV projection ----
        qkv = jnp.dot(xb, wqkv_ref[...], preferred_element_type=_F32) + bqkv_ref[...]
        q = qkv[:, :E]
        v = qkv[:, 2 * E:]
        kT = qkv[:, E:2 * E].T        # single transpose; per-head K^T slices are sublane slices
        # ---- per-head attention, heads written into lane-dense VMEM scratch ----
        for h in range(H):                                  # static unroll
            sl = slice(h * Dh, (h + 1) * Dh)
            qh = q[:, sl].astype(_BF16)
            khT = kT[sl, :].astype(_BF16)
            vh = v[:, sl].astype(_BF16)
            s = jnp.dot(qh, khT, preferred_element_type=_F32) * scale
            m = jnp.max(s, axis=-1, keepdims=True)
            p = jnp.exp(s - m)                              # f32 softmax
            p = p / jnp.sum(p, axis=-1, keepdims=True)      # exact divide (torch parity)
            ctx_ref[:, sl] = jnp.dot(p.astype(_BF16), vh, preferred_element_type=_F32)
        attn_out = jnp.dot(ctx_ref[...].astype(_BF16), wo_ref[...],
                           preferred_element_type=_F32) + bo_ref[...]
        x1 = _layernorm(x + attn_out, g1_ref[...], b1_ref[...])
        # ---- FFN, chunked over d_ff so the live (Ltok, chunk) stays bounded ----
        x1b = x1.astype(_BF16)
        y = jnp.zeros_like(x1)
        for c0 in range(0, dff, dff_chunk):                 # static unroll
            c1 = min(dff, c0 + dff_chunk)
            hid = act(jnp.dot(x1b, w1_ref[:, c0:c1], preferred_element_type=_F32)
                      + bc1_ref[:, c0:c1])
            y = y + jnp.dot(hid.astype(_BF16), w2_ref[c0:c1, :],
                            preferred_element_type=_F32)
        y = y + bc2_ref[...]
        out = _layernorm(x1 + y, g2_ref[...], b2_ref[...])
        if final_norm:
            out = _layernorm(out, gf_ref[...], bf_ref[...])
        o_ref[0] = out
    return kernel


def pallas_encoder_layer(x, lp, cfg, final_gb=None):
    B, Ltok, E = x.shape
    H = cfg["n_heads"]
    dff = cfg["d_ff"]
    dff_chunk = dff if dff <= 512 else 512
    full = lambda b: (0, 0)
    in_specs = [
        pl.BlockSpec((1, Ltok, E), lambda b: (b, 0, 0)),
        pl.BlockSpec((E, 3 * E), full), pl.BlockSpec((1, 3 * E), full),
        pl.BlockSpec((E, E), full), pl.BlockSpec((1, E), full),
        pl.BlockSpec((1, E), full), pl.BlockSpec((1, E), full),
        pl.BlockSpec((E, dff), full), pl.BlockSpec((1, dff), full),
        pl.BlockSpec((dff, E), full), pl.BlockSpec((1, E), full),
        pl.BlockSpec((1, E), full), pl.BlockSpec((1, E), full),
    ]
    args = [x, lp["wqkv"], lp["bqkv"], lp["wo"], lp["bo"], lp["g1"], lp["b1"],
            lp["w1"], lp["bc1"], lp["w2"], lp["bc2"], lp["g2"], lp["b2"]]
    if final_gb is not None:
        in_specs += [pl.BlockSpec((1, E), full), pl.BlockSpec((1, E), full)]
        args += [final_gb[0], final_gb[1]]
    return pl.pallas_call(
        make_layer_kernel(E, H, dff, dff_chunk, cfg.get("activation", "gelu"),
                          final_gb is not None),
        grid=(B,),
        in_specs=in_specs,
        out_specs=pl.BlockSpec((1, Ltok, E), lambda b: (b, 0, 0)),
        out_shape=jax.ShapeDtypeStruct((B, Ltok, E), _F32),
        scratch_shapes=[pltpu.VMEM((Ltok, E), _F32)],       # lane-dense ctx scratch
        compiler_params=_cparams(1),
    )(*args)


# ---------------------------------------------------------------------------
# Standalone LayerNorm (only used if e_layers == 0)
# ---------------------------------------------------------------------------
def _ln_kernel(x_ref, g_ref, b_ref, o_ref):
    o_ref[...] = _layernorm(x_ref[...], g_ref[...], b_ref[...])


def pallas_layernorm(x, g, b):
    shape = x.shape
    E = shape[-1]
    M = int(np.prod(shape[:-1]))
    tm = _tile_rows(M)
    out = pl.pallas_call(
        _ln_kernel,
        grid=(pl.cdiv(M, tm),),
        in_specs=[pl.BlockSpec((tm, E), lambda i: (i, 0)),
                  pl.BlockSpec((1, E), lambda i: (0, 0)),
                  pl.BlockSpec((1, E), lambda i: (0, 0))],
        out_specs=pl.BlockSpec((tm, E), lambda i: (i, 0)),
        out_shape=jax.ShapeDtypeStruct((M, E), _F32),
        compiler_params=_cparams(1),
    )(x.reshape(M, E).astype(_F32), g, b)
    return out.reshape(shape)


# ---------------------------------------------------------------------------
# 3) Fused projection head: proj1 + GELU + proj2 (lane-padded) + de-norm
# ---------------------------------------------------------------------------
def _head_kernel(x_ref, std_ref, mean_ref, w1_ref, b1_ref, w2_ref, b2_ref, o_ref):
    x = x_ref[...]                                            # (tr, P*E)
    h = _gelu(jnp.dot(x.astype(_BF16), w1_ref[...],
                      preferred_element_type=_F32) + b1_ref[...])
    y = jnp.dot(h.astype(_BF16), w2_ref[...],
                preferred_element_type=_F32) + b2_ref[...]
    o_ref[...] = y * std_ref[...] + mean_ref[...]             # fused de-normalization


def pallas_head(xflat, std_rows, mean_rows, params, cfg):
    R, PE = xflat.shape
    dm = cfg["d_model"]
    pred = cfg["pred_len"]
    pred_pad = params["wp2"].shape[1]                         # multiple of 128 (unmasked stores)
    tr = _tile_rows(R)
    full = lambda i: (0, 0)
    out = pl.pallas_call(
        _head_kernel,
        grid=(pl.cdiv(R, tr),),
        in_specs=[
            pl.BlockSpec((tr, PE), lambda i: (i, 0)),
            pl.BlockSpec((tr, 1), lambda i: (i, 0)),
            pl.BlockSpec((tr, 1), lambda i: (i, 0)),
            pl.BlockSpec((PE, dm), full),
            pl.BlockSpec((1, dm), full),
            pl.BlockSpec((dm, pred_pad), full),
            pl.BlockSpec((1, pred_pad), full),
        ],
        out_specs=pl.BlockSpec((tr, pred_pad), lambda i: (i, 0)),
        out_shape=jax.ShapeDtypeStruct((R, pred_pad), _F32),
        compiler_params=_cparams(1),
    )(xflat, std_rows, mean_rows, params["wp1"], params["bp1"],
      params["wp2"], params["bp2"])
    return out[:, :pred]


# ---------------------------------------------------------------------------
# Parameters (deterministic init, PyTorch-Linear-style uniform(-1/sqrt(fan_in)));
# MXU weights pre-cast to bf16 once, biases pre-shaped (1, dim) in f32.
# ---------------------------------------------------------------------------
def init_params(key, cfg):
    E, dff, dm = cfg["embed_dim"], cfg["d_ff"], cfg["d_model"]
    patch, L, pred = cfg["patch_size"], cfg["seq_len"], cfg["pred_len"]
    stride = patch // 2
    P = (L - patch) // stride + 1
    keys = iter(jax.random.split(key, 8 + 12 * cfg["e_layers"] + 8))

    def dense(fan_in, fan_out, bias=True):
        bound = 1.0 / math.sqrt(fan_in)
        w = jax.random.uniform(next(keys), (fan_in, fan_out), _F32, -bound, bound)
        b = (jax.random.uniform(next(keys), (fan_out,), _F32, -bound, bound)
             if bias else None)
        return w, b

    params = {}
    # Value embedding (Linear patch -> E); im2col folded into a banded (L, P*E)
    # weight so the embed kernel is a single lane-dense matmul.
    w_emb, _ = dense(patch, E, bias=False)
    w_exp = jnp.zeros((L, P * E), _F32)
    for s in range(P):
        w_exp = w_exp.at[s * stride:s * stride + patch, s * E:(s + 1) * E].set(w_emb)
    params["w_exp"] = w_exp.astype(_BF16)

    layers = []
    for _ in range(cfg["e_layers"]):
        lp = {}
        wq, bq = dense(E, E)
        wk, bk = dense(E, E)
        wv, bv = dense(E, E)
        lp["wqkv"] = jnp.concatenate([wq, wk, wv], axis=1).astype(_BF16)
        lp["bqkv"] = jnp.concatenate([bq, bk, bv], axis=0).reshape(1, -1)
        wo, bo = dense(E, E)
        lp["wo"], lp["bo"] = wo.astype(_BF16), bo.reshape(1, -1)
        w1, bc1 = dense(E, dff)                 # conv1 (k=1) == linear
        w2, bc2 = dense(dff, E)                 # conv2 (k=1) == linear
        lp["w1"], lp["bc1"] = w1.astype(_BF16), bc1.reshape(1, -1)
        lp["w2"], lp["bc2"] = w2.astype(_BF16), bc2.reshape(1, -1)
        lp["g1"], lp["b1"] = jnp.ones((1, E), _F32), jnp.zeros((1, E), _F32)
        lp["g2"], lp["b2"] = jnp.ones((1, E), _F32), jnp.zeros((1, E), _F32)
        layers.append(lp)
    params["layers"] = layers
    params["gf"], params["bf"] = jnp.ones((1, E), _F32), jnp.zeros((1, E), _F32)

    wp1, bp1 = dense(P * E, dm)                 # projector1
    params["wp1"], params["bp1"] = wp1.astype(_BF16), bp1.reshape(1, -1)
    wp2, bp2 = dense(dm, pred)                  # projector2, output lanes zero-padded to 128
    pred_pad = ((pred + 127) // 128) * 128
    params["wp2"] = jnp.zeros((dm, pred_pad), _F32).at[:, :pred].set(wp2).astype(_BF16)
    params["bp2"] = jnp.zeros((1, pred_pad), _F32).at[:, :pred].set(bp2.reshape(1, -1))
    # NOTE: `head` and `projector_mid` in the PyTorch module are unused in forward().
    return params


# ---------------------------------------------------------------------------
# Full forward (Model.forward -> forecast)
# ---------------------------------------------------------------------------
def timepfn_forward(params, x_enc, x_mark_enc, x_dec, x_mark_dec, cfg):
    del x_dec, x_mark_dec  # unused by the forecast path
    B, L, N = x_enc.shape
    patch = cfg["patch_size"]
    stride = patch // 2
    P = (L - patch) // stride + 1
    E = cfg["embed_dim"]
    pred = cfg["pred_len"]

    # ---- fused instance-norm + feature-patch embedding (1 launch) ----
    # TODO(synk): DataEmbedding_FeaturePatching's positional/temporal embedding
    # term is not modeled; only the patch value embedding (shared across series
    # and mark channels) is implemented.
    tok, mean, std = pallas_embed(x_enc, x_mark_enc, params["w_exp"], cfg)
    N_ = tok.shape[1]
    Ltok = N_ * P
    xenc = tok.reshape(B, Ltok, E)              # channel-major, patch-minor tokens

    # ---- Transformer encoder: ONE fused kernel per layer ----
    n_layers = len(params["layers"])
    for li, lp in enumerate(params["layers"]):
        final_gb = (params["gf"], params["bf"]) if li == n_layers - 1 else None
        xenc = pallas_encoder_layer(xenc, lp, cfg, final_gb=final_gb)
    if n_layers == 0:
        xenc = pallas_layernorm(xenc, params["gf"], params["bf"])

    # per-row (channel) de-norm stats; mark channels use std=1 / mean=0 (tiny ops)
    if x_mark_enc is not None:
        Mk = x_mark_enc.shape[2]
        std = jnp.concatenate([std, jnp.ones((B, 1, Mk), _F32)], axis=2)
        mean = jnp.concatenate([mean, jnp.zeros((B, 1, Mk), _F32)], axis=2)
    std_rows = jnp.transpose(std, (0, 2, 1)).reshape(B * N_, 1)
    mean_rows = jnp.transpose(mean, (0, 2, 1)).reshape(B * N_, 1)

    # ---- projection head with fused de-normalization (1 launch) ----
    xflat = xenc.reshape(B * N_, P * E)
    dec = pallas_head(xflat, std_rows, mean_rows, params, cfg)   # (B*N_, pred)
    dec = jnp.transpose(dec.reshape(B, N_, pred), (0, 2, 1))[:, :, :N]
    return dec[:, -pred:, :]


# ---------------------------------------------------------------------------
if __name__ == "__main__":
    cfg = dict(
        seq_len=16, pred_len=8, patch_size=8, embed_dim=32, n_heads=4,
        d_ff=64, d_model=32, e_layers=2, use_norm=True, activation="gelu",
    )
    key = jax.random.PRNGKey(0)
    kp, kx, km = jax.random.split(key, 3)
    params = init_params(kp, cfg)

    B, N, Mk = 2, 4, 2
    x_enc = jax.random.normal(kx, (B, cfg["seq_len"], N), _F32)
    x_mark_enc = jax.random.normal(km, (B, cfg["seq_len"], Mk), _F32)

    fwd = jax.jit(lambda p, xe, xm: timepfn_forward(p, xe, xm, None, None, cfg))
    out = jax.block_until_ready(fwd(params, x_enc, x_mark_enc))
    assert out.shape == (B, cfg["pred_len"], N), out.shape
    assert bool(jnp.all(jnp.isfinite(out)))
    print("KERNEL_OK")
</pallas_src>

<mosaic_0001>
module attributes {stable_mosaic.version = 11 : i64} {
  func.func @body(%arg0: i32, %arg1: memref<1x16x4xf32, #tpu.memory_space<vmem>>, %arg2: memref<1x16x2xf32, #tpu.memory_space<vmem>>, %arg3: memref<16x96xbf16, #tpu.memory_space<vmem>>, %arg4: memref<1x6x96xf32, #tpu.memory_space<vmem>>, %arg5: memref<1x1x4xf32, #tpu.memory_space<vmem>>, %arg6: memref<1x1x4xf32, #tpu.memory_space<vmem>>) attributes {dimension_semantics = [#tpu.dimension_semantics<parallel>], iteration_bounds = array<i64: 2>, scalar_prefetch = 0 : i64, scratch_operands = 0 : i64, tpu.core_type = #tpu.core_type<tc>, window_params = [{transform_indices = @transform_0, window_bounds = array<i64: 1, 16, 4>}, {transform_indices = @transform_1, window_bounds = array<i64: 1, 16, 2>}, {pipeline_mode = #tpu.pipeline_mode<synchronous>, transform_indices = @transform_2, window_bounds = array<i64: 16, 96>}, {transform_indices = @transform_3, window_bounds = array<i64: 1, 6, 96>}, {transform_indices = @transform_4, window_bounds = array<i64: 1, 1, 4>}, {transform_indices = @transform_5, window_bounds = array<i64: 1, 1, 4>}]} {
    %c0 = arith.constant 0 : index
    %c0_0 = arith.constant 0 : index
    %c0_1 = arith.constant 0 : index
    %0 = vector.load %arg1[%c0, %c0_0, %c0_1] : memref<1x16x4xf32, #tpu.memory_space<vmem>>, vector<1x16x4xf32>
    %1 = vector.shape_cast %0 : vector<1x16x4xf32> to vector<16x4xf32>
    %cst = arith.constant dense<0.000000e+00> : vector<4xf32>
    %2 = vector.multi_reduction <add>, %1, %cst [0] : vector<16x4xf32> to vector<4xf32>
    %3 = vector.shape_cast %2 : vector<4xf32> to vector<1x4xf32>
    %cst_2 = arith.constant 1.600000e+01 : f32
    %4 = vector.broadcast %cst_2 : f32 to vector<1x4xf32>
    %5 = arith.divf %3, %4 : vector<1x4xf32>
    %6 = vector.broadcast %5 : vector<1x4xf32> to vector<16x4xf32>
    %7 = arith.subf %1, %6 : vector<16x4xf32>
    %8 = arith.mulf %7, %7 : vector<16x4xf32>
    %cst_3 = arith.constant dense<0.000000e+00> : vector<4xf32>
    %9 = vector.multi_reduction <add>, %8, %cst_3 [0] : vector<16x4xf32> to vector<4xf32>
    %10 = vector.shape_cast %9 : vector<4xf32> to vector<1x4xf32>
    %cst_4 = arith.constant 1.600000e+01 : f32
    %11 = vector.broadcast %cst_4 : f32 to vector<1x4xf32>
    %12 = arith.divf %10, %11 : vector<1x4xf32>
    %cst_5 = arith.constant 9.99999974E-5 : f32
    %13 = vector.broadcast %cst_5 : f32 to vector<1x4xf32>
    %14 = arith.addf %12, %13 : vector<1x4xf32>
    %15 = math.sqrt %14 : vector<1x4xf32>
    %16 = vector.broadcast %15 : vector<1x4xf32> to vector<16x4xf32>
    %17 = arith.divf %7, %16 : vector<16x4xf32>
    %c0_6 = arith.constant 0 : index
    %c0_7 = arith.constant 0 : index
    %c0_8 = arith.constant 0 : index
    %18 = vector.load %arg5[%c0_6, %c0_7, %c0_8] : memref<1x1x4xf32, #tpu.memory_space<vmem>>, vector<1x1x4xf32>
    %19 = vector.shape_cast %18 : vector<1x1x4xf32> to vector<1x4xf32>
    %20 = vector.shape_cast %5 : vector<1x4xf32> to vector<1x1x4xf32>
    tpu.vector_store %arg5[%c0_6, %c0_7, %c0_8], %20 {strides = array<i32>} : memref<1x1x4xf32, #tpu.memory_space<vmem>>, vector<1x1x4xf32>,
    %c0_9 = arith.constant 0 : index
    %c0_10 = arith.constant 0 : index
    %c0_11 = arith.constant 0 : index
    %21 = vector.load %arg6[%c0_9, %c0_10, %c0_11] : memref<1x1x4xf32, #tpu.memory_space<vmem>>, vector<1x1x4xf32>
    %22 = vector.shape_cast %21 : vector<1x1x4xf32> to vector<1x4xf32>
    %23 = vector.shape_cast %15 : vector<1x4xf32> to vector<1x1x4xf32>
    tpu.vector_store %arg6[%c0_9, %c0_10, %c0_11], %23 {strides = array<i32>} : memref<1x1x4xf32, #tpu.memory_space<vmem>>, vector<1x1x4xf32>,
    %c0_12 = arith.constant 0 : index
    %c0_13 = arith.constant 0 : index
    %24 = vector.load %arg3[%c0_12, %c0_13] : memref<16x96xbf16, #tpu.memory_space<vmem>>, vector<16x96xbf16>
    %25 = tpu.transpose %17, [1, 0] : vector<16x4xf32> -> vector<4x16xf32>
    %26 = arith.truncf %25 : vector<4x16xf32> to vector<4x16xbf16>
    %cst_14 = arith.constant dense<0.000000e+00> : vector<4x96xf32>
    %27 = tpu.matmul %26, %24, %cst_14 {dimension_numbers = #tpu.dot_dimension_numbers<[1], [0], [0], [1], [0, 0, 1, 1], [], []>} : vector<4x16xbf16>, vector<16x96xbf16>, vector<4x96xf32> -> vector<4x96xf32>
    %c0_15 = arith.constant 0 : index
    %c0_16 = arith.constant 0 : index
    %c0_17 = arith.constant 0 : index
    %28 = vector.load %arg2[%c0_15, %c0_16, %c0_17] : memref<1x16x2xf32, #tpu.memory_space<vmem>>, vector<1x16x2xf32>
    %29 = vector.shape_cast %28 : vector<1x16x2xf32> to vector<16x2xf32>
    %30 = tpu.transpose %29, [1, 0] : vector<16x2xf32> -> vector<2x16xf32>
    %31 = arith.truncf %30 : vector<2x16xf32> to vector<2x16xbf16>
    %cst_18 = arith.constant dense<0.000000e+00> : vector<2x96xf32>
    %32 = tpu.matmul %31, %24, %cst_18 {dimension_numbers = #tpu.dot_dimension_numbers<[1], [0], [0], [1], [0, 0, 1, 1], [], []>} : vector<2x16xbf16>, vector<16x96xbf16>, vector<2x96xf32> -> vector<2x96xf32>
    %33 = tpu.concatenate %27, %32 in 0 : vector<4x96xf32>, vector<2x96xf32> -> vector<6x96xf32>
    %c0_19 = arith.constant 0 : index
    %c0_20 = arith.constant 0 : index
    %c0_21 = arith.constant 0 : index
    %34 = vector.load %arg4[%c0_19, %c0_20, %c0_21] : memref<1x6x96xf32, #tpu.memory_space<vmem>>, vector<1x6x96xf32>
    %35 = vector.shape_cast %34 : vector<1x6x96xf32> to vector<6x96xf32>
    %36 = vector.shape_cast %33 : vector<6x96xf32> to vector<1x6x96xf32>
    tpu.vector_store %arg4[%c0_19, %c0_20, %c0_21], %36 {strides = array<i32>} : memref<1x6x96xf32, #tpu.memory_space<vmem>>, vector<1x6x96xf32>,
    return
  }
  func.func @transform_0(%arg0: i32) -> (i32, i32, i32) {
    %c0_i32 = arith.constant 0 : i32
    %c0_i32_0 = arith.constant 0 : i32
    %c0_i32_1 = arith.constant 0 : i32
    return %arg0, %c0_i32, %c0_i32_0 : i32, i32, i32
  }
  func.func @transform_1(%arg0: i32) -> (i32, i32, i32) {
    %c0_i32 = arith.constant 0 : i32
    %c0_i32_0 = arith.constant 0 : i32
    %c0_i32_1 = arith.constant 0 : i32
    return %arg0, %c0_i32, %c0_i32_0 : i32, i32, i32
  }
  func.func @transform_2(%arg0: i32) -> (i32, i32) {
    %c0_i32 = arith.constant 0 : i32
    %c0_i32_0 = arith.constant 0 : i32
    %c0_i32_1 = arith.constant 0 : i32
    return %c0_i32, %c0_i32_0 : i32, i32
  }
  func.func @transform_3(%arg0: i32) -> (i32, i32, i32) {
    %c0_i32 = arith.constant 0 : i32
    %c0_i32_0 = arith.constant 0 : i32
    %c0_i32_1 = arith.constant 0 : i32
    return %arg0, %c0_i32, %c0_i32_0 : i32, i32, i32
  }
  func.func @transform_4(%arg0: i32) -> (i32, i32, i32) {
    %c0_i32 = arith.constant 0 : i32
    %c0_i32_0 = arith.constant 0 : i32
    %c0_i32_1 = arith.constant 0 : i32
    return %arg0, %c0_i32, %c0_i32_0 : i32, i32, i32
  }
  func.func @transform_5(%arg0: i32) -> (i32, i32, i32) {
    %c0_i32 = arith.constant 0 : i32
    %c0_i32_0 = arith.constant 0 : i32
    %c0_i32_1 = arith.constant 0 : i32
    return %arg0, %c0_i32, %c0_i32_0 : i32, i32, i32
  }
}

module attributes {stable_mosaic.version = 11 : i64} {
  func.func @kernel(%arg0: i32, %arg1: memref<1x18x32xf32, #tpu.memory_space<vmem>>, %arg2: memref<32x96xbf16, #tpu.memory_space<vmem>>, %arg3: memref<1x96xf32, #tpu.memory_space<vmem>>, %arg4: memref<32x32xbf16, #tpu.memory_space<vmem>>, %arg5: memref<1x32xf32, #tpu.memory_space<vmem>>, %arg6: memref<1x32xf32, #tpu.memory_space<vmem>>, %arg7: memref<1x32xf32, #tpu.memory_space<vmem>>, %arg8: memref<32x64xbf16, #tpu.memory_space<vmem>>, %arg9: memref<1x64xf32, #tpu.memory_space<vmem>>, %arg10: memref<64x32xbf16, #tpu.memory_space<vmem>>, %arg11: memref<1x32xf32, #tpu.memory_space<vmem>>, %arg12: memref<1x32xf32, #tpu.memory_space<vmem>>, %arg13: memref<1x32xf32, #tpu.memory_space<vmem>>, %arg14: memref<1x18x32xf32, #tpu.memory_space<vmem>>, %arg15: memref<18x32xf32, #tpu.memory_space<vmem>>) attributes {dimension_semantics = [#tpu.dimension_semantics<parallel>], iteration_bounds = array<i64: 2>, scalar_prefetch = 0 : i64, scratch_operands = 1 : i64, tpu.core_type = #tpu.core_type<tc>, window_params = [{transform_indices = @transform_0, window_bounds = array<i64: 1, 18, 32>}, {pipeline_mode = #tpu.pipeline_mode<synchronous>, transform_indices = @transform_1, window_bounds = array<i64: 32, 96>}, {pipeline_mode = #tpu.pipeline_mode<synchronous>, transform_indices = @transform_2, window_bounds = array<i64: 1, 96>}, {pipeline_mode = #tpu.pipeline_mode<synchronous>, transform_indices = @transform_3, window_bounds = array<i64: 32, 32>}, {pipeline_mode = #tpu.pipeline_mode<synchronous>, transform_indices = @transform_4, window_bounds = array<i64: 1, 32>}, {pipeline_mode = #tpu.pipeline_mode<synchronous>, transform_indices = @transform_5, window_bounds = array<i64: 1, 32>}, {pipeline_mode = #tpu.pipeline_mode<synchronous>, transform_indices = @transform_6, window_bounds = array<i64: 1, 32>}, {pipeline_mode = #tpu.pipeline_mode<synchronous>, transform_indices = @transform_7, window_bounds = array<i64: 32, 64>}, {pipeline_mode = #tpu.pipeline_mode<synchronous>, transform_indices = @transform_8, window_bounds = array<i64: 1, 64>}, {pipeline_mode = #tpu.pipeline_mode<synchronous>, transform_indices = @transform_9, window_bounds = array<i64: 64, 32>}, {pipeline_mode = #tpu.pipeline_mode<synchronous>, transform_indices = @transform_10, window_bounds = array<i64: 1, 32>}, {pipeline_mode = #tpu.pipeline_mode<synchronous>, transform_indices = @transform_11, window_bounds = array<i64: 1, 32>}, {pipeline_mode = #tpu.pipeline_mode<synchronous>, transform_indices = @transform_12, window_bounds = array<i64: 1, 32>}, {transform_indices = @transform_13, window_bounds = array<i64: 1, 18, 32>}]} {
    %c0 = arith.constant 0 : index
    %c0_0 = arith.constant 0 : index
    %c0_1 = arith.constant 0 : index
    %0 = vector.load %arg1[%c0, %c0_0, %c0_1] : memref<1x18x32xf32, #tpu.memory_space<vmem>>, vector<1x18x32xf32>
    %1 = vector.shape_cast %0 : vector<1x18x32xf32> to vector<18x32xf32>
    %2 = arith.truncf %1 : vector<18x32xf32> to vector<18x32xbf16>
    %c0_2 = arith.constant 0 : index
    %c0_3 = arith.constant 0 : index
    %3 = vector.load %arg2[%c0_2, %c0_3] : memref<32x96xbf16, #tpu.memory_space<vmem>>, vector<32x96xbf16>
    %cst = arith.constant dense<0.000000e+00> : vector<18x96xf32>
    %4 = tpu.matmul %2, %3, %cst {dimension_numbers = #tpu.dot_dimension_numbers<[1], [0], [0], [1], [0, 0, 1, 1], [], []>} : vector<18x32xbf16>, vector<32x96xbf16>, vector<18x96xf32> -> vector<18x96xf32>
    %c0_4 = arith.constant 0 : index
    %c0_5 = arith.constant 0 : index
    %5 = vector.load %arg3[%c0_4, %c0_5] : memref<1x96xf32, #tpu.memory_space<vmem>>, vector<1x96xf32>
    %6 = vector.broadcast %5 : vector<1x96xf32> to vector<18x96xf32>
    %7 = arith.addf %4, %6 : vector<18x96xf32>
    %8 = vector.extract_strided_slice %7 {offsets = [0, 0], sizes = [18, 32], strides = [1, 1]} : vector<18x96xf32> to vector<18x32xf32>
    %9 = vector.extract_strided_slice %7 {offsets = [0, 64], sizes = [18, 32], strides = [1, 1]} : vector<18x96xf32> to vector<18x32xf32>
    %10 = vector.extract_strided_slice %7 {offsets = [0, 32], sizes = [18, 32], strides = [1, 1]} : vector<18x96xf32> to vector<18x32xf32>
    %11 = tpu.transpose %10, [1, 0] : vector<18x32xf32> -> vector<32x18xf32>
    %12 = vector.extract_strided_slice %8 {offsets = [0, 0], sizes = [18, 8], strides = [1, 1]} : vector<18x32xf32> to vector<18x8xf32>
    %13 = arith.truncf %12 : vector<18x8xf32> to vector<18x8xbf16>
    %14 = vector.extract_strided_slice %11 {offsets = [0, 0], sizes = [8, 18], strides = [1, 1]} : vector<32x18xf32> to vector<8x18xf32>
    %15 = arith.truncf %14 : vector<8x18xf32> to vector<8x18xbf16>
    %16 = vector.extract_strided_slice %9 {offsets = [0, 0], sizes = [18, 8], strides = [1, 1]} : vector<18x32xf32> to vector<18x8xf32>
    %17 = arith.truncf %16 : vector<18x8xf32> to vector<18x8xbf16>
    %cst_6 = arith.constant dense<0.000000e+00> : vector<18x18xf32>
    %18 = tpu.matmul %13, %15, %cst_6 {dimension_numbers = #tpu.dot_dimension_numbers<[1], [0], [0], [1], [0, 0, 1, 1], [], []>} : vector<18x8xbf16>, vector<8x18xbf16>, vector<18x18xf32> -> vector<18x18xf32>
    %cst_7 = arith.constant 0.353553385 : f32
    %19 = vector.broadcast %cst_7 : f32 to vector<18x18xf32>
    %20 = arith.mulf %18, %19 : vector<18x18xf32>
    %cst_8 = arith.constant dense<0xFF800000> : vector<18xf32>
    %21 = vector.multi_reduction <maximumf>, %20, %cst_8 [1] : vector<18x18xf32> to vector<18xf32>
    %22 = vector.shape_cast %21 : vector<18xf32> to vector<18x1xf32>
    %23 = vector.broadcast %22 : vector<18x1xf32> to vector<18x18xf32>
    %24 = arith.subf %20, %23 : vector<18x18xf32>
    %25 = math.exp %24 : vector<18x18xf32>
    %cst_9 = arith.constant dense<0.000000e+00> : vector<18xf32>
    %26 = vector.multi_reduction <add>, %25, %cst_9 [1] : vector<18x18xf32> to vector<18xf32>
    %27 = vector.shape_cast %26 : vector<18xf32> to vector<18x1xf32>
    %28 = vector.broadcast %27 : vector<18x1xf32> to vector<18x18xf32>
    %29 = arith.divf %25, %28 : vector<18x18xf32>
    %30 = arith.truncf %29 : vector<18x18xf32> to vector<18x18xbf16>
    %cst_10 = arith.constant dense<0.000000e+00> : vector<18x8xf32>
    %31 = tpu.matmul %30, %17, %cst_10 {dimension_numbers = #tpu.dot_dimension_numbers<[1], [0], [0], [1], [0, 0, 1, 1], [], []>} : vector<18x18xbf16>, vector<18x8xbf16>, vector<18x8xf32> -> vector<18x8xf32>
    %c0_11 = arith.constant 0 : index
    %c0_12 = arith.constant 0 : index
    %32 = vector.load %arg15[%c0_11, %c0_12] : memref<18x32xf32, #tpu.memory_space<vmem>>, vector<18x8xf32>
    tpu.vector_store %arg15[%c0_11, %c0_12], %31 {strides = array<i32>} : memref<18x32xf32, #tpu.memory_space<vmem>>, vector<18x8xf32>,
    %33 = vector.extract_strided_slice %8 {offsets = [0, 8], sizes = [18, 8], strides = [1, 1]} : vector<18x32xf32> to vector<18x8xf32>
    %34 = arith.truncf %33 : vector<18x8xf32> to vector<18x8xbf16>
    %35 = vector.extract_strided_slice %11 {offsets = [8, 0], sizes = [8, 18], strides = [1, 1]} : vector<32x18xf32> to vector<8x18xf32>
    %36 = arith.truncf %35 : vector<8x18xf32> to vector<8x18xbf16>
    %37 = vector.extract_strided_slice %9 {offsets = [0, 8], sizes = [18, 8], strides = [1, 1]} : vector<18x32xf32> to vector<18x8xf32>
    %38 = arith.truncf %37 : vector<18x8xf32> to vector<18x8xbf16>
    %cst_13 = arith.constant dense<0.000000e+00> : vector<18x18xf32>
    %39 = tpu.matmul %34, %36, %cst_13 {dimension_numbers = #tpu.dot_dimension_numbers<[1], [0], [0], [1], [0, 0, 1, 1], [], []>} : vector<18x8xbf16>, vector<8x18xbf16>, vector<18x18xf32> -> vector<18x18xf32>
    %cst_14 = arith.constant 0.353553385 : f32
    %40 = vector.broadcast %cst_14 : f32 to vector<18x18xf32>
    %41 = arith.mulf %39, %40 : vector<18x18xf32>
    %cst_15 = arith.constant dense<0xFF800000> : vector<18xf32>
    %42 = vector.multi_reduction <maximumf>, %41, %cst_15 [1] : vector<18x18xf32> to vector<18xf32>
    %43 = vector.shape_cast %42 : vector<18xf32> to vector<18x1xf32>
    %44 = vector.broadcast %43 : vector<18x1xf32> to vector<18x18xf32>
    %45 = arith.subf %41, %44 : vector<18x18xf32>
    %46 = math.exp %45 : vector<18x18xf32>
    %cst_16 = arith.constant dense<0.000000e+00> : vector<18xf32>
    %47 = vector.multi_reduction <add>, %46, %cst_16 [1] : vector<18x18xf32> to vector<18xf32>
    %48 = vector.shape_cast %47 : vector<18xf32> to vector<18x1xf32>
    %49 = vector.broadcast %48 : vector<18x1xf32> to vector<18x18xf32>
    %50 = arith.divf %46, %49 : vector<18x18xf32>
    %51 = arith.truncf %50 : vector<18x18xf32> to vector<18x18xbf16>
    %cst_17 = arith.constant dense<0.000000e+00> : vector<18x8xf32>
    %52 = tpu.matmul %51, %38, %cst_17 {dimension_numbers = #tpu.dot_dimension_numbers<[1], [0], [0], [1], [0, 0, 1, 1], [], []>} : vector<18x18xbf16>, vector<18x8xbf16>, vector<18x8xf32> -> vector<18x8xf32>
    %c0_18 = arith.constant 0 : index
    %c8 = arith.constant 8 : index
    %53 = vector.load %arg15[%c0_18, %c8] : memref<18x32xf32, #tpu.memory_space<vmem>>, vector<18x8xf32>
    tpu.vector_store %arg15[%c0_18, %c8], %52 {strides = array<i32>} : memref<18x32xf32, #tpu.memory_space<vmem>>, vector<18x8xf32>,
    %54 = vector.extract_strided_slice %8 {offsets = [0, 16], sizes = [18, 8], strides = [1, 1]} : vector<18x32xf32> to vector<18x8xf32>
    %55 = arith.truncf %54 : vector<18x8xf32> to vector<18x8xbf16>
    %56 = vector.extract_strided_slice %11 {offsets = [16, 0], sizes = [8, 18], strides = [1, 1]} : vector<32x18xf32> to vector<8x18xf32>
    %57 = arith.truncf %56 : vector<8x18xf32> to vector<8x18xbf16>
    %58 = vector.extract_strided_slice %9 {offsets = [0, 16], sizes = [18, 8], strides = [1, 1]} : vector<18x32xf32> to vector<18x8xf32>
    %59 = arith.truncf %58 : vector<18x8xf32> to vector<18x8xbf16>
    %cst_19 = arith.constant dense<0.000000e+00> : vector<18x18xf32>
    %60 = tpu.matmul %55, %57, %cst_19 {dimension_numbers = #tpu.dot_dimension_numbers<[1], [0], [0], [1], [0, 0, 1, 1], [], []>} : vector<18x8xbf16>, vector<8x18xbf16>, vector<18x18xf32> -> vector<18x18xf32>
    %cst_20 = arith.constant 0.353553385 : f32
    %61 = vector.broadcast %cst_20 : f32 to vector<18x18xf32>
    %62 = arith.mulf %60, %61 : vector<18x18xf32>
    %cst_21 = arith.constant dense<0xFF800000> : vector<18xf32>
    %63 = vector.multi_reduction <maximumf>, %62, %cst_21 [1] : vector<18x18xf32> to vector<18xf32>
    %64 = vector.shape_cast %63 : vector<18xf32> to vector<18x1xf32>
    %65 = vector.broadcast %64 : vector<18x1xf32> to vector<18x18xf32>
    %66 = arith.subf %62, %65 : vector<18x18xf32>
    %67 = math.exp %66 : vector<18x18xf32>
    %cst_22 = arith.constant dense<0.000000e+00> : vector<18xf32>
    %68 = vector.multi_reduction <add>, %67, %cst_22 [1] : vector<18x18xf32> to vector<18xf32>
    %69 = vector.shape_cast %68 : vector<18xf32> to vector<18x1xf32>
    %70 = vector.broadcast %69 : vector<18x1xf32> to vector<18x18xf32>
    %71 = arith.divf %67, %70 : vector<18x18xf32>
    %72 = arith.truncf %71 : vector<18x18xf32> to vector<18x18xbf16>
    %cst_23 = arith.constant dense<0.000000e+00> : vector<18x8xf32>
    %73 = tpu.matmul %72, %59, %cst_23 {dimension_numbers = #tpu.dot_dimension_numbers<[1], [0], [0], [1], [0, 0, 1, 1], [], []>} : vector<18x18xbf16>, vector<18x8xbf16>, vector<18x8xf32> -> vector<18x8xf32>
    %c0_24 = arith.constant 0 : index
    %c16 = arith.constant 16 : index
    %74 = vector.load %arg15[%c0_24, %c16] : memref<18x32xf32, #tpu.memory_space<vmem>>, vector<18x8xf32>
    tpu.vector_store %arg15[%c0_24, %c16], %73 {strides = array<i32>} : memref<18x32xf32, #tpu.memory_space<vmem>>, vector<18x8xf32>,
    %75 = vector.extract_strided_slice %8 {offsets = [0, 24], sizes = [18, 8], strides = [1, 1]} : vector<18x32xf32> to vector<18x8xf32>
    %76 = arith.truncf %75 : vector<18x8xf32> to vector<18x8xbf16>
    %77 = vector.extract_strided_slice %11 {offsets = [24, 0], sizes = [8, 18], strides = [1, 1]} : vector<32x18xf32> to vector<8x18xf32>
    %78 = arith.truncf %77 : vector<8x18xf32> to vector<8x18xbf16>
    %79 = vector.extract_strided_slice %9 {offsets = [0, 24], sizes = [18, 8], strides = [1, 1]} : vector<18x32xf32> to vector<18x8xf32>
    %80 = arith.truncf %79 : vector<18x8xf32> to vector<18x8xbf16>
    %cst_25 = arith.constant dense<0.000000e+00> : vector<18x18xf32>
    %81 = tpu.matmul %76, %78, %cst_25 {dimension_numbers = #tpu.dot_dimension_numbers<[1], [0], [0], [1], [0, 0, 1, 1], [], []>} : vector<18x8xbf16>, vector<8x18xbf16>, vector<18x18xf32> -> vector<18x18xf32>
    %cst_26 = arith.constant 0.353553385 : f32
    %82 = vector.broadcast %cst_26 : f32 to vector<18x18xf32>
    %83 = arith.mulf %81, %82 : vector<18x18xf32>
    %cst_27 = arith.constant dense<0xFF800000> : vector<18xf32>
    %84 = vector.multi_reduction <maximumf>, %83, %cst_27 [1] : vector<18x18xf32> to vector<18xf32>
    %85 = vector.shape_cast %84 : vector<18xf32> to vector<18x1xf32>
    %86 = vector.broadcast %85 : vector<18x1xf32> to vector<18x18xf32>
    %87 = arith.subf %83, %86 : vector<18x18xf32>
    %88 = math.exp %87 : vector<18x18xf32>
    %cst_28 = arith.constant dense<0.000000e+00> : vector<18xf32>
    %89 = vector.multi_reduction <add>, %88, %cst_28 [1] : vector<18x18xf32> to vector<18xf32>
    %90 = vector.shape_cast %89 : vector<18xf32> to vector<18x1xf32>
    %91 = vector.broadcast %90 : vector<18x1xf32> to vector<18x18xf32>
    %92 = arith.divf %88, %91 : vector<18x18xf32>
    %93 = arith.truncf %92 : vector<18x18xf32> to vector<18x18xbf16>
    %cst_29 = arith.constant dense<0.000000e+00> : vector<18x8xf32>
    %94 = tpu.matmul %93, %80, %cst_29 {dimension_numbers = #tpu.dot_dimension_numbers<[1], [0], [0], [1], [0, 0, 1, 1], [], []>} : vector<18x18xbf16>, vector<18x8xbf16>, vector<18x8xf32> -> vector<18x8xf32>
    %c0_30 = arith.constant 0 : index
    %c24 = arith.constant 24 : index
    %95 = vector.load %arg15[%c0_30, %c24] : memref<18x32xf32, #tpu.memory_space<vmem>>, vector<18x8xf32>
    tpu.vector_store %arg15[%c0_30, %c24], %94 {strides = array<i32>} : memref<18x32xf32, #tpu.memory_space<vmem>>, vector<18x8xf32>,
    %c0_31 = arith.constant 0 : index
    %c0_32 = arith.constant 0 : index
    %96 = vector.load %arg15[%c0_31, %c0_32] : memref<18x32xf32, #tpu.memory_space<vmem>>, vector<18x32xf32>
    %97 = arith.truncf %96 : vector<18x32xf32> to vector<18x32xbf16>
    %c0_33 = arith.constant 0 : index
    %c0_34 = arith.constant 0 : index
    %98 = vector.load %arg4[%c0_33, %c0_34] : memref<32x32xbf16, #tpu.memory_space<vmem>>, vector<32x32xbf16>
    %cst_35 = arith.constant dense<0.000000e+00> : vector<18x32xf32>
    %99 = tpu.matmul %97, %98, %cst_35 {dimension_numbers = #tpu.dot_dimension_numbers<[1], [0], [0], [1], [0, 0, 1, 1], [], []>} : vector<18x32xbf16>, vector<32x32xbf16>, vector<18x32xf32> -> vector<18x32xf32>
    %c0_36 = arith.constant 0 : index
    %c0_37 = arith.constant 0 : index
    %100 = vector.load %arg5[%c0_36, %c0_37] : memref<1x32xf32, #tpu.memory_space<vmem>>, vector<1x32xf32>
    %101 = vector.broadcast %100 : vector<1x32xf32> to vector<18x32xf32>
    %102 = arith.addf %99, %101 : vector<18x32xf32>
    %103 = arith.addf %1, %102 : vector<18x32xf32>
    %c0_38 = arith.constant 0 : index
    %c0_39 = arith.constant 0 : index
    %104 = vector.load %arg6[%c0_38, %c0_39] : memref<1x32xf32, #tpu.memory_space<vmem>>, vector<1x32xf32>
    %c0_40 = arith.constant 0 : index
    %c0_41 = arith.constant 0 : index
    %105 = vector.load %arg7[%c0_40, %c0_41] : memref<1x32xf32, #tpu.memory_space<vmem>>, vector<1x32xf32>
    %cst_42 = arith.constant dense<0.000000e+00> : vector<18xf32>
    %106 = vector.multi_reduction <add>, %103, %cst_42 [1] : vector<18x32xf32> to vector<18xf32>
    %107 = vector.shape_cast %106 : vector<18xf32> to vector<18x1xf32>
    %cst_43 = arith.constant 3.200000e+01 : f32
    %108 = vector.broadcast %cst_43 : f32 to vector<18x1xf32>
    %109 = arith.divf %107, %108 : vector<18x1xf32>
    %110 = vector.broadcast %109 : vector<18x1xf32> to vector<18x32xf32>
    %111 = arith.subf %103, %110 : vector<18x32xf32>
    %112 = arith.mulf %111, %111 : vector<18x32xf32>
    %cst_44 = arith.constant dense<0.000000e+00> : vector<18xf32>
    %113 = vector.multi_reduction <add>, %112, %cst_44 [1] : vector<18x32xf32> to vector<18xf32>
    %114 = vector.shape_cast %113 : vector<18xf32> to vector<18x1xf32>
    %cst_45 = arith.constant 3.200000e+01 : f32
    %115 = vector.broadcast %cst_45 : f32 to vector<18x1xf32>
    %116 = arith.divf %114, %115 : vector<18x1xf32>
    %cst_46 = arith.constant 9.99999974E-6 : f32
    %117 = vector.broadcast %cst_46 : f32 to vector<18x1xf32>
    %118 = arith.addf %116, %117 : vector<18x1xf32>
    %119 = math.rsqrt %118 : vector<18x1xf32>
    %120 = vector.broadcast %119 : vector<18x1xf32> to vector<18x32xf32>
    %121 = arith.mulf %111, %120 : vector<18x32xf32>
    %122 = vector.broadcast %104 : vector<1x32xf32> to vector<18x32xf32>
    %123 = arith.mulf %121, %122 : vector<18x32xf32>
    %124 = vector.broadcast %105 : vector<1x32xf32> to vector<18x32xf32>
    %125 = arith.addf %123, %124 : vector<18x32xf32>
    %126 = arith.truncf %125 : vector<18x32xf32> to vector<18x32xbf16>
    %cst_47 = arith.constant 0.000000e+00 : f32
    %127 = vector.broadcast %cst_47 : f32 to vector<18x32xf32>
    %c0_48 = arith.constant 0 : index
    %c0_49 = arith.constant 0 : index
    %128 = vector.load %arg8[%c0_48, %c0_49] : memref<32x64xbf16, #tpu.memory_space<vmem>>, vector<32x64xbf16>
    %cst_50 = arith.constant dense<0.000000e+00> : vector<18x64xf32>
    %129 = tpu.matmul %126, %128, %cst_50 {dimension_numbers = #tpu.dot_dimension_numbers<[1], [0], [0], [1], [0, 0, 1, 1], [], []>} : vector<18x32xbf16>, vector<32x64xbf16>, vector<18x64xf32> -> vector<18x64xf32>
    %c0_51 = arith.constant 0 : index
    %c0_52 = arith.constant 0 : index
    %130 = vector.load %arg9[%c0_51, %c0_52] : memref<1x64xf32, #tpu.memory_space<vmem>>, vector<1x64xf32>
    %131 = vector.broadcast %130 : vector<1x64xf32> to vector<18x64xf32>
    %132 = arith.addf %129, %131 : vector<18x64xf32>
    %cst_53 = arith.constant 5.000000e-01 : f32
    %133 = vector.broadcast %cst_53 : f32 to vector<18x64xf32>
    %134 = arith.mulf %133, %132 : vector<18x64xf32>
    %cst_54 = arith.constant 0.707106769 : f32
    %135 = vector.broadcast %cst_54 : f32 to vector<18x64xf32>
    %136 = arith.mulf %132, %135 : vector<18x64xf32>
    %137 = math.erf %136 : vector<18x64xf32>
    %cst_55 = arith.constant 1.000000e+00 : f32
    %138 = vector.broadcast %cst_55 : f32 to vector<18x64xf32>
    %139 = arith.addf %138, %137 : vector<18x64xf32>
    %140 = arith.mulf %134, %139 : vector<18x64xf32>
    %141 = arith.truncf %140 : vector<18x64xf32> to vector<18x64xbf16>
    %c0_56 = arith.constant 0 : index
    %c0_57 = arith.constant 0 : index
    %142 = vector.load %arg10[%c0_56, %c0_57] : memref<64x32xbf16, #tpu.memory_space<vmem>>, vector<64x32xbf16>
    %cst_58 = arith.constant dense<0.000000e+00> : vector<18x32xf32>
    %143 = tpu.matmul %141, %142, %cst_58 {dimension_numbers = #tpu.dot_dimension_numbers<[1], [0], [0], [1], [0, 0, 1, 1], [], []>} : vector<18x64xbf16>, vector<64x32xbf16>, vector<18x32xf32> -> vector<18x32xf32>
    %144 = arith.addf %127, %143 : vector<18x32xf32>
    %c0_59 = arith.constant 0 : index
    %c0_60 = arith.constant 0 : index
    %145 = vector.load %arg11[%c0_59, %c0_60] : memref<1x32xf32, #tpu.memory_space<vmem>>, vector<1x32xf32>
    %146 = vector.broadcast %145 : vector<1x32xf32> to vector<18x32xf32>
    %147 = arith.addf %144, %146 : vector<18x32xf32>
    %148 = arith.addf %125, %147 : vector<18x32xf32>
    %c0_61 = arith.constant 0 : index
    %c0_62 = arith.constant 0 : index
    %149 = vector.load %arg12[%c0_61, %c0_62] : memref<1x32xf32, #tpu.memory_space<vmem>>, vector<1x32xf32>
    %c0_63 = arith.constant 0 : index
    %c0_64 = arith.constant 0 : index
    %150 = vector.load %arg13[%c0_63, %c0_64] : memref<1x32xf32, #tpu.memory_space<vmem>>, vector<1x32xf32>
    %cst_65 = arith.constant dense<0.000000e+00> : vector<18xf32>
    %151 = vector.multi_reduction <add>, %148, %cst_65 [1] : vector<18x32xf32> to vector<18xf32>
    %152 = vector.shape_cast %151 : vector<18xf32> to vector<18x1xf32>
    %cst_66 = arith.constant 3.200000e+01 : f32
    %153 = vector.broadcast %cst_66 : f32 to vector<18x1xf32>
    %154 = arith.divf %152, %153 : vector<18x1xf32>
    %155 = vector.broadcast %154 : vector<18x1xf32> to vector<18x32xf32>
    %156 = arith.subf %148, %155 : vector<18x32xf32>
    %157 = arith.mulf %156, %156 : vector<18x32xf32>
    %cst_67 = arith.constant dense<0.000000e+00> : vector<18xf32>
    %158 = vector.multi_reduction <add>, %157, %cst_67 [1] : vector<18x32xf32> to vector<18xf32>
    %159 = vector.shape_cast %158 : vector<18xf32> to vector<18x1xf32>
    %cst_68 = arith.constant 3.200000e+01 : f32
    %160 = vector.broadcast %cst_68 : f32 to vector<18x1xf32>
    %161 = arith.divf %159, %160 : vector<18x1xf32>
    %cst_69 = arith.constant 9.99999974E-6 : f32
    %162 = vector.broadcast %cst_69 : f32 to vector<18x1xf32>
    %163 = arith.addf %161, %162 : vector<18x1xf32>
    %164 = math.rsqrt %163 : vector<18x1xf32>
    %165 = vector.broadcast %164 : vector<18x1xf32> to vector<18x32xf32>
    %166 = arith.mulf %156, %165 : vector<18x32xf32>
    %167 = vector.broadcast %149 : vector<1x32xf32> to vector<18x32xf32>
    %168 = arith.mulf %166, %167 : vector<18x32xf32>
    %169 = vector.broadcast %150 : vector<1x32xf32> to vector<18x32xf32>
    %170 = arith.addf %168, %169 : vector<18x32xf32>
    %c0_70 = arith.constant 0 : index
    %c0_71 = arith.constant 0 : index
    %c0_72 = arith.constant 0 : index
    %171 = vector.load %arg14[%c0_70, %c0_71, %c0_72] : memref<1x18x32xf32, #tpu.memory_space<vmem>>, vector<1x18x32xf32>
    %172 = vector.shape_cast %171 : vector<1x18x32xf32> to vector<18x32xf32>
    %173 = vector.shape_cast %170 : vector<18x32xf32> to vector<1x18x32xf32>
    tpu.vector_store %arg14[%c0_70, %c0_71, %c0_72], %173 {strides = array<i32>} : memref<1x18x32xf32, #tpu.memory_space<vmem>>, vector<1x18x32xf32>,
    return
  }
  func.func @transform_0(%arg0: i32) -> (i32, i32, i32) {
    %c0_i32 = arith.constant 0 : i32
    %c0_i32_0 = arith.constant 0 : i32
    %c0_i32_1 = arith.constant 0 : i32
    return %arg0, %c0_i32, %c0_i32_0 : i32, i32, i32
  }
  func.func @transform_1(%arg0: i32) -> (i32, i32) {
    %c0_i32 = arith.constant 0 : i32
    %c0_i32_0 = arith.constant 0 : i32
    %c0_i32_1 = arith.constant 0 : i32
    return %c0_i32, %c0_i32_0 : i32, i32
  }
  func.func @transform_2(%arg0: i32) -> (i32, i32) {
    %c0_i32 = arith.constant 0 : i32
    %c0_i32_0 = arith.constant 0 : i32
    %c0_i32_1 = arith.constant 0 : i32
    return %c0_i32, %c0_i32_0 : i32, i32
  }
  func.func @transform_3(%arg0: i32) -> (i32, i32) {
    %c0_i32 = arith.constant 0 : i32
    %c0_i32_0 = arith.constant 0 : i32
    %c0_i32_1 = arith.constant 0 : i32
    return %c0_i32, %c0_i32_0 : i32, i32
  }
  func.func @transform_4(%arg0: i32) -> (i32, i32) {
    %c0_i32 = arith.constant 0 : i32
    %c0_i32_0 = arith.constant 0 : i32
    %c0_i32_1 = arith.constant 0 : i32
    return %c0_i32, %c0_i32_0 : i32, i32
  }
  func.func @transform_5(%arg0: i32) -> (i32, i32) {
    %c0_i32 = arith.constant 0 : i32
    %c0_i32_0 = arith.constant 0 : i32
    %c0_i32_1 = arith.constant 0 : i32
    return %c0_i32, %c0_i32_0 : i32, i32
  }
  func.func @transform_6(%arg0: i32) -> (i32, i32) {
    %c0_i32 = arith.constant 0 : i32
    %c0_i32_0 = arith.constant 0 : i32
    %c0_i32_1 = arith.constant 0 : i32
    return %c0_i32, %c0_i32_0 : i32, i32
  }
  func.func @transform_7(%arg0: i32) -> (i32, i32) {
    %c0_i32 = arith.constant 0 : i32
    %c0_i32_0 = arith.constant 0 : i32
    %c0_i32_1 = arith.constant 0 : i32
    return %c0_i32, %c0_i32_0 : i32, i32
  }
  func.func @transform_8(%arg0: i32) -> (i32, i32) {
    %c0_i32 = arith.constant 0 : i32
    %c0_i32_0 = arith.constant 0 : i32
    %c0_i32_1 = arith.constant 0 : i32
    return %c0_i32, %c0_i32_0 : i32, i32
  }
  func.func @transform_9(%arg0: i32) -> (i32, i32) {
    %c0_i32 = arith.constant 0 : i32
    %c0_i32_0 = arith.constant 0 : i32
    %c0_i32_1 = arith.constant 0 : i32
    return %c0_i32, %c0_i32_0 : i32, i32
  }
  func.func @transform_10(%arg0: i32) -> (i32, i32) {
    %c0_i32 = arith.constant 0 : i32
    %c0_i32_0 = arith.constant 0 : i32
    %c0_i32_1 = arith.constant 0 : i32
    return %c0_i32, %c0_i32_0 : i32, i32
  }
  func.func @transform_11(%arg0: i32) -> (i32, i32) {
    %c0_i32 = arith.constant 0 : i32
    %c0_i32_0 = arith.constant 0 : i32
    %c0_i32_1 = arith.constant 0 : i32
    return %c0_i32, %c0_i32_0 : i32, i32
  }
  func.func @transform_12(%arg0: i32) -> (i32, i32) {
    %c0_i32 = arith.constant 0 : i32
    %c0_i32_0 = arith.constant 0 : i32
    %c0_i32_1 = arith.constant 0 : i32
    return %c0_i32, %c0_i32_0 : i32, i32
  }
  func.func @transform_13(%arg0: i32) -> (i32, i32, i32) {
    %c0_i32 = arith.constant 0 : i32
    %c0_i32_0 = arith.constant 0 : i32
    %c0_i32_1 = arith.constant 0 : i32
    return %arg0, %c0_i32, %c0_i32_0 : i32, i32, i32
  }
}

module attributes {stable_mosaic.version = 11 : i64} {
  func.func @kernel(%arg0: i32, %arg1: memref<1x18x32xf32, #tpu.memory_space<vmem>>, %arg2: memref<32x96xbf16, #tpu.memory_space<vmem>>, %arg3: memref<1x96xf32, #tpu.memory_space<vmem>>, %arg4: memref<32x32xbf16, #tpu.memory_space<vmem>>, %arg5: memref<1x32xf32, #tpu.memory_space<vmem>>, %arg6: memref<1x32xf32, #tpu.memory_space<vmem>>, %arg7: memref<1x32xf32, #tpu.memory_space<vmem>>, %arg8: memref<32x64xbf16, #tpu.memory_space<vmem>>, %arg9: memref<1x64xf32, #tpu.memory_space<vmem>>, %arg10: memref<64x32xbf16, #tpu.memory_space<vmem>>, %arg11: memref<1x32xf32, #tpu.memory_space<vmem>>, %arg12: memref<1x32xf32, #tpu.memory_space<vmem>>, %arg13: memref<1x32xf32, #tpu.memory_space<vmem>>, %arg14: memref<1x32xf32, #tpu.memory_space<vmem>>, %arg15: memref<1x32xf32, #tpu.memory_space<vmem>>, %arg16: memref<1x18x32xf32, #tpu.memory_space<vmem>>, %arg17: memref<18x32xf32, #tpu.memory_space<vmem>>) attributes {dimension_semantics = [#tpu.dimension_semantics<parallel>], iteration_bounds = array<i64: 2>, scalar_prefetch = 0 : i64, scratch_operands = 1 : i64, tpu.core_type = #tpu.core_type<tc>, window_params = [{transform_indices = @transform_0, window_bounds = array<i64: 1, 18, 32>}, {pipeline_mode = #tpu.pipeline_mode<synchronous>, transform_indices = @transform_1, window_bounds = array<i64: 32, 96>}, {pipeline_mode = #tpu.pipeline_mode<synchronous>, transform_indices = @transform_2, window_bounds = array<i64: 1, 96>}, {pipeline_mode = #tpu.pipeline_mode<synchronous>, transform_indices = @transform_3, window_bounds = array<i64: 32, 32>}, {pipeline_mode = #tpu.pipeline_mode<synchronous>, transform_indices = @transform_4, window_bounds = array<i64: 1, 32>}, {pipeline_mode = #tpu.pipeline_mode<synchronous>, transform_indices = @transform_5, window_bounds = array<i64: 1, 32>}, {pipeline_mode = #tpu.pipeline_mode<synchronous>, transform_indices = @transform_6, window_bounds = array<i64: 1, 32>}, {pipeline_mode = #tpu.pipeline_mode<synchronous>, transform_indices = @transform_7, window_bounds = array<i64: 32, 64>}, {pipeline_mode = #tpu.pipeline_mode<synchronous>, transform_indices = @transform_8, window_bounds = array<i64: 1, 64>}, {pipeline_mode = #tpu.pipeline_mode<synchronous>, transform_indices = @transform_9, window_bounds = array<i64: 64, 32>}, {pipeline_mode = #tpu.pipeline_mode<synchronous>, transform_indices = @transform_10, window_bounds = array<i64: 1, 32>}, {pipeline_mode = #tpu.pipeline_mode<synchronous>, transform_indices = @transform_11, window_bounds = array<i64: 1, 32>}, {pipeline_mode = #tpu.pipeline_mode<synchronous>, transform_indices = @transform_12, window_bounds = array<i64: 1, 32>}, {pipeline_mode = #tpu.pipeline_mode<synchronous>, transform_indices = @transform_13, window_bounds = array<i64: 1, 32>}, {pipeline_mode = #tpu.pipeline_mode<synchronous>, transform_indices = @transform_14, window_bounds = array<i64: 1, 32>}, {transform_indices = @transform_15, window_bounds = array<i64: 1, 18, 32>}]} {
    %c0 = arith.constant 0 : index
    %c0_0 = arith.constant 0 : index
    %c0_1 = arith.constant 0 : index
    %0 = vector.load %arg1[%c0, %c0_0, %c0_1] : memref<1x18x32xf32, #tpu.memory_space<vmem>>, vector<1x18x32xf32>
    %1 = vector.shape_cast %0 : vector<1x18x32xf32> to vector<18x32xf32>
    %2 = arith.truncf %1 : vector<18x32xf32> to vector<18x32xbf16>
    %c0_2 = arith.constant 0 : index
    %c0_3 = arith.constant 0 : index
    %3 = vector.load %arg2[%c0_2, %c0_3] : memref<32x96xbf16, #tpu.memory_space<vmem>>, vector<32x96xbf16>
    %cst = arith.constant dense<0.000000e+00> : vector<18x96xf32>
    %4 = tpu.matmul %2, %3, %cst {dimension_numbers = #tpu.dot_dimension_numbers<[1], [0], [0], [1], [0, 0, 1, 1], [], []>} : vector<18x32xbf16>, vector<32x96xbf16>, vector<18x96xf32> -> vector<18x96xf32>
    %c0_4 = arith.constant 0 : index
    %c0_5 = arith.constant 0 : index
    %5 = vector.load %arg3[%c0_4, %c0_5] : memref<1x96xf32, #tpu.memory_space<vmem>>, vector<1x96xf32>
    %6 = vector.broadcast %5 : vector<1x96xf32> to vector<18x96xf32>
    %7 = arith.addf %4, %6 : vector<18x96xf32>
    %8 = vector.extract_strided_slice %7 {offsets = [0, 0], sizes = [18, 32], strides = [1, 1]} : vector<18x96xf32> to vector<18x32xf32>
    %9 = vector.extract_strided_slice %7 {offsets = [0, 64], sizes = [18, 32], strides = [1, 1]} : vector<18x96xf32> to vector<18x32xf32>
    %10 = vector.extract_strided_slice %7 {offsets = [0, 32], sizes = [18, 32], strides = [1, 1]} : vector<18x96xf32> to vector<18x32xf32>
    %11 = tpu.transpose %10, [1, 0] : vector<18x32xf32> -> vector<32x18xf32>
    %12 = vector.extract_strided_slice %8 {offsets = [0, 0], sizes = [18, 8], strides = [1, 1]} : vector<18x32xf32> to vector<18x8xf32>
    %13 = arith.truncf %12 : vector<18x8xf32> to vector<18x8xbf16>
    %14 = vector.extract_strided_slice %11 {offsets = [0, 0], sizes = [8, 18], strides = [1, 1]} : vector<32x18xf32> to vector<8x18xf32>
    %15 = arith.truncf %14 : vector<8x18xf32> to vector<8x18xbf16>
    %16 = vector.extract_strided_slice %9 {offsets = [0, 0], sizes = [18, 8], strides = [1, 1]} : vector<18x32xf32> to vector<18x8xf32>
    %17 = arith.truncf %16 : vector<18x8xf32> to vector<18x8xbf16>
    %cst_6 = arith.constant dense<0.000000e+00> : vector<18x18xf32>
    %18 = tpu.matmul %13, %15, %cst_6 {dimension_numbers = #tpu.dot_dimension_numbers<[1], [0], [0], [1], [0, 0, 1, 1], [], []>} : vector<18x8xbf16>, vector<8x18xbf16>, vector<18x18xf32> -> vector<18x18xf32>
    %cst_7 = arith.constant 0.353553385 : f32
    %19 = vector.broadcast %cst_7 : f32 to vector<18x18xf32>
    %20 = arith.mulf %18, %19 : vector<18x18xf32>
    %cst_8 = arith.constant dense<0xFF800000> : vector<18xf32>
    %21 = vector.multi_reduction <maximumf>, %20, %cst_8 [1] : vector<18x18xf32> to vector<18xf32>
    %22 = vector.shape_cast %21 : vector<18xf32> to vector<18x1xf32>
    %23 = vector.broadcast %22 : vector<18x1xf32> to vector<18x18xf32>
    %24 = arith.subf %20, %23 : vector<18x18xf32>
    %25 = math.exp %24 : vector<18x18xf32>
    %cst_9 = arith.constant dense<0.000000e+00> : vector<18xf32>
    %26 = vector.multi_reduction <add>, %25, %cst_9 [1] : vector<18x18xf32> to vector<18xf32>
    %27 = vector.shape_cast %26 : vector<18xf32> to vector<18x1xf32>
    %28 = vector.broadcast %27 : vector<18x1xf32> to vector<18x18xf32>
    %29 = arith.divf %25, %28 : vector<18x18xf32>
    %30 = arith.truncf %29 : vector<18x18xf32> to vector<18x18xbf16>
    %cst_10 = arith.constant dense<0.000000e+00> : vector<18x8xf32>
    %31 = tpu.matmul %30, %17, %cst_10 {dimension_numbers = #tpu.dot_dimension_numbers<[1], [0], [0], [1], [0, 0, 1, 1], [], []>} : vector<18x18xbf16>, vector<18x8xbf16>, vector<18x8xf32> -> vector<18x8xf32>
    %c0_11 = arith.constant 0 : index
    %c0_12 = arith.constant 0 : index
    %32 = vector.load %arg17[%c0_11, %c0_12] : memref<18x32xf32, #tpu.memory_space<vmem>>, vector<18x8xf32>
    tpu.vector_store %arg17[%c0_11, %c0_12], %31 {strides = array<i32>} : memref<18x32xf32, #tpu.memory_space<vmem>>, vector<18x8xf32>,
    %33 = vector.extract_strided_slice %8 {offsets = [0, 8], sizes = [18, 8], strides = [1, 1]} : vector<18x32xf32> to vector<18x8xf32>
    %34 = arith.truncf %33 : vector<18x8xf32> to vector<18x8xbf16>
    %35 = vector.extract_strided_slice %11 {offsets = [8, 0], sizes = [8, 18], strides = [1, 1]} : vector<32x18xf32> to vector<8x18xf32>
    %36 = arith.truncf %35 : vector<8x18xf32> to vector<8x18xbf16>
    %37 = vector.extract_strided_slice %9 {offsets = [0, 8], sizes = [18, 8], strides = [1, 1]} : vector<18x32xf32> to vector<18x8xf32>
    %38 = arith.truncf %37 : vector<18x8xf32> to vector<18x8xbf16>
    %cst_13 = arith.constant dense<0.000000e+00> : vector<18x18xf32>
    %39 = tpu.matmul %34, %36, %cst_13 {dimension_numbers = #tpu.dot_dimension_numbers<[1], [0], [0], [1], [0, 0, 1, 1], [], []>} : vector<18x8xbf16>, vector<8x18xbf16>, vector<18x18xf32> -> vector<18x18xf32>
    %cst_14 = arith.constant 0.353553385 : f32
    %40 = vector.broadcast %cst_14 : f32 to vector<18x18xf32>
    %41 = arith.mulf %39, %40 : vector<18x18xf32>
    %cst_15 = arith.constant dense<0xFF800000> : vector<18xf32>
    %42 = vector.multi_reduction <maximumf>, %41, %cst_15 [1] : vector<18x18xf32> to vector<18xf32>
    %43 = vector.shape_cast %42 : vector<18xf32> to vector<18x1xf32>
    %44 = vector.broadcast %43 : vector<18x1xf32> to vector<18x18xf32>
    %45 = arith.subf %41, %44 : vector<18x18xf32>
    %46 = math.exp %45 : vector<18x18xf32>
    %cst_16 = arith.constant dense<0.000000e+00> : vector<18xf32>
    %47 = vector.multi_reduction <add>, %46, %cst_16 [1] : vector<18x18xf32> to vector<18xf32>
    %48 = vector.shape_cast %47 : vector<18xf32> to vector<18x1xf32>
    %49 = vector.broadcast %48 : vector<18x1xf32> to vector<18x18xf32>
    %50 = arith.divf %46, %49 : vector<18x18xf32>
    %51 = arith.truncf %50 : vector<18x18xf32> to vector<18x18xbf16>
    %cst_17 = arith.constant dense<0.000000e+00> : vector<18x8xf32>
    %52 = tpu.matmul %51, %38, %cst_17 {dimension_numbers = #tpu.dot_dimension_numbers<[1], [0], [0], [1], [0, 0, 1, 1], [], []>} : vector<18x18xbf16>, vector<18x8xbf16>, vector<18x8xf32> -> vector<18x8xf32>
    %c0_18 = arith.constant 0 : index
    %c8 = arith.constant 8 : index
    %53 = vector.load %arg17[%c0_18, %c8] : memref<18x32xf32, #tpu.memory_space<vmem>>, vector<18x8xf32>
    tpu.vector_store %arg17[%c0_18, %c8], %52 {strides = array<i32>} : memref<18x32xf32, #tpu.memory_space<vmem>>, vector<18x8xf32>,
    %54 = vector.extract_strided_slice %8 {offsets = [0, 16], sizes = [18, 8], strides = [1, 1]} : vector<18x32xf32> to vector<18x8xf32>
    %55 = arith.truncf %54 : vector<18x8xf32> to vector<18x8xbf16>
    %56 = vector.extract_strided_slice %11 {offsets = [16, 0], sizes = [8, 18], strides = [1, 1]} : vector<32x18xf32> to vector<8x18xf32>
    %57 = arith.truncf %56 : vector<8x18xf32> to vector<8x18xbf16>
    %58 = vector.extract_strided_slice %9 {offsets = [0, 16], sizes = [18, 8], strides = [1, 1]} : vector<18x32xf32> to vector<18x8xf32>
    %59 = arith.truncf %58 : vector<18x8xf32> to vector<18x8xbf16>
    %cst_19 = arith.constant dense<0.000000e+00> : vector<18x18xf32>
    %60 = tpu.matmul %55, %57, %cst_19 {dimension_numbers = #tpu.dot_dimension_numbers<[1], [0], [0], [1], [0, 0, 1, 1], [], []>} : vector<18x8xbf16>, vector<8x18xbf16>, vector<18x18xf32> -> vector<18x18xf32>
    %cst_20 = arith.constant 0.353553385 : f32
    %61 = vector.broadcast %cst_20 : f32 to vector<18x18xf32>
    %62 = arith.mulf %60, %61 : vector<18x18xf32>
    %cst_21 = arith.constant dense<0xFF800000> : vector<18xf32>
    %63 = vector.multi_reduction <maximumf>, %62, %cst_21 [1] : vector<18x18xf32> to vector<18xf32>
    %64 = vector.shape_cast %63 : vector<18xf32> to vector<18x1xf32>
    %65 = vector.broadcast %64 : vector<18x1xf32> to vector<18x18xf32>
    %66 = arith.subf %62, %65 : vector<18x18xf32>
    %67 = math.exp %66 : vector<18x18xf32>
    %cst_22 = arith.constant dense<0.000000e+00> : vector<18xf32>
    %68 = vector.multi_reduction <add>, %67, %cst_22 [1] : vector<18x18xf32> to vector<18xf32>
    %69 = vector.shape_cast %68 : vector<18xf32> to vector<18x1xf32>
    %70 = vector.broadcast %69 : vector<18x1xf32> to vector<18x18xf32>
    %71 = arith.divf %67, %70 : vector<18x18xf32>
    %72 = arith.truncf %71 : vector<18x18xf32> to vector<18x18xbf16>
    %cst_23 = arith.constant dense<0.000000e+00> : vector<18x8xf32>
    %73 = tpu.matmul %72, %59, %cst_23 {dimension_numbers = #tpu.dot_dimension_numbers<[1], [0], [0], [1], [0, 0, 1, 1], [], []>} : vector<18x18xbf16>, vector<18x8xbf16>, vector<18x8xf32> -> vector<18x8xf32>
    %c0_24 = arith.constant 0 : index
    %c16 = arith.constant 16 : index
    %74 = vector.load %arg17[%c0_24, %c16] : memref<18x32xf32, #tpu.memory_space<vmem>>, vector<18x8xf32>
    tpu.vector_store %arg17[%c0_24, %c16], %73 {strides = array<i32>} : memref<18x32xf32, #tpu.memory_space<vmem>>, vector<18x8xf32>,
    %75 = vector.extract_strided_slice %8 {offsets = [0, 24], sizes = [18, 8], strides = [1, 1]} : vector<18x32xf32> to vector<18x8xf32>
    %76 = arith.truncf %75 : vector<18x8xf32> to vector<18x8xbf16>
    %77 = vector.extract_strided_slice %11 {offsets = [24, 0], sizes = [8, 18], strides = [1, 1]} : vector<32x18xf32> to vector<8x18xf32>
    %78 = arith.truncf %77 : vector<8x18xf32> to vector<8x18xbf16>
    %79 = vector.extract_strided_slice %9 {offsets = [0, 24], sizes = [18, 8], strides = [1, 1]} : vector<18x32xf32> to vector<18x8xf32>
    %80 = arith.truncf %79 : vector<18x8xf32> to vector<18x8xbf16>
    %cst_25 = arith.constant dense<0.000000e+00> : vector<18x18xf32>
    %81 = tpu.matmul %76, %78, %cst_25 {dimension_numbers = #tpu.dot_dimension_numbers<[1], [0], [0], [1], [0, 0, 1, 1], [], []>} : vector<18x8xbf16>, vector<8x18xbf16>, vector<18x18xf32> -> vector<18x18xf32>
    %cst_26 = arith.constant 0.353553385 : f32
    %82 = vector.broadcast %cst_26 : f32 to vector<18x18xf32>
    %83 = arith.mulf %81, %82 : vector<18x18xf32>
    %cst_27 = arith.constant dense<0xFF800000> : vector<18xf32>
    %84 = vector.multi_reduction <maximumf>, %83, %cst_27 [1] : vector<18x18xf32> to vector<18xf32>
    %85 = vector.shape_cast %84 : vector<18xf32> to vector<18x1xf32>
    %86 = vector.broadcast %85 : vector<18x1xf32> to vector<18x18xf32>
    %87 = arith.subf %83, %86 : vector<18x18xf32>
    %88 = math.exp %87 : vector<18x18xf32>
    %cst_28 = arith.constant dense<0.000000e+00> : vector<18xf32>
    %89 = vector.multi_reduction <add>, %88, %cst_28 [1] : vector<18x18xf32> to vector<18xf32>
    %90 = vector.shape_cast %89 : vector<18xf32> to vector<18x1xf32>
    %91 = vector.broadcast %90 : vector<18x1xf32> to vector<18x18xf32>
    %92 = arith.divf %88, %91 : vector<18x18xf32>
    %93 = arith.truncf %92 : vector<18x18xf32> to vector<18x18xbf16>
    %cst_29 = arith.constant dense<0.000000e+00> : vector<18x8xf32>
    %94 = tpu.matmul %93, %80, %cst_29 {dimension_numbers = #tpu.dot_dimension_numbers<[1], [0], [0], [1], [0, 0, 1, 1], [], []>} : vector<18x18xbf16>, vector<18x8xbf16>, vector<18x8xf32> -> vector<18x8xf32>
    %c0_30 = arith.constant 0 : index
    %c24 = arith.constant 24 : index
    %95 = vector.load %arg17[%c0_30, %c24] : memref<18x32xf32, #tpu.memory_space<vmem>>, vector<18x8xf32>
    tpu.vector_store %arg17[%c0_30, %c24], %94 {strides = array<i32>} : memref<18x32xf32, #tpu.memory_space<vmem>>, vector<18x8xf32>,
    %c0_31 = arith.constant 0 : index
    %c0_32 = arith.constant 0 : index
    %96 = vector.load %arg17[%c0_31, %c0_32] : memref<18x32xf32, #tpu.memory_space<vmem>>, vector<18x32xf32>
    %97 = arith.truncf %96 : vector<18x32xf32> to vector<18x32xbf16>
    %c0_33 = arith.constant 0 : index
    %c0_34 = arith.constant 0 : index
    %98 = vector.load %arg4[%c0_33, %c0_34] : memref<32x32xbf16, #tpu.memory_space<vmem>>, vector<32x32xbf16>
    %cst_35 = arith.constant dense<0.000000e+00> : vector<18x32xf32>
    %99 = tpu.matmul %97, %98, %cst_35 {dimension_numbers = #tpu.dot_dimension_numbers<[1], [0], [0], [1], [0, 0, 1, 1], [], []>} : vector<18x32xbf16>, vector<32x32xbf16>, vector<18x32xf32> -> vector<18x32xf32>
    %c0_36 = arith.constant 0 : index
    %c0_37 = arith.constant 0 : index
    %100 = vector.load %arg5[%c0_36, %c0_37] : memref<1x32xf32, #tpu.memory_space<vmem>>, vector<1x32xf32>
    %101 = vector.broadcast %100 : vector<1x32xf32> to vector<18x32xf32>
    %102 = arith.addf %99, %101 : vector<18x32xf32>
    %103 = arith.addf %1, %102 : vector<18x32xf32>
    %c0_38 = arith.constant 0 : index
    %c0_39 = arith.constant 0 : index
    %104 = vector.load %arg6[%c0_38, %c0_39] : memref<1x32xf32, #tpu.memory_space<vmem>>, vector<1x32xf32>
    %c0_40 = arith.constant 0 : index
    %c0_41 = arith.constant 0 : index
    %105 = vector.load %arg7[%c0_40, %c0_41] : memref<1x32xf32, #tpu.memory_space<vmem>>, vector<1x32xf32>
    %cst_42 = arith.constant dense<0.000000e+00> : vector<18xf32>
    %106 = vector.multi_reduction <add>, %103, %cst_42 [1] : vector<18x32xf32> to vector<18xf32>
    %107 = vector.shape_cast %106 : vector<18xf32> to vector<18x1xf32>
    %cst_43 = arith.constant 3.200000e+01 : f32
    %108 = vector.broadcast %cst_43 : f32 to vector<18x1xf32>
    %109 = arith.divf %107, %108 : vector<18x1xf32>
    %110 = vector.broadcast %109 : vector<18x1xf32> to vector<18x32xf32>
    %111 = arith.subf %103, %110 : vector<18x32xf32>
    %112 = arith.mulf %111, %111 : vector<18x32xf32>
    %cst_44 = arith.constant dense<0.000000e+00> : vector<18xf32>
    %113 = vector.multi_reduction <add>, %112, %cst_44 [1] : vector<18x32xf32> to vector<18xf32>
    %114 = vector.shape_cast %113 : vector<18xf32> to vector<18x1xf32>
    %cst_45 = arith.constant 3.200000e+01 : f32
    %115 = vector.broadcast %cst_45 : f32 to vector<18x1xf32>
    %116 = arith.divf %114, %115 : vector<18x1xf32>
    %cst_46 = arith.constant 9.99999974E-6 : f32
    %117 = vector.broadcast %cst_46 : f32 to vector<18x1xf32>
    %118 = arith.addf %116, %117 : vector<18x1xf32>
    %119 = math.rsqrt %118 : vector<18x1xf32>
    %120 = vector.broadcast %119 : vector<18x1xf32> to vector<18x32xf32>
    %121 = arith.mulf %111, %120 : vector<18x32xf32>
    %122 = vector.broadcast %104 : vector<1x32xf32> to vector<18x32xf32>
    %123 = arith.mulf %121, %122 : vector<18x32xf32>
    %124 = vector.broadcast %105 : vector<1x32xf32> to vector<18x32xf32>
    %125 = arith.addf %123, %124 : vector<18x32xf32>
    %126 = arith.truncf %125 : vector<18x32xf32> to vector<18x32xbf16>
    %cst_47 = arith.constant 0.000000e+00 : f32
    %127 = vector.broadcast %cst_47 : f32 to vector<18x32xf32>
    %c0_48 = arith.constant 0 : index
    %c0_49 = arith.constant 0 : index
    %128 = vector.load %arg8[%c0_48, %c0_49] : memref<32x64xbf16, #tpu.memory_space<vmem>>, vector<32x64xbf16>
    %cst_50 = arith.constant dense<0.000000e+00> : vector<18x64xf32>
    %129 = tpu.matmul %126, %128, %cst_50 {dimension_numbers = #tpu.dot_dimension_numbers<[1], [0], [0], [1], [0, 0, 1, 1], [], []>} : vector<18x32xbf16>, vector<32x64xbf16>, vector<18x64xf32> -> vector<18x64xf32>
    %c0_51 = arith.constant 0 : index
    %c0_52 = arith.constant 0 : index
    %130 = vector.load %arg9[%c0_51, %c0_52] : memref<1x64xf32, #tpu.memory_space<vmem>>, vector<1x64xf32>
    %131 = vector.broadcast %130 : vector<1x64xf32> to vector<18x64xf32>
    %132 = arith.addf %129, %131 : vector<18x64xf32>
    %cst_53 = arith.constant 5.000000e-01 : f32
    %133 = vector.broadcast %cst_53 : f32 to vector<18x64xf32>
    %134 = arith.mulf %133, %132 : vector<18x64xf32>
    %cst_54 = arith.constant 0.707106769 : f32
    %135 = vector.broadcast %cst_54 : f32 to vector<18x64xf32>
    %136 = arith.mulf %132, %135 : vector<18x64xf32>
    %137 = math.erf %136 : vector<18x64xf32>
    %cst_55 = arith.constant 1.000000e+00 : f32
    %138 = vector.broadcast %cst_55 : f32 to vector<18x64xf32>
    %139 = arith.addf %138, %137 : vector<18x64xf32>
    %140 = arith.mulf %134, %139 : vector<18x64xf32>
    %141 = arith.truncf %140 : vector<18x64xf32> to vector<18x64xbf16>
    %c0_56 = arith.constant 0 : index
    %c0_57 = arith.constant 0 : index
    %142 = vector.load %arg10[%c0_56, %c0_57] : memref<64x32xbf16, #tpu.memory_space<vmem>>, vector<64x32xbf16>
    %cst_58 = arith.constant dense<0.000000e+00> : vector<18x32xf32>
    %143 = tpu.matmul %141, %142, %cst_58 {dimension_numbers = #tpu.dot_dimension_numbers<[1], [0], [0], [1], [0, 0, 1, 1], [], []>} : vector<18x64xbf16>, vector<64x32xbf16>, vector<18x32xf32> -> vector<18x32xf32>
    %144 = arith.addf %127, %143 : vector<18x32xf32>
    %c0_59 = arith.constant 0 : index
    %c0_60 = arith.constant 0 : index
    %145 = vector.load %arg11[%c0_59, %c0_60] : memref<1x32xf32, #tpu.memory_space<vmem>>, vector<1x32xf32>
    %146 = vector.broadcast %145 : vector<1x32xf32> to vector<18x32xf32>
    %147 = arith.addf %144, %146 : vector<18x32xf32>
    %148 = arith.addf %125, %147 : vector<18x32xf32>
    %c0_61 = arith.constant 0 : index
    %c0_62 = arith.constant 0 : index
    %149 = vector.load %arg12[%c0_61, %c0_62] : memref<1x32xf32, #tpu.memory_space<vmem>>, vector<1x32xf32>
    %c0_63 = arith.constant 0 : index
    %c0_64 = arith.constant 0 : index
    %150 = vector.load %arg13[%c0_63, %c0_64] : memref<1x32xf32, #tpu.memory_space<vmem>>, vector<1x32xf32>
    %cst_65 = arith.constant dense<0.000000e+00> : vector<18xf32>
    %151 = vector.multi_reduction <add>, %148, %cst_65 [1] : vector<18x32xf32> to vector<18xf32>
    %152 = vector.shape_cast %151 : vector<18xf32> to vector<18x1xf32>
    %cst_66 = arith.constant 3.200000e+01 : f32
    %153 = vector.broadcast %cst_66 : f32 to vector<18x1xf32>
    %154 = arith.divf %152, %153 : vector<18x1xf32>
    %155 = vector.broadcast %154 : vector<18x1xf32> to vector<18x32xf32>
    %156 = arith.subf %148, %155 : vector<18x32xf32>
    %157 = arith.mulf %156, %156 : vector<18x32xf32>
    %cst_67 = arith.constant dense<0.000000e+00> : vector<18xf32>
    %158 = vector.multi_reduction <add>, %157, %cst_67 [1] : vector<18x32xf32> to vector<18xf32>
    %159 = vector.shape_cast %158 : vector<18xf32> to vector<18x1xf32>
    %cst_68 = arith.constant 3.200000e+01 : f32
    %160 = vector.broadcast %cst_68 : f32 to vector<18x1xf32>
    %161 = arith.divf %159, %160 : vector<18x1xf32>
    %cst_69 = arith.constant 9.99999974E-6 : f32
    %162 = vector.broadcast %cst_69 : f32 to vector<18x1xf32>
    %163 = arith.addf %161, %162 : vector<18x1xf32>
    %164 = math.rsqrt %163 : vector<18x1xf32>
    %165 = vector.broadcast %164 : vector<18x1xf32> to vector<18x32xf32>
    %166 = arith.mulf %156, %165 : vector<18x32xf32>
    %167 = vector.broadcast %149 : vector<1x32xf32> to vector<18x32xf32>
    %168 = arith.mulf %166, %167 : vector<18x32xf32>
    %169 = vector.broadcast %150 : vector<1x32xf32> to vector<18x32xf32>
    %170 = arith.addf %168, %169 : vector<18x32xf32>
    %c0_70 = arith.constant 0 : index
    %c0_71 = arith.constant 0 : index
    %171 = vector.load %arg14[%c0_70, %c0_71] : memref<1x32xf32, #tpu.memory_space<vmem>>, vector<1x32xf32>
    %c0_72 = arith.constant 0 : index
    %c0_73 = arith.constant 0 : index
    %172 = vector.load %arg15[%c0_72, %c0_73] : memref<1x32xf32, #tpu.memory_space<vmem>>, vector<1x32xf32>
    %cst_74 = arith.constant dense<0.000000e+00> : vector<18xf32>
    %173 = vector.multi_reduction <add>, %170, %cst_74 [1] : vector<18x32xf32> to vector<18xf32>
    %174 = vector.shape_cast %173 : vector<18xf32> to vector<18x1xf32>
    %cst_75 = arith.constant 3.200000e+01 : f32
    %175 = vector.broadcast %cst_75 : f32 to vector<18x1xf32>
    %176 = arith.divf %174, %175 : vector<18x1xf32>
    %177 = vector.broadcast %176 : vector<18x1xf32> to vector<18x32xf32>
    %178 = arith.subf %170, %177 : vector<18x32xf32>
    %179 = arith.mulf %178, %178 : vector<18x32xf32>
    %cst_76 = arith.constant dense<0.000000e+00> : vector<18xf32>
    %180 = vector.multi_reduction <add>, %179, %cst_76 [1] : vector<18x32xf32> to vector<18xf32>
    %181 = vector.shape_cast %180 : vector<18xf32> to vector<18x1xf32>
    %cst_77 = arith.constant 3.200000e+01 : f32
    %182 = vector.broadcast %cst_77 : f32 to vector<18x1xf32>
    %183 = arith.divf %181, %182 : vector<18x1xf32>
    %cst_78 = arith.constant 9.99999974E-6 : f32
    %184 = vector.broadcast %cst_78 : f32 to vector<18x1xf32>
    %185 = arith.addf %183, %184 : vector<18x1xf32>
    %186 = math.rsqrt %185 : vector<18x1xf32>
    %187 = vector.broadcast %186 : vector<18x1xf32> to vector<18x32xf32>
    %188 = arith.mulf %178, %187 : vector<18x32xf32>
    %189 = vector.broadcast %171 : vector<1x32xf32> to vector<18x32xf32>
    %190 = arith.mulf %188, %189 : vector<18x32xf32>
    %191 = vector.broadcast %172 : vector<1x32xf32> to vector<18x32xf32>
    %192 = arith.addf %190, %191 : vector<18x32xf32>
    %c0_79 = arith.constant 0 : index
    %c0_80 = arith.constant 0 : index
    %c0_81 = arith.constant 0 : index
    %193 = vector.load %arg16[%c0_79, %c0_80, %c0_81] : memref<1x18x32xf32, #tpu.memory_space<vmem>>, vector<1x18x32xf32>
    %194 = vector.shape_cast %193 : vector<1x18x32xf32> to vector<18x32xf32>
    %195 = vector.shape_cast %192 : vector<18x32xf32> to vector<1x18x32xf32>
    tpu.vector_store %arg16[%c0_79, %c0_80, %c0_81], %195 {strides = array<i32>} : memref<1x18x32xf32, #tpu.memory_space<vmem>>, vector<1x18x32xf32>,
    return
  }
  func.func @transform_0(%arg0: i32) -> (i32, i32, i32) {
    %c0_i32 = arith.constant 0 : i32
    %c0_i32_0 = arith.constant 0 : i32
    %c0_i32_1 = arith.constant 0 : i32
    return %arg0, %c0_i32, %c0_i32_0 : i32, i32, i32
  }
  func.func @transform_1(%arg0: i32) -> (i32, i32) {
    %c0_i32 = arith.constant 0 : i32
    %c0_i32_0 = arith.constant 0 : i32
    %c0_i32_1 = arith.constant 0 : i32
    return %c0_i32, %c0_i32_0 : i32, i32
  }
  func.func @transform_2(%arg0: i32) -> (i32, i32) {
    %c0_i32 = arith.constant 0 : i32
    %c0_i32_0 = arith.constant 0 : i32
    %c0_i32_1 = arith.constant 0 : i32
    return %c0_i32, %c0_i32_0 : i32, i32
  }
  func.func @transform_3(%arg0: i32) -> (i32, i32) {
    %c0_i32 = arith.constant 0 : i32
    %c0_i32_0 = arith.constant 0 : i32
    %c0_i32_1 = arith.constant 0 : i32
    return %c0_i32, %c0_i32_0 : i32, i32
  }
  func.func @transform_4(%arg0: i32) -> (i32, i32) {
    %c0_i32 = arith.constant 0 : i32
    %c0_i32_0 = arith.constant 0 : i32
    %c0_i32_1 = arith.constant 0 : i32
    return %c0_i32, %c0_i32_0 : i32, i32
  }
  func.func @transform_5(%arg0: i32) -> (i32, i32) {
    %c0_i32 = arith.constant 0 : i32
    %c0_i32_0 = arith.constant 0 : i32
    %c0_i32_1 = arith.constant 0 : i32
    return %c0_i32, %c0_i32_0 : i32, i32
  }
  func.func @transform_6(%arg0: i32) -> (i32, i32) {
    %c0_i32 = arith.constant 0 : i32
    %c0_i32_0 = arith.constant 0 : i32
    %c0_i32_1 = arith.constant 0 : i32
    return %c0_i32, %c0_i32_0 : i32, i32
  }
  func.func @transform_7(%arg0: i32) -> (i32, i32) {
    %c0_i32 = arith.constant 0 : i32
    %c0_i32_0 = arith.constant 0 : i32
    %c0_i32_1 = arith.constant 0 : i32
    return %c0_i32, %c0_i32_0 : i32, i32
  }
  func.func @transform_8(%arg0: i32) -> (i32, i32) {
    %c0_i32 = arith.constant 0 : i32
    %c0_i32_0 = arith.constant 0 : i32
    %c0_i32_1 = arith.constant 0 : i32
    return %c0_i32, %c0_i32_0 : i32, i32
  }
  func.func @transform_9(%arg0: i32) -> (i32, i32) {
    %c0_i32 = arith.constant 0 : i32
    %c0_i32_0 = arith.constant 0 : i32
    %c0_i32_1 = arith.constant 0 : i32
    return %c0_i32, %c0_i32_0 : i32, i32
  }
  func.func @transform_10(%arg0: i32) -> (i32, i32) {
    %c0_i32 = arith.constant 0 : i32
    %c0_i32_0 = arith.constant 0 : i32
    %c0_i32_1 = arith.constant 0 : i32
    return %c0_i32, %c0_i32_0 : i32, i32
  }
  func.func @transform_11(%arg0: i32) -> (i32, i32) {
    %c0_i32 = arith.constant 0 : i32
    %c0_i32_0 = arith.constant 0 : i32
    %c0_i32_1 = arith.constant 0 : i32
    return %c0_i32, %c0_i32_0 : i32, i32
  }
  func.func @transform_12(%arg0: i32) -> (i32, i32) {
    %c0_i32 = arith.constant 0 : i32
    %c0_i32_0 = arith.constant 0 : i32
    %c0_i32_1 = arith.constant 0 : i32
    return %c0_i32, %c0_i32_0 : i32, i32
  }
  func.func @transform_13(%arg0: i32) -> (i32, i32) {
    %c0_i32 = arith.constant 0 : i32
    %c0_i32_0 = arith.constant 0 : i32
    %c0_i32_1 = arith.constant 0 : i32
    return %c0_i32, %c0_i32_0 : i32, i32
  }
  func.func @transform_14(%arg0: i32) -> (i32, i32) {
    %c0_i32 = arith.constant 0 : i32
    %c0_i32_0 = arith.constant 0 : i32
    %c0_i32_1 = arith.constant 0 : i32
    return %c0_i32, %c0_i32_0 : i32, i32
  }
  func.func @transform_15(%arg0: i32) -> (i32, i32, i32) {
    %c0_i32 = arith.constant 0 : i32
    %c0_i32_0 = arith.constant 0 : i32
    %c0_i32_1 = arith.constant 0 : i32
    return %arg0, %c0_i32, %c0_i32_0 : i32, i32, i32
  }
}

module attributes {stable_mosaic.version = 11 : i64} {
  func.func @_head_kernel(%arg0: i32, %arg1: memref<8x96xf32, #tpu.memory_space<vmem>>, %arg2: memref<8x1xf32, #tpu.memory_space<vmem>>, %arg3: memref<8x1xf32, #tpu.memory_space<vmem>>, %arg4: memref<96x32xbf16, #tpu.memory_space<vmem>>, %arg5: memref<1x32xf32, #tpu.memory_space<vmem>>, %arg6: memref<32x128xbf16, #tpu.memory_space<vmem>>, %arg7: memref<1x128xf32, #tpu.memory_space<vmem>>, %arg8: memref<8x128xf32, #tpu.memory_space<vmem>>) attributes {dimension_semantics = [#tpu.dimension_semantics<parallel>], iteration_bounds = array<i64: 2>, scalar_prefetch = 0 : i64, scratch_operands = 0 : i64, tpu.core_type = #tpu.core_type<tc>, window_params = [{transform_indices = @transform_0, window_bounds = array<i64: 8, 96>}, {transform_indices = @transform_1, window_bounds = array<i64: 8, 1>}, {transform_indices = @transform_2, window_bounds = array<i64: 8, 1>}, {pipeline_mode = #tpu.pipeline_mode<synchronous>, transform_indices = @transform_3, window_bounds = array<i64: 96, 32>}, {pipeline_mode = #tpu.pipeline_mode<synchronous>, transform_indices = @transform_4, window_bounds = array<i64: 1, 32>}, {pipeline_mode = #tpu.pipeline_mode<synchronous>, transform_indices = @transform_5, window_bounds = array<i64: 32, 128>}, {pipeline_mode = #tpu.pipeline_mode<synchronous>, transform_indices = @transform_6, window_bounds = array<i64: 1, 128>}, {transform_indices = @transform_7, window_bounds = array<i64: 8, 128>}]} {
    %c0 = arith.constant 0 : index
    %c0_0 = arith.constant 0 : index
    %0 = vector.load %arg1[%c0, %c0_0] : memref<8x96xf32, #tpu.memory_space<vmem>>, vector<8x96xf32>
    %1 = arith.truncf %0 : vector<8x96xf32> to vector<8x96xbf16>
    %c0_1 = arith.constant 0 : index
    %c0_2 = arith.constant 0 : index
    %2 = vector.load %arg4[%c0_1, %c0_2] : memref<96x32xbf16, #tpu.memory_space<vmem>>, vector<96x32xbf16>
    %cst = arith.constant dense<0.000000e+00> : vector<8x32xf32>
    %3 = tpu.matmul %1, %2, %cst {dimension_numbers = #tpu.dot_dimension_numbers<[1], [0], [0], [1], [0, 0, 1, 1], [], []>} : vector<8x96xbf16>, vector<96x32xbf16>, vector<8x32xf32> -> vector<8x32xf32>
    %c0_3 = arith.constant 0 : index
    %c0_4 = arith.constant 0 : index
    %4 = vector.load %arg5[%c0_3, %c0_4] : memref<1x32xf32, #tpu.memory_space<vmem>>, vector<1x32xf32>
    %5 = vector.broadcast %4 : vector<1x32xf32> to vector<8x32xf32>
    %6 = arith.addf %3, %5 : vector<8x32xf32>
    %cst_5 = arith.constant 5.000000e-01 : f32
    %7 = vector.broadcast %cst_5 : f32 to vector<8x32xf32>
    %8 = arith.mulf %7, %6 : vector<8x32xf32>
    %cst_6 = arith.constant 0.707106769 : f32
    %9 = vector.broadcast %cst_6 : f32 to vector<8x32xf32>
    %10 = arith.mulf %6, %9 : vector<8x32xf32>
    %11 = math.erf %10 : vector<8x32xf32>
    %cst_7 = arith.constant 1.000000e+00 : f32
    %12 = vector.broadcast %cst_7 : f32 to vector<8x32xf32>
    %13 = arith.addf %12, %11 : vector<8x32xf32>
    %14 = arith.mulf %8, %13 : vector<8x32xf32>
    %15 = arith.truncf %14 : vector<8x32xf32> to vector<8x32xbf16>
    %c0_8 = arith.constant 0 : index
    %c0_9 = arith.constant 0 : index
    %16 = vector.load %arg6[%c0_8, %c0_9] : memref<32x128xbf16, #tpu.memory_space<vmem>>, vector<32x128xbf16>
    %cst_10 = arith.constant dense<0.000000e+00> : vector<8x128xf32>
    %17 = tpu.matmul %15, %16, %cst_10 {dimension_numbers = #tpu.dot_dimension_numbers<[1], [0], [0], [1], [0, 0, 1, 1], [], []>} : vector<8x32xbf16>, vector<32x128xbf16>, vector<8x128xf32> -> vector<8x128xf32>
    %c0_11 = arith.constant 0 : index
    %c0_12 = arith.constant 0 : index
    %18 = vector.load %arg7[%c0_11, %c0_12] : memref<1x128xf32, #tpu.memory_space<vmem>>, vector<1x128xf32>
    %19 = vector.broadcast %18 : vector<1x128xf32> to vector<8x128xf32>
    %20 = arith.addf %17, %19 : vector<8x128xf32>
    %c0_13 = arith.constant 0 : index
    %c0_14 = arith.constant 0 : index
    %21 = vector.load %arg2[%c0_13, %c0_14] : memref<8x1xf32, #tpu.memory_space<vmem>>, vector<8x1xf32>
    %22 = vector.broadcast %21 : vector<8x1xf32> to vector<8x128xf32>
    %23 = arith.mulf %20, %22 : vector<8x128xf32>
    %c0_15 = arith.constant 0 : index
    %c0_16 = arith.constant 0 : index
    %24 = vector.load %arg3[%c0_15, %c0_16] : memref<8x1xf32, #tpu.memory_space<vmem>>, vector<8x1xf32>
    %25 = vector.broadcast %24 : vector<8x1xf32> to vector<8x128xf32>
    %26 = arith.addf %23, %25 : vector<8x128xf32>
    %c0_17 = arith.constant 0 : index
    %c0_18 = arith.constant 0 : index
    %27 = vector.load %arg8[%c0_17, %c0_18] : memref<8x128xf32, #tpu.memory_space<vmem>>, vector<8x128xf32>
    tpu.vector_store %arg8[%c0_17, %c0_18], %26 {strides = array<i32>} : memref<8x128xf32, #tpu.memory_space<vmem>>, vector<8x128xf32>,
    return
  }
  func.func @transform_0(%arg0: i32) -> (i32, i32) {
    %c0_i32 = arith.constant 0 : i32
    %c0_i32_0 = arith.constant 0 : i32
    return %arg0, %c0_i32 : i32, i32
  }
  func.func @transform_1(%arg0: i32) -> (i32, i32) {
    %c0_i32 = arith.constant 0 : i32
    %c0_i32_0 = arith.constant 0 : i32
    return %arg0, %c0_i32 : i32, i32
  }
  func.func @transform_2(%arg0: i32) -> (i32, i32) {
    %c0_i32 = arith.constant 0 : i32
    %c0_i32_0 = arith.constant 0 : i32
    return %arg0, %c0_i32 : i32, i32
  }
  func.func @transform_3(%arg0: i32) -> (i32, i32) {
    %c0_i32 = arith.constant 0 : i32
    %c0_i32_0 = arith.constant 0 : i32
    %c0_i32_1 = arith.constant 0 : i32
    return %c0_i32, %c0_i32_0 : i32, i32
  }
  func.func @transform_4(%arg0: i32) -> (i32, i32) {
    %c0_i32 = arith.constant 0 : i32
    %c0_i32_0 = arith.constant 0 : i32
    %c0_i32_1 = arith.constant 0 : i32
    return %c0_i32, %c0_i32_0 : i32, i32
  }
  func.func @transform_5(%arg0: i32) -> (i32, i32) {
    %c0_i32 = arith.constant 0 : i32
    %c0_i32_0 = arith.constant 0 : i32
    %c0_i32_1 = arith.constant 0 : i32
    return %c0_i32, %c0_i32_0 : i32, i32
  }
  func.func @transform_6(%arg0: i32) -> (i32, i32) {
    %c0_i32 = arith.constant 0 : i32
    %c0_i32_0 = arith.constant 0 : i32
    %c0_i32_1 = arith.constant 0 : i32
    return %c0_i32, %c0_i32_0 : i32, i32
  }
  func.func @transform_7(%arg0: i32) -> (i32, i32) {
    %c0_i32 = arith.constant 0 : i32
    %c0_i32_0 = arith.constant 0 : i32
    return %arg0, %c0_i32 : i32, i32
  }
}

</mosaic_0001>

<llo_original>
// kernel: _lambda_.4
$region0: #{_lambda_.4}
  #allocation0 [shape = 'u32[]', space=smem, size = 0x4, offset = 0x4, fixed_abs, tag = 'smem constant byte address 0x4 - core index']
  #allocation1 [shape = 'u32[72,128]{1,0:T(1,128)}', space=vmem, size = 0x9000, scoped, tag = 'internal scratch']
  %s0 = inlined_call_operand.vmem [shape: f32[2,16,4], index: 0, kind: input, shape index: {}]
  %s1 = inlined_call_operand.vmem [shape: f32[2,16,2], index: 1, kind: input, shape index: {}]
  %s2 = inlined_call_operand.vmem [shape: bf16[16,96], index: 2, kind: input, shape index: {}]
  %s3 = inlined_call_operand.vmem [shape: f32[2,6,96], index: 3, kind: output, shape index: {0}]
  %s4 = inlined_call_operand.vmem [shape: f32[2,1,4], index: 4, kind: output, shape index: {1}]
  %s5 = inlined_call_operand.vmem [shape: f32[2,1,4], index: 5, kind: output, shape index: {2}]
  %6 = xla_tuple %s3, %s4, %s5
  %s7 = sld [smem:[#allocation0]]
  $region61: #{_lambda_.4} parent=0
    _
  %s9 = ssub.s32 1, %s7
  %s10 = scalar_select 0, %s9, %s7
  loop: start=0, step=1, limit=4
  $region2: #{_lambda_.4} parent=0 // loop_pre_header
    _
  $region3: #{_lambda_.4} parent=0 // loop_header
    %s12 = sphi 0, %s16
    %p13 = scmp.ge.s32.totalorder %s12, 4
    %s22 = sphi 0, %s24
    %s25 = sphi 0, %s22
    %s26 = sphi 0, %s25
    %s42 = sphi 0, %s26
    %s48 = sphi 0, %s50
    %s51 = sphi 0, %s48
    %s52 = sphi 0, %s51
    %s68 = sphi 0, %s52
    %s72 = sphi 0, %s72
    %s74 = sphi 0, %s72
    %s75 = sphi 0, %s74
    %s89 = sphi 0, %s75
    %s95 = sphi 0, %s97
    %s98 = sphi 0, %s95
    %s99 = sphi 0, %s98
    %s115 = sphi 0, %s99
    %s121 = sphi 0, %s123
    %s124 = sphi 0, %s121
    %s125 = sphi 0, %s124
    %s141 = sphi 0, %s125
    %s147 = sphi 0, %s149
    %s150 = sphi 0, %s147
    %s151 = sphi 0, %s150
    %s167 = sphi 0, %s151
  $region4: #{_lambda_.4} parent=0 // loop_header_branch
    %15 = sbr.rel (%p13) target = $region8
  $region5: #{_lambda_.4} parent=0 // loop_body
    %s17 = ssub.s32 %s12, 1
    %s18 = ssub.s32 %s12, 2
    %s19 = sadd.s32 %s12, 1
    %s20 = ssub.s32 %s12, %s19
    %p21 = scmp.eq.s32.totalorder %s20, 0
    %s23 = sadd.s32 %s22, 1
    %s24 = scalar_select %p21, %s22, %s23
    %p27 = pneg %p21
    %p28 = scmp.eq.s32.totalorder %s12, 1
    %p29 = por %p27, %p28
    %p30 = scmp.ne.s32.totalorder %s22, %s25
    %p31 = scmp.eq.s32.totalorder %s12, 0
    %p32 = por %p30, %p31
    %p33 = scmp.ne.s32.totalorder %s22, %s25
    %p34 = scmp.eq.s32.totalorder %s17, 1
    %p35 = por %p33, %p34
    %p36 = scmp.ne.s32.totalorder %s25, %s26
    %p37 = scmp.eq.s32.totalorder %s17, 0
    %p38 = por %p36, %p37
    %p39 = scmp.ne.s32.totalorder %s25, %s26
    %p40 = scmp.eq.s32.totalorder %s18, 1
    %p41 = por %p39, %p40
    %p43 = scmp.ne.s32.totalorder %s26, %s42
    %p44 = scmp.eq.s32.totalorder %s18, 0
    %p45 = por %p43, %p44
    %s46 = ssub.s32 %s12, %s19
    %p47 = scmp.eq.s32.totalorder %s46, 0
    %s49 = sadd.s32 %s48, 1
    %s50 = scalar_select %p47, %s48, %s49
    %p53 = pneg %p47
    %p54 = scmp.eq.s32.totalorder %s12, 1
    %p55 = por %p53, %p54
    %p56 = scmp.ne.s32.totalorder %s48, %s51
    %p57 = scmp.eq.s32.totalorder %s12, 0
    %p58 = por %p56, %p57
    %p59 = scmp.ne.s32.totalorder %s48, %s51
    %p60 = scmp.eq.s32.totalorder %s17, 1
    %p61 = por %p59, %p60
    %p62 = scmp.ne.s32.totalorder %s51, %s52
    %p63 = scmp.eq.s32.totalorder %s17, 0
    %p64 = por %p62, %p63
    %p65 = scmp.ne.s32.totalorder %s51, %s52
    %p66 = scmp.eq.s32.totalorder %s18, 1
    %p67 = por %p65, %p66
    %p69 = scmp.ne.s32.totalorder %s52, %s68
    %p70 = scmp.eq.s32.totalorder %s18, 0
    %p71 = por %p69, %p70
    %s73 = sadd.s32 %s72, 1
    %p76 = scmp.eq.s32.totalorder %s12, 1
    %p77 = scmp.ne.s32.totalorder %s72, %s74
    %p78 = scmp.eq.s32.totalorder %s12, 0
    %p79 = por %p77, %p78
    %p80 = scmp.ne.s32.totalorder %s72, %s74
    %p81 = scmp.eq.s32.totalorder %s17, 1
    %p82 = por %p80, %p81
    %p83 = scmp.ne.s32.totalorder %s74, %s75
    %p84 = scmp.eq.s32.totalorder %s17, 0
    %p85 = por %p83, %p84
    %p86 = scmp.ne.s32.totalorder %s74, %s75
    %p87 = scmp.eq.s32.totalorder %s18, 1
    %p88 = por %p86, %p87
    %p90 = scmp.ne.s32.totalorder %s75, %s89
    %p91 = scmp.eq.s32.totalorder %s18, 0
    %p92 = por %p90, %p91
    %s93 = ssub.s32 %s12, %s19
    %p94 = scmp.eq.s32.totalorder %s93, 0
    %s96 = sadd.s32 %s95, 1
    %s97 = scalar_select %p94, %s95, %s96
    %p100 = pneg %p94
    %p101 = scmp.eq.s32.totalorder %s12, 1
    %p102 = por %p100, %p101
    %p103 = scmp.ne.s32.totalorder %s95, %s98
    %p104 = scmp.eq.s32.totalorder %s12, 0
    %p105 = por %p103, %p104
    %p106 = scmp.ne.s32.totalorder %s95, %s98
    %p107 = scmp.eq.s32.totalorder %s17, 1
    %p108 = por %p106, %p107
    %p109 = scmp.ne.s32.totalorder %s98, %s99
    %p110 = scmp.eq.s32.totalorder %s17, 0
    %p111 = por %p109, %p110
    %p112 = scmp.ne.s32.totalorder %s98, %s99
    %p113 = scmp.eq.s32.totalorder %s18, 1
    %p114 = por %p112, %p113
    %p116 = scmp.ne.s32.totalorder %s99, %s115
    %p117 = scmp.eq.s32.totalorder %s18, 0
    %p118 = por %p116, %p117
    %s119 = ssub.s32 %s12, %s19
    %p120 = scmp.eq.s32.totalorder %s119, 0
    %s122 = sadd.s32 %s121, 1
    %s123 = scalar_select %p120, %s121, %s122
    %p126 = pneg %p120
    %p127 = scmp.eq.s32.totalorder %s12, 1
    %p128 = por %p126, %p127
    %p129 = scmp.ne.s32.totalorder %s121, %s124
    %p130 = scmp.eq.s32.totalorder %s12, 0
    %p131 = por %p129, %p130
    %p132 = scmp.ne.s32.totalorder %s121, %s124
    %p133 = scmp.eq.s32.totalorder %s17, 1
    %p134 = por %p132, %p133
    %p135 = scmp.ne.s32.totalorder %s124, %s125
    %p136 = scmp.eq.s32.totalorder %s17, 0
    %p137 = por %p135, %p136
    %p138 = scmp.ne.s32.totalorder %s124, %s125
    %p139 = scmp.eq.s32.totalorder %s18, 1
    %p140 = por %p138, %p139
    %p142 = scmp.ne.s32.totalorder %s125, %s141
    %p143 = scmp.eq.s32.totalorder %s18, 0
    %p144 = por %p142, %p143
    %s145 = ssub.s32 %s12, %s19
    %p146 = scmp.eq.s32.totalorder %s145, 0
    %s148 = sadd.s32 %s147, 1
    %s149 = scalar_select %p146, %s147, %s148
    %p152 = pneg %p146
    %p153 = scmp.eq.s32.totalorder %s12, 1
    %p154 = por %p152, %p153
    %p155 = scmp.ne.s32.totalorder %s147, %s150
    %p156 = scmp.eq.s32.totalorder %s12, 0
    %p157 = por %p155, %p156
    %p158 = scmp.ne.s32.totalorder %s147, %s150
    %p159 = scmp.eq.s32.totalorder %s17, 1
    %p160 = por %p158, %p159
    %p161 = scmp.ne.s32.totalorder %s150, %s151
    %p162 = scmp.eq.s32.totalorder %s17, 0
    %p163 = por %p161, %p162
    %p164 = scmp.ne.s32.totalorder %s150, %s151
    %p165 = scmp.eq.s32.totalorder %s18, 1
    %p166 = por %p164, %p165
    %p168 = scmp.ne.s32.totalorder %s151, %s167
    %p169 = scmp.eq.s32.totalorder %s18, 0
    %p170 = por %p168, %p169
    %p171 = scmp.le.s32.totalorder 1, %s12
    %p172 = scmp.lt.s32.totalorder %s12, 3
    %p173 = pnand %p171, %p172
    %p174 = pneg %p173
    // Predicated region
    $region9: #{_lambda_.4} parent=5 // pred_check
      _
    $region10: #{_lambda_.4} parent=5 // pred_check_branch
      %176 = sbr.rel (%p173) target = $region12
    $region11: #{_lambda_.4} parent=5 // pred_region
      %s177 = ssub.s32 %s12, 1
      // Predicated region
      $region13: #{_lambda_.4} parent=11 // pred_check
        %p178 = pneg %p85
      $region14: #{_lambda_.4} parent=11 // pred_check_branch
        %180 = sbr.rel (%p178) target = $region16
      $region15: #{_lambda_.4} parent=11 // pred_region
        _
      $region16: #{_lambda_.4} parent=11 // pred_fallthru
        _
    $region12: #{_lambda_.4} parent=5 // pred_fallthru
      _
    %p181 = scmp.lt.s32.totalorder %s12, 2
    // Predicated region
    $region17: #{_lambda_.4} parent=5 // pred_check
      %p182 = pneg %p181
    $region18: #{_lambda_.4} parent=5 // pred_check_branch
      %184 = sbr.rel (%p182) target = $region20
    $region19: #{_lambda_.4} parent=5 // pred_region
      // Predicated region
      $region21: #{_lambda_.4} parent=19 // pred_check
        %p185 = pneg %p32
      $region22: #{_lambda_.4} parent=19 // pred_check_branch
        %187 = sbr.rel (%p185) target = $region24
      $region23: #{_lambda_.4} parent=19 // pred_region
        %p188 = scmp.lt.s32.totalorder %s12, 1
        %s189 = scalar_select %p188, %s12, 1
        %s190 = smul.addr %s189, 2
        %s191 = smul.addr %s190, 8
        %s192 = scalar_lea.vmem %s0, %s191
      $region24: #{_lambda_.4} parent=19 // pred_fallthru
        _
      // Predicated region
      $region25: #{_lambda_.4} parent=19 // pred_check
        %p193 = pneg %p58
      $region26: #{_lambda_.4} parent=19 // pred_check_branch
        %195 = sbr.rel (%p193) target = $region28
      $region27: #{_lambda_.4} parent=19 // pred_region
        %p196 = scmp.lt.s32.totalorder %s12, 1
        %s197 = scalar_select %p196, %s12, 1
        %s198 = smul.addr %s197, 2
        %s199 = smul.addr %s198, 8
        %s200 = scalar_lea.vmem %s1, %s199
      $region28: #{_lambda_.4} parent=19 // pred_fallthru
        _
    $region20: #{_lambda_.4} parent=5 // pred_fallthru
      _
    %p201 = scmp.le.s32.totalorder 1, %s12
    %p202 = scmp.lt.s32.totalorder %s12, 3
    %p203 = pnand %p201, %p202
    %p204 = pneg %p203
    // Predicated region
    $region29: #{_lambda_.4} parent=5 // pred_check
      _
    $region30: #{_lambda_.4} parent=5 // pred_check_branch
      %206 = sbr.rel (%p203) target = $region32
    $region31: #{_lambda_.4} parent=5 // pred_region
      %s207 = ssub.s32 %s12, 1
      %p208 = scmp.lt.s32.totalorder %s17, 1
      %s209 = scalar_select %p208, %s17, 1
      %s210 = smul.addr %s209, 2
      %s211 = smul.addr %s210, 8
      %s212 = scalar_lea.vmem %s0, %s211
      %p213 = pneg %p38
      %p214 = pneg %p35
      %p215 = scmp.lt.s32.totalorder %s17, 1
      %s216 = scalar_select %p215, %s17, 1
      %s217 = smul.addr %s216, 2
      %s218 = smul.addr %s217, 8
      %s219 = scalar_lea.vmem %s1, %s218
      %p220 = pneg %p64
      %p221 = pneg %p61
      %p222 = pneg %p85
      %p223 = pneg %p82
      %p224 = pneg %p111
      %p225 = pneg %p108
      %p226 = scmp.lt.s32.totalorder %s17, 1
      %s227 = scalar_select %p226, %s17, 1
      %s228 = smul.addr %s227, 8
      %s229 = scalar_lea.vmem %s3, %s228
      %p230 = pneg %p137
      %p231 = pneg %p134
      %p232 = scmp.lt.s32.totalorder %s17, 1
      %s233 = scalar_select %p232, %s17, 1
      %s234 = scalar_lea.vmem %s4, %s233
      %p235 = pneg %p163
      %p236 = pneg %p160
      %p237 = scmp.lt.s32.totalorder %s17, 1
      %s238 = scalar_select %p237, %s17, 1
      %s239 = scalar_lea.vmem %s5, %s238
      %p240 = scmp.lt.s32.totalorder %s17, 1
      %s241 = scalar_select %p240, %s17, 1
      %s242 = smul.addr %s241, 2
      %s243 = smul.addr %s242, 8
      %s244 = scalar_lea.vmem %s0, %s243
      %p245 = scmp.lt.s32.totalorder %s17, 1
      %s246 = scalar_select %p245, %s17, 1
      %s247 = smul.addr %s246, 2
      %s248 = smul.addr %s247, 8
      %s249 = scalar_lea.vmem %s1, %s248
      %p250 = scmp.lt.s32.totalorder %s17, 1
      %s251 = scalar_select %p250, %s17, 1
      %s252 = smul.addr %s251, 8
      %s253 = scalar_lea.vmem %s3, %s252
      %p254 = scmp.lt.s32.totalorder %s17, 1
      %s255 = scalar_select %p254, %s17, 1
      %s256 = scalar_lea.vmem %s4, %s255
      %p257 = scmp.lt.s32.totalorder %s17, 1
      %s258 = scalar_select %p257, %s17, 1
      %s259 = scalar_lea.vmem %s5, %s258
      %v261 = vld [vmem:[%s244] sm:$0xff]
      %v262 = vld [vmem:[%s244 + $0x8] sm:$0xff]
      %vm263 = vcmask 31744
      %v264 = vsel %vm263, %v261, 0.0
      %v265 = vsel %vm263, %v262, 0.0
      %v266 = vadd.f32 %v264, %v265
      %v267 = vrot.slane %v266, 4
      %v268 = vadd.f32 %v266, %v267
      %v269 = vrot.slane %v268, 2
      %v270 = vadd.f32 %v268, %v269
      %v271 = vrot.slane %v270, 1
      %v272 = vadd.f32 %v270, %v271
      %v273 = vrcp.pop 16.0
      %v274 = vmul.f32 16.0, %v273
      %v275 = vsub.f32 1.0, %v274
      %v276 = vmul.f32 %v273, %v275
      %v277 = vadd.f32 %v273, %v276
      %vm278 = vweird.f32 %v273
      %v279 = vsel %vm278, %v273, %v277
      %v280 = vmul.f32 %v272, %v279
      %v281 = vsub.f32 %v261, %v280
      %v282 = vsub.f32 %v262, %v280
      %v283 = vmul.f32 %v281, %v281
      %v284 = vmul.f32 %v282, %v282
      %v285 = vsel %vm263, %v283, 0.0
      %v286 = vsel %vm263, %v284, 0.0
      %v287 = vadd.f32 %v285, %v286
      %v288 = vrot.slane %v287, 4
      %v289 = vadd.f32 %v287, %v288
      %v290 = vrot.slane %v289, 2
      %v291 = vadd.f32 %v289, %v290
      %v292 = vrot.slane %v291, 1
      %v293 = vadd.f32 %v291, %v292
      %v294 = vmul.f32 %v293, %v279
      %v295 = vadd.f32 %v294, 0.0001
      %v296 = vrsqrt.pop %v295
      %v297 = vmul.f32 %v296, %v295
      %v298 = vmul.f32 %v297, %v296
      %v299 = vmul.f32 0.5, %v298
      %v300 = vsub.f32 1.5, %v299
      %v301 = vmul.f32 %v296, %v300
      %v302 = vmul.f32 %v295, %v301
      %vm303 = vcmp.eq.f32.partialorder %v295, inf
      %v304 = vsel %vm303, %v295, %v302
      %vm305 = vcmp.eq.f32.partialorder %v295, 0.0
      %v306 = vand.u32 %v295, 2147483648
      %v307 = vsel %vm305, %v306, %v304
      %v308 = vrcp.pop %v307
      %v309 = vmul.f32 %v307, %v308
      %v310 = vsub.f32 1.0, %v309
      %v311 = vmul.f32 %v308, %v310
      %v312 = vadd.f32 %v308, %v311
      %vm313 = vweird.f32 %v307
      %vm314 = vweird.f32 %v308
      %vm315 = vmor %vm313, %vm314
      %v316 = vsel %vm315, %v308, %v312
      %v317 = vand.u32 2147483647, %v307
      %vm318 = vcmp.eq.f32.partialorder %v317, 8.507059e+37
      %v319 = vand.u32 %v307, 2147483648
      %v320 = vor.u32 1.1754944e-38, %v319
      %v321 = vsel %vm318, %v320, %v316
      %v322 = vmul.f32 %v281, %v321
      %v323 = vmul.f32 %v282, %v321
      %vm324 = vcmask 24576
      %325 = vst.msk [vmem:[%s256] sm:$0x1] %vm324, %v280
      %326 = vst.msk [vmem:[%s259] sm:$0x1] %vm324, %v307
      %v327 = vld [vmem:[%s2] sm:$0xf]
      %v328 = vld [vmem:[%s2 + $0x4] sm:$0xf]
      %329 = vxpose.xlu0.b32.start [1/16] %v322, 128
      %330 = vxpose.xlu0.b32.cont [2/16] %v323, 128
      %331 = vxpose.xlu0.b32.cont [3/16] 0.0, 128
      %332 = vxpose.xlu0.b32.cont [4/16] 0.0, 128
      %333 = vxpose.xlu0.b32.cont [5/16] 0.0, 128
      %334 = vxpose.xlu0.b32.cont [6/16] 0.0, 128
      %335 = vxpose.xlu0.b32.cont [7/16] 0.0, 128
      %336 = vxpose.xlu0.b32.cont [8/16] 0.0, 128
      %337 = vxpose.xlu0.b32.cont [9/16] 0.0, 128
      %338 = vxpose.xlu0.b32.cont [10/16] 0.0, 128
      %339 = vxpose.xlu0.b32.cont [11/16] 0.0, 128
      %340 = vxpose.xlu0.b32.cont [12/16] 0.0, 128
      %341 = vxpose.xlu0.b32.cont [13/16] 0.0, 128
      %342 = vxpose.xlu0.b32.cont [14/16] 0.0, 128
      %343 = vxpose.xlu0.b32.cont [15/16] 0.0, 128
      %344 = vxpose.xlu0.b32.end [16/16] 0.0, 128
      %v345 = vpop.trf.xlu0
      %v346 = vpop.trf.xlu0
      %v347 = vpop.trf.xlu0
      %v348 = vpop.trf.xlu0
      %v349 = vpop.trf.xlu0
      %v350 = vpop.trf.xlu0
      %v351 = vpop.trf.xlu0
      %v352 = vpop.trf.xlu0
      %v353 = vpop.trf.xlu0
      %v354 = vpop.trf.xlu0
      %v355 = vpop.trf.xlu0
      %v356 = vpop.trf.xlu0
      %v357 = vpop.trf.xlu0
      %v358 = vpop.trf.xlu0
      %v359 = vpop.trf.xlu0
      %v360 = vpop.trf.xlu0
      %v361 = vpack.c.bf16 %v345, %v345
      %v364 = vunpack.c.l.b16 %v327
      %v365 = vunpack.c.l.b16 %v328
      %v366 = vpack.c.b16 %v365, %v364
      %vm368 = vcmask 130048
      %v370 = vsel %vm368, %v361, 0
      %372 = vmatpush.bf16.msra.mxu0 0
      %373 = vmatpush.bf16.msra.mxu0 0
      %374 = vmatpush.bf16.msra.mxu0 0
      %375 = vmatpush.bf16.msra.mxu0 0
      %376 = vmatpush.bf16.msra.mxu0 0
      %377 = vmatpush.bf16.msra.mxu0 0
      %378 = vmatpush.bf16.msra.mxu0 0
      %379 = vmatpush.bf16.msra.mxu0 %v366
      %380 = vmatmul.bf16.gmra.mxu0 %v370
      %v381 = vpop.f32.mrf.mxu0
      %v382 = vadd.f32 0.0, %v381
      %v383 = vpop.f32.mrf.mxu0
      %384 = vdwg.mxu0
      %v385 = vld [vmem:[%s249] sm:$0xff]
      %v386 = vld [vmem:[%s249 + $0x8] sm:$0xff]
      %387 = vxpose.xlu0.b32.start [1/16] %v385, 128
      %388 = vxpose.xlu0.b32.cont [2/16] %v386, 128
      %389 = vxpose.xlu0.b32.cont [3/16] 0.0, 128
      %390 = vxpose.xlu0.b32.cont [4/16] 0.0, 128
      %391 = vxpose.xlu0.b32.cont [5/16] 0.0, 128
      %392 = vxpose.xlu0.b32.cont [6/16] 0.0, 128
      %393 = vxpose.xlu0.b32.cont [7/16] 0.0, 128
      %394 = vxpose.xlu0.b32.cont [8/16] 0.0, 128
      %395 = vxpose.xlu0.b32.cont [9/16] 0.0, 128
      %396 = vxpose.xlu0.b32.cont [10/16] 0.0, 128
      %397 = vxpose.xlu0.b32.cont [11/16] 0.0, 128
      %398 = vxpose.xlu0.b32.cont [12/16] 0.0, 128
      %399 = vxpose.xlu0.b32.cont [13/16] 0.0, 128
      %400 = vxpose.xlu0.b32.cont [14/16] 0.0, 128
      %401 = vxpose.xlu0.b32.cont [15/16] 0.0, 128
      %402 = vxpose.xlu0.b32.end [16/16] 0.0, 128
      %v403 = vpop.trf.xlu0
      %v404 = vpop.trf.xlu0
      %v405 = vpop.trf.xlu0
      %v406 = vpop.trf.xlu0
      %v407 = vpop.trf.xlu0
      %v408 = vpop.trf.xlu0
      %v409 = vpop.trf.xlu0
      %v410 = vpop.trf.xlu0
      %v411 = vpop.trf.xlu0
      %v412 = vpop.trf.xlu0
      %v413 = vpop.trf.xlu0
      %v414 = vpop.trf.xlu0
      %v415 = vpop.trf.xlu0
      %v416 = vpop.trf.xlu0
      %v417 = vpop.trf.xlu0
      %v418 = vpop.trf.xlu0
      %v419 = vpack.c.bf16 %v403, %v403
      %v421 = vsel %vm368, %v419, 0
      %423 = vmatpush.bf16.msra.mxu0 0
      %424 = vmatpush.bf16.msra.mxu0 0
      %425 = vmatpush.bf16.msra.mxu0 0
      %426 = vmatpush.bf16.msra.mxu0 0
      %427 = vmatpush.bf16.msra.mxu0 0
      %428 = vmatpush.bf16.msra.mxu0 0
      %429 = vmatpush.bf16.msra.mxu0 0
      %430 = vmatpush.bf16.msra.mxu0 %v366
      %431 = vmatmul.bf16.gmra.mxu0 %v421
      %v432 = vpop.f32.mrf.mxu0
      %v433 = vadd.f32 0.0, %v432
      %v434 = vpop.f32.mrf.mxu0
      %435 = vdwg.mxu0
      %v437 = vrot.slane %v433, 4
      %vm439 = vcmask 1043456
      %v440 = vsel %vm439, %v382, %v437
      %vm441 = vcmask 783360
      %442 = vst.msk [vmem:[%s253] sm:$0x3f] %vm441, %v440
      %p443 = scmp.lt.s32.totalorder %s17, 1
      %s444 = scalar_select %p443, %s17, 1
      %s445 = smul.addr %s444, 8
      %s446 = scalar_lea.vmem %s3, %s445
      %p447 = scmp.lt.s32.totalorder %s17, 1
      %s448 = scalar_select %p447, %s17, 1
      %s449 = scalar_lea.vmem %s4, %s448
      %p450 = scmp.lt.s32.totalorder %s17, 1
      %s451 = scalar_select %p450, %s17, 1
      %s452 = scalar_lea.vmem %s5, %s451
      // Predicated region
      $region33: #{_lambda_.4} parent=31 // pred_check
        %p453 = pneg %p108
      $region34: #{_lambda_.4} parent=31 // pred_check_branch
        %455 = sbr.rel (%p453) target = $region36
      $region35: #{_lambda_.4} parent=31 // pred_region
        _
      $region36: #{_lambda_.4} parent=31 // pred_fallthru
        _
      // Predicated region
      $region37: #{_lambda_.4} parent=31 // pred_check
        %p456 = pneg %p134
      $region38: #{_lambda_.4} parent=31 // pred_check_branch
        %458 = sbr.rel (%p456) target = $region40
      $region39: #{_lambda_.4} parent=31 // pred_region
        _
      $region40: #{_lambda_.4} parent=31 // pred_fallthru
        _
      // Predicated region
      $region41: #{_lambda_.4} parent=31 // pred_check
        %p459 = pneg %p160
      $region42: #{_lambda_.4} parent=31 // pred_check_branch
        %461 = sbr.rel (%p459) target = $region44
      $region43: #{_lambda_.4} parent=31 // pred_region
        _
      $region44: #{_lambda_.4} parent=31 // pred_fallthru
        _
    $region32: #{_lambda_.4} parent=5 // pred_fallthru
      _
    %p462 = scmp.le.s32.totalorder 2, %s12
    // Predicated region
    $region45: #{_lambda_.4} parent=5 // pred_check
      %p463 = pneg %p462
    $region46: #{_lambda_.4} parent=5 // pred_check_branch
      %465 = sbr.rel (%p463) target = $region48
    $region47: #{_lambda_.4} parent=5 // pred_region
      %s466 = ssub.s32 %s12, 2
      // Predicated region
      $region49: #{_lambda_.4} parent=47 // pred_check
        %p467 = pneg %p114
      $region50: #{_lambda_.4} parent=47 // pred_check_branch
        %469 = sbr.rel (%p467) target = $region52
      $region51: #{_lambda_.4} parent=47 // pred_region
        %p470 = scmp.lt.s32.totalorder %s18, 1
        %s471 = scalar_select %p470, %s18, 1
        %s472 = smul.addr %s471, 8
        %s473 = scalar_lea.vmem %s3, %s472
      $region52: #{_lambda_.4} parent=47 // pred_fallthru
        _
      // Predicated region
      $region53: #{_lambda_.4} parent=47 // pred_check
        %p474 = pneg %p140
      $region54: #{_lambda_.4} parent=47 // pred_check_branch
        %476 = sbr.rel (%p474) target = $region56
      $region55: #{_lambda_.4} parent=47 // pred_region
        %p477 = scmp.lt.s32.totalorder %s18, 1
        %s478 = scalar_select %p477, %s18, 1
        %s479 = scalar_lea.vmem %s4, %s478
      $region56: #{_lambda_.4} parent=47 // pred_fallthru
        _
      // Predicated region
      $region57: #{_lambda_.4} parent=47 // pred_check
        %p480 = pneg %p166
      $region58: #{_lambda_.4} parent=47 // pred_check_branch
        %482 = sbr.rel (%p480) target = $region60
      $region59: #{_lambda_.4} parent=47 // pred_region
        %p483 = scmp.lt.s32.totalorder %s18, 1
        %s484 = scalar_select %p483, %s18, 1
        %s485 = scalar_lea.vmem %s5, %s484
      $region60: #{_lambda_.4} parent=47 // pred_fallthru
        _
    $region48: #{_lambda_.4} parent=5 // pred_fallthru
      _
  $region6: #{_lambda_.4} parent=0 // loop_footer
    %s16 = sadd.s32 1, %s12
  $region7: #{_lambda_.4} parent=0 // loop_footer_branch
    %11 = sbr.rel target = $region3
  $region8: #{_lambda_.4} parent=0 // loop_exit
    _

// kernel: _lambda_.7
$region0: #{_lambda_.7}
  #allocation0 [shape = 'u32[]', space=smem, size = 0x4, offset = 0x4, fixed_abs, tag = 'smem constant byte address 0x4 - core index']
  #allocation1 [shape = 'u32[72,128]{1,0:T(1,128)}', space=vmem, size = 0x9000, scoped, tag = 'internal scratch']
  %s0 = inlined_call_operand.vmem [shape: f32[12,96], index: 0, kind: input, shape index: {}]
  %s1 = inlined_call_operand.vmem [shape: f32[12,1], index: 1, kind: input, shape index: {}]
  %s2 = inlined_call_operand.vmem [shape: f32[12,1], index: 2, kind: input, shape index: {}]
  %s3 = inlined_call_operand.vmem [shape: bf16[96,32], index: 3, kind: input, shape index: {}]
  %s4 = inlined_call_operand.vmem [shape: f32[1,32], index: 4, kind: input, shape index: {}]
  %s5 = inlined_call_operand.vmem [shape: bf16[32,128], index: 5, kind: input, shape index: {}]
  %s6 = inlined_call_operand.vmem [shape: f32[1,128], index: 6, kind: input, shape index: {}]
  %s7 = inlined_call_operand.vmem [shape: f32[12,128], index: 7, kind: output, shape index: {}]
  %s8 = sld [smem:[#allocation0]]
  $region61: #{_lambda_.7} parent=0
    _
  %s10 = ssub.s32 1, %s8
  %s11 = scalar_select 0, %s10, %s8
  loop: start=0, step=1, limit=4
  $region2: #{_lambda_.7} parent=0 // loop_pre_header
    _
  $region3: #{_lambda_.7} parent=0 // loop_header
    %s13 = sphi 0, %s17
    %p14 = scmp.ge.s32.totalorder %s13, 4
    %s23 = sphi 0, %s25
    %s26 = sphi 0, %s23
    %s27 = sphi 0, %s26
    %s43 = sphi 0, %s27
    %s49 = sphi 0, %s51
    %s52 = sphi 0, %s49
    %s53 = sphi 0, %s52
    %s69 = sphi 0, %s53
    %s75 = sphi 0, %s77
    %s78 = sphi 0, %s75
    %s79 = sphi 0, %s78
    %s95 = sphi 0, %s79
    %s99 = sphi 0, %s99
    %s101 = sphi 0, %s99
    %s102 = sphi 0, %s101
    %s116 = sphi 0, %s102
    %s120 = sphi 0, %s120
    %s122 = sphi 0, %s120
    %s123 = sphi 0, %s122
    %s137 = sphi 0, %s123
    %s141 = sphi 0, %s141
    %s143 = sphi 0, %s141
    %s144 = sphi 0, %s143
    %s158 = sphi 0, %s144
    %s162 = sphi 0, %s162
    %s164 = sphi 0, %s162
    %s165 = sphi 0, %s164
    %s179 = sphi 0, %s165
    %s185 = sphi 0, %s187
    %s188 = sphi 0, %s185
    %s189 = sphi 0, %s188
    %s205 = sphi 0, %s189
  $region4: #{_lambda_.7} parent=0 // loop_header_branch
    %16 = sbr.rel (%p14) target = $region8
  $region5: #{_lambda_.7} parent=0 // loop_body
    %s18 = ssub.s32 %s13, 1
    %s19 = ssub.s32 %s13, 2
    %s20 = sadd.s32 %s13, 1
    %s21 = ssub.s32 %s13, %s20
    %p22 = scmp.eq.s32.totalorder %s21, 0
    %s24 = sadd.s32 %s23, 1
    %s25 = scalar_select %p22, %s23, %s24
    %p28 = pneg %p22
    %p29 = scmp.eq.s32.totalorder %s13, 1
    %p30 = por %p28, %p29
    %p31 = scmp.ne.s32.totalorder %s23, %s26
    %p32 = scmp.eq.s32.totalorder %s13, 0
    %p33 = por %p31, %p32
    %p34 = scmp.ne.s32.totalorder %s23, %s26
    %p35 = scmp.eq.s32.totalorder %s18, 1
    %p36 = por %p34, %p35
    %p37 = scmp.ne.s32.totalorder %s26, %s27
    %p38 = scmp.eq.s32.totalorder %s18, 0
    %p39 = por %p37, %p38
    %p40 = scmp.ne.s32.totalorder %s26, %s27
    %p41 = scmp.eq.s32.totalorder %s19, 1
    %p42 = por %p40, %p41
    %p44 = scmp.ne.s32.totalorder %s27, %s43
    %p45 = scmp.eq.s32.totalorder %s19, 0
    %p46 = por %p44, %p45
    %s47 = ssub.s32 %s13, %s20
    %p48 = scmp.eq.s32.totalorder %s47, 0
    %s50 = sadd.s32 %s49, 1
    %s51 = scalar_select %p48, %s49, %s50
    %p54 = pneg %p48
    %p55 = scmp.eq.s32.totalorder %s13, 1
    %p56 = por %p54, %p55
    %p57 = scmp.ne.s32.totalorder %s49, %s52
    %p58 = scmp.eq.s32.totalorder %s13, 0
    %p59 = por %p57, %p58
    %p60 = scmp.ne.s32.totalorder %s49, %s52
    %p61 = scmp.eq.s32.totalorder %s18, 1
    %p62 = por %p60, %p61
    %p63 = scmp.ne.s32.totalorder %s52, %s53
    %p64 = scmp.eq.s32.totalorder %s18, 0
    %p65 = por %p63, %p64
    %p66 = scmp.ne.s32.totalorder %s52, %s53
    %p67 = scmp.eq.s32.totalorder %s19, 1
    %p68 = por %p66, %p67
    %p70 = scmp.ne.s32.totalorder %s53, %s69
    %p71 = scmp.eq.s32.totalorder %s19, 0
    %p72 = por %p70, %p71
    %s73 = ssub.s32 %s13, %s20
    %p74 = scmp.eq.s32.totalorder %s73, 0
    %s76 = sadd.s32 %s75, 1
    %s77 = scalar_select %p74, %s75, %s76
    %p80 = pneg %p74
    %p81 = scmp.eq.s32.totalorder %s13, 1
    %p82 = por %p80, %p81
    %p83 = scmp.ne.s32.totalorder %s75, %s78
    %p84 = scmp.eq.s32.totalorder %s13, 0
    %p85 = por %p83, %p84
    %p86 = scmp.ne.s32.totalorder %s75, %s78
    %p87 = scmp.eq.s32.totalorder %s18, 1
    %p88 = por %p86, %p87
    %p89 = scmp.ne.s32.totalorder %s78, %s79
    %p90 = scmp.eq.s32.totalorder %s18, 0
    %p91 = por %p89, %p90
    %p92 = scmp.ne.s32.totalorder %s78, %s79
    %p93 = scmp.eq.s32.totalorder %s19, 1
    %p94 = por %p92, %p93
    %p96 = scmp.ne.s32.totalorder %s79, %s95
    %p97 = scmp.eq.s32.totalorder %s19, 0
    %p98 = por %p96, %p97
    %s100 = sadd.s32 %s99, 1
    %p103 = scmp.eq.s32.totalorder %s13, 1
    %p104 = scmp.ne.s32.totalorder %s99, %s101
    %p105 = scmp.eq.s32.totalorder %s13, 0
    %p106 = por %p104, %p105
    %p107 = scmp.ne.s32.totalorder %s99, %s101
    %p108 = scmp.eq.s32.totalorder %s18, 1
    %p109 = por %p107, %p108
    %p110 = scmp.ne.s32.totalorder %s101, %s102
    %p111 = scmp.eq.s32.totalorder %s18, 0
    %p112 = por %p110, %p111
    %p113 = scmp.ne.s32.totalorder %s101, %s102
    %p114 = scmp.eq.s32.totalorder %s19, 1
    %p115 = por %p113, %p114
    %p117 = scmp.ne.s32.totalorder %s102, %s116
    %p118 = scmp.eq.s32.totalorder %s19, 0
    %p119 = por %p117, %p118
    %s121 = sadd.s32 %s120, 1
    %p124 = scmp.eq.s32.totalorder %s13, 1
    %p125 = scmp.ne.s32.totalorder %s120, %s122
    %p126 = scmp.eq.s32.totalorder %s13, 0
    %p127 = por %p125, %p126
    %p128 = scmp.ne.s32.totalorder %s120, %s122
    %p129 = scmp.eq.s32.totalorder %s18, 1
    %p130 = por %p128, %p129
    %p131 = scmp.ne.s32.totalorder %s122, %s123
    %p132 = scmp.eq.s32.totalorder %s18, 0
    %p133 = por %p131, %p132
    %p134 = scmp.ne.s32.totalorder %s122, %s123
    %p135 = scmp.eq.s32.totalorder %s19, 1
    %p136 = por %p134, %p135
    %p138 = scmp.ne.s32.totalorder %s123, %s137
    %p139 = scmp.eq.s32.totalorder %s19, 0
    %p140 = por %p138, %p139
    %s142 = sadd.s32 %s141, 1
    %p145 = scmp.eq.s32.totalorder %s13, 1
    %p146 = scmp.ne.s32.totalorder %s141, %s143
    %p147 = scmp.eq.s32.totalorder %s13, 0
    %p148 = por %p146, %p147
    %p149 = scmp.ne.s32.totalorder %s141, %s143
    %p150 = scmp.eq.s32.totalorder %s18, 1
    %p151 = por %p149, %p150
    %p152 = scmp.ne.s32.totalorder %s143, %s144
    %p153 = scmp.eq.s32.totalorder %s18, 0
    %p154 = por %p152, %p153
    %p155 = scmp.ne.s32.totalorder %s143, %s144
    %p156 = scmp.eq.s32.totalorder %s19, 1
    %p157 = por %p155, %p156
    %p159 = scmp.ne.s32.totalorder %s144, %s158
    %p160 = scmp.eq.s32.totalorder %s19, 0
    %p161 = por %p159, %p160
    %s163 = sadd.s32 %s162, 1
    %p166 = scmp.eq.s32.totalorder %s13, 1
    %p167 = scmp.ne.s32.totalorder %s162, %s164
    %p168 = scmp.eq.s32.totalorder %s13, 0
    %p169 = por %p167, %p168
    %p170 = scmp.ne.s32.totalorder %s162, %s164
    %p171 = scmp.eq.s32.totalorder %s18, 1
    %p172 = por %p170, %p171
    %p173 = scmp.ne.s32.totalorder %s164, %s165
    %p174 = scmp.eq.s32.totalorder %s18, 0
    %p175 = por %p173, %p174
    %p176 = scmp.ne.s32.totalorder %s164, %s165
    %p177 = scmp.eq.s32.totalorder %s19, 1
    %p178 = por %p176, %p177
    %p180 = scmp.ne.s32.totalorder %s165, %s179
    %p181 = scmp.eq.s32.totalorder %s19, 0
    %p182 = por %p180, %p181
    %s183 = ssub.s32 %s13, %s20
    %p184 = scmp.eq.s32.totalorder %s183, 0
    %s186 = sadd.s32 %s185, 1
    %s187 = scalar_select %p184, %s185, %s186
    %p190 = pneg %p184
    %p191 = scmp.eq.s32.totalorder %s13, 1
    %p192 = por %p190, %p191
    %p193 = scmp.ne.s32.totalorder %s185, %s188
    %p194 = scmp.eq.s32.totalorder %s13, 0
    %p195 = por %p193, %p194
    %p196 = scmp.ne.s32.totalorder %s185, %s188
    %p197 = scmp.eq.s32.totalorder %s18, 1
    %p198 = por %p196, %p197
    %p199 = scmp.ne.s32.totalorder %s188, %s189
    %p200 = scmp.eq.s32.totalorder %s18, 0
    %p201 = por %p199, %p200
    %p202 = scmp.ne.s32.totalorder %s188, %s189
    %p203 = scmp.eq.s32.totalorder %s19, 1
    %p204 = por %p202, %p203
    %p206 = scmp.ne.s32.totalorder %s189, %s205
    %p207 = scmp.eq.s32.totalorder %s19, 0
    %p208 = por %p206, %p207
    %p209 = scmp.le.s32.totalorder 1, %s13
    %p210 = scmp.lt.s32.totalorder %s13, 3
    %p211 = pnand %p209, %p210
    %p212 = pneg %p211
    // Predicated region
    $region9: #{_lambda_.7} parent=5 // pred_check
      _
    $region10: #{_lambda_.7} parent=5 // pred_check_branch
      %214 = sbr.rel (%p211) target = $region12
    $region11: #{_lambda_.7} parent=5 // pred_region
      %s215 = ssub.s32 %s13, 1
      // Predicated region
      $region13: #{_lambda_.7} parent=11 // pred_check
        %p216 = pneg %p112
      $region14: #{_lambda_.7} parent=11 // pred_check_branch
        %218 = sbr.rel (%p216) target = $region16
      $region15: #{_lambda_.7} parent=11 // pred_region
        _
      $region16: #{_lambda_.7} parent=11 // pred_fallthru
        _
      // Predicated region
      $region17: #{_lambda_.7} parent=11 // pred_check
        %p219 = pneg %p133
      $region18: #{_lambda_.7} parent=11 // pred_check_branch
        %221 = sbr.rel (%p219) target = $region20
      $region19: #{_lambda_.7} parent=11 // pred_region
        _
      $region20: #{_lambda_.7} parent=11 // pred_fallthru
        _
      // Predicated region
      $region21: #{_lambda_.7} parent=11 // pred_check
        %p222 = pneg %p154
      $region22: #{_lambda_.7} parent=11 // pred_check_branch
        %224 = sbr.rel (%p222) target = $region24
      $region23: #{_lambda_.7} parent=11 // pred_region
        _
      $region24: #{_lambda_.7} parent=11 // pred_fallthru
        _
      // Predicated region
      $region25: #{_lambda_.7} parent=11 // pred_check
        %p225 = pneg %p175
      $region26: #{_lambda_.7} parent=11 // pred_check_branch
        %227 = sbr.rel (%p225) target = $region28
      $region27: #{_lambda_.7} parent=11 // pred_region
        _
      $region28: #{_lambda_.7} parent=11 // pred_fallthru
        _
    $region12: #{_lambda_.7} parent=5 // pred_fallthru
      _
    %p228 = scmp.lt.s32.totalorder %s13, 2
    // Predicated region
    $region29: #{_lambda_.7} parent=5 // pred_check
      %p229 = pneg %p228
    $region30: #{_lambda_.7} parent=5 // pred_check_branch
      %231 = sbr.rel (%p229) target = $region32
    $region31: #{_lambda_.7} parent=5 // pred_region
      // Predicated region
      $region33: #{_lambda_.7} parent=31 // pred_check
        %p232 = pneg %p33
      $region34: #{_lambda_.7} parent=31 // pred_check_branch
        %234 = sbr.rel (%p232) target = $region36
      $region35: #{_lambda_.7} parent=31 // pred_region
        %p235 = scmp.lt.s32.totalorder %s13, 1
        %s236 = scalar_select %p235, %s13, 1
        %s237 = smul.addr %s236, 8
        %s238 = scalar_lea.vmem %s0, %s237
      $region36: #{_lambda_.7} parent=31 // pred_fallthru
        _
      // Predicated region
      $region37: #{_lambda_.7} parent=31 // pred_check
        %p239 = pneg %p59
      $region38: #{_lambda_.7} parent=31 // pred_check_branch
        %241 = sbr.rel (%p239) target = $region40
      $region39: #{_lambda_.7} parent=31 // pred_region
        %p242 = scmp.lt.s32.totalorder %s13, 1
        %s243 = scalar_select %p242, %s13, 1
        %s244 = smul.addr %s243, 8
        %s245 = scalar_lea.vmem %s1, %s244
      $region40: #{_lambda_.7} parent=31 // pred_fallthru
        _
      // Predicated region
      $region41: #{_lambda_.7} parent=31 // pred_check
        %p246 = pneg %p85
      $region42: #{_lambda_.7} parent=31 // pred_check_branch
        %248 = sbr.rel (%p246) target = $region44
      $region43: #{_lambda_.7} parent=31 // pred_region
        %p249 = scmp.lt.s32.totalorder %s13, 1
        %s250 = scalar_select %p249, %s13, 1
        %s251 = smul.addr %s250, 8
        %s252 = scalar_lea.vmem %s2, %s251
      $region44: #{_lambda_.7} parent=31 // pred_fallthru
        _
    $region32: #{_lambda_.7} parent=5 // pred_fallthru
      _
    %p253 = scmp.le.s32.totalorder 1, %s13
    %p254 = scmp.lt.s32.totalorder %s13, 3
    %p255 = pnand %p253, %p254
    %p256 = pneg %p255
    // Predicated region
    $region45: #{_lambda_.7} parent=5 // pred_check
      _
    $region46: #{_lambda_.7} parent=5 // pred_check_branch
      %258 = sbr.rel (%p255) target = $region48
    $region47: #{_lambda_.7} parent=5 // pred_region
      %s259 = ssub.s32 %s13, 1
      %p260 = scmp.lt.s32.totalorder %s18, 1
      %s261 = scalar_select %p260, %s18, 1
      %s262 = smul.addr %s261, 8
      %s263 = scalar_lea.vmem %s0, %s262
      %p264 = pneg %p39
      %p265 = pneg %p36
      %p266 = scmp.lt.s32.totalorder %s18, 1
      %s267 = scalar_select %p266, %s18, 1
      %s268 = smul.addr %s267, 8
      %s269 = scalar_lea.vmem %s1, %s268
      %p270 = pneg %p65
      %p271 = pneg %p62
      %p272 = scmp.lt.s32.totalorder %s18, 1
      %s273 = scalar_select %p272, %s18, 1
      %s274 = smul.addr %s273, 8
      %s275 = scalar_lea.vmem %s2, %s274
      %p276 = pneg %p91
      %p277 = pneg %p88
      %p278 = pneg %p112
      %p279 = pneg %p109
      %p280 = pneg %p133
      %p281 = pneg %p130
      %p282 = pneg %p154
      %p283 = pneg %p151
      %p284 = pneg %p175
      %p285 = pneg %p172
      %p286 = pneg %p201
      %p287 = pneg %p198
      %p288 = scmp.lt.s32.totalorder %s18, 1
      %s289 = scalar_select %p288, %s18, 1
      %s290 = smul.addr %s289, 8
      %s291 = scalar_lea.vmem %s7, %s290
      %p292 = scmp.lt.s32.totalorder %s18, 1
      %s293 = scalar_select %p292, %s18, 1
      %s294 = smul.addr %s293, 8
      %s295 = scalar_lea.vmem %s0, %s294
      %p296 = scmp.lt.s32.totalorder %s18, 1
      %s297 = scalar_select %p296, %s18, 1
      %s298 = smul.addr %s297, 8
      %s299 = scalar_lea.vmem %s1, %s298
      %p300 = scmp.lt.s32.totalorder %s18, 1
      %s301 = scalar_select %p300, %s18, 1
      %s302 = smul.addr %s301, 8
      %s303 = scalar_lea.vmem %s2, %s302
      %p304 = scmp.lt.s32.totalorder %s18, 1
      %s305 = scalar_select %p304, %s18, 1
      %s306 = smul.addr %s305, 8
      %s307 = scalar_lea.vmem %s7, %s306
      %v309 = vld [vmem:[%s295] sm:$0xff]
      %v310 = vpack.c.bf16 %v309, %v309
      %v311 = vld [vmem:[%s3] sm:$0xf]
      %v312 = vld [vmem:[%s3 + $0x4] sm:$0xf]
      %v313 = vld [vmem:[%s3 + $0x8] sm:$0xf]
      %v314 = vld [vmem:[%s3 + $0xc] sm:$0xf]
      %v315 = vld [vmem:[%s3 + $0x10] sm:$0xf]
      %v316 = vld [vmem:[%s3 + $0x14] sm:$0xf]
      %v317 = vld [vmem:[%s3 + $0x18] sm:$0xf]
      %v318 = vld [vmem:[%s3 + $0x1c] sm:$0xf]
      %v319 = vld [vmem:[%s3 + $0x20] sm:$0xf]
      %v320 = vld [vmem:[%s3 + $0x24] sm:$0xf]
      %v321 = vld [vmem:[%s3 + $0x28] sm:$0xf]
      %v322 = vld [vmem:[%s3 + $0x2c] sm:$0xf]
      %v323 = vld [vmem:[%s4] sm:$0x1]
      %v325 = vperm.slane %v323, 0
      %v339 = vunpack.c.l.b16 %v311
      %v340 = vunpack.c.l.b16 %v312
      %v341 = vunpack.c.l.b16 %v313
      %v342 = vunpack.c.l.b16 %v314
      %v343 = vunpack.c.l.b16 %v315
      %v344 = vunpack.c.l.b16 %v316
      %v345 = vunpack.c.l.b16 %v317
      %v346 = vunpack.c.l.b16 %v318
      %v347 = vunpack.c.l.b16 %v319
      %v348 = vunpack.c.l.b16 %v320
      %v349 = vunpack.c.l.b16 %v321
      %v350 = vunpack.c.l.b16 %v322
      %v351 = vpack.c.b16 %v340, %v339
      %v352 = vpack.c.b16 %v342, %v341
      %v353 = vpack.c.b16 %v344, %v343
      %v354 = vpack.c.b16 %v346, %v345
      %v355 = vpack.c.b16 %v348, %v347
      %v356 = vpack.c.b16 %v350, %v349
      %vm363 = vcmask 785408
      %v365 = vsel %vm363, %v310, 0
      %367 = vmatpush.bf16.msra.mxu0 0
      %368 = vmatpush.bf16.msra.mxu0 0
      %369 = vmatpush.bf16.msra.mxu0 %v356
      %370 = vmatpush.bf16.msra.mxu0 %v355
      %371 = vmatpush.bf16.msra.mxu0 %v354
      %372 = vmatpush.bf16.msra.mxu0 %v353
      %373 = vmatpush.bf16.msra.mxu0 %v352
      %374 = vmatpush.bf16.msra.mxu0 %v351
      %375 = vmatmul.bf16.gmra.mxu0 %v365
      %v376 = vpop.f32.mrf.mxu0
      %v377 = vadd.f32 %v325, %v376
      %v378 = vpop.f32.mrf.mxu0
      %379 = vdwg.mxu0
      %v380 = vmul.f32 %v377, 0.5
      %v381 = vmul.f32 %v377, 0.70710677
      %v382 = vmul.f32 %v381, %v381
      %v383 = vmin.f32 16.0, %v382
      %v384 = vmul.f32 %v383, 2.1237322e-06
      %v385 = vadd.f32 %v384, 0.00028619796
      %v386 = vmul.f32 %v383, %v385
      %v387 = vadd.f32 %v386, 0.0036580483
      %v388 = vmul.f32 %v383, %v387
      %v389 = vadd.f32 %v388, 0.05243302
      %v390 = vmul.f32 %v383, %v389
      %v391 = vadd.f32 %v390, 0.18741608
      %v392 = vmul.f32 %v383, %v391
      %v393 = vadd.f32 %v392, 1.1283791
      %v394 = vmul.f32 %v381, %v393
      %v395 = vmul.f32 %v383, 3.8918573e-05
      %v396 = vadd.f32 %v395, 0.001143296
      %v397 = vmul.f32 %v383, %v396
      %v398 = vadd.f32 %v397, 0.014752088
      %v399 = vmul.f32 %v383, %v398
      %v400 = vadd.f32 %v399, 0.112945676
      %v401 = vmul.f32 %v383, %v400
      %v402 = vadd.f32 %v401, 0.4994258
      %v403 = vmul.f32 %v383, %v402
      %v404 = vadd.f32 %v403, 1.0
      %v405 = vrcp.pop %v404
      %v406 = vmul.f32 %v404, %v405
      %v407 = vsub.f32 1.0, %v406
      %v408 = vmul.f32 %v405, %v407
      %v409 = vadd.f32 %v405, %v408
      %vm410 = vweird.f32 %v404
      %vm411 = vweird.f32 %v405
      %vm412 = vmor %vm410, %vm411
      %v413 = vsel %vm412, %v405, %v409
      %v414 = vand.u32 2147483647, %v404
      %vm415 = vcmp.eq.f32.partialorder %v414, 8.507059e+37
      %v416 = vand.u32 %v404, 2147483648
      %v417 = vor.u32 1.1754944e-38, %v416
      %v418 = vsel %vm415, %v417, %v413
      %v419 = vmul.f32 %v394, %v418
      %v420 = vmin.f32 %v419, 1.0
      %v421 = vmax.f32 %v420, -1.0
      %v422 = vadd.f32 %v421, 1.0
      %v423 = vmul.f32 %v380, %v422
      %v424 = vpack.c.bf16 %v423, %v423
      %v425 = vld [vmem:[%s5] sm:$0xf]
      %v426 = vld [vmem:[%s5 + $0x4] sm:$0xf]
      %v427 = vld [vmem:[%s5 + $0x8] sm:$0xf]
      %v428 = vld [vmem:[%s5 + $0xc] sm:$0xf]
      %v429 = vld [vmem:[%s6] sm:$0x1]
      %v431 = vperm.slane %v429, 0
      %v437 = vunpack.c.l.b16 %v425
      %v438 = vunpack.c.l.b16 %v426
      %v439 = vunpack.c.l.b16 %v427
      %v440 = vunpack.c.l.b16 %v428
      %v441 = vpack.c.b16 %v438, %v437
      %v442 = vpack.c.b16 %v440, %v439
      %vm445 = vcmask 261120
      %v447 = vsel %vm445, %v424, 0
      %449 = vmatpush.bf16.msra.mxu0 0
      %450 = vmatpush.bf16.msra.mxu0 0
      %451 = vmatpush.bf16.msra.mxu0 0
      %452 = vmatpush.bf16.msra.mxu0 0
      %453 = vmatpush.bf16.msra.mxu0 0
      %454 = vmatpush.bf16.msra.mxu0 0
      %455 = vmatpush.bf16.msra.mxu0 %v442
      %456 = vmatpush.bf16.msra.mxu0 %v441
      %457 = vmatmul.bf16.gmra.mxu0 %v447
      %v458 = vpop.f32.mrf.mxu0
      %v459 = vadd.f32 %v431, %v458
      %v460 = vpop.f32.mrf.mxu0
      %461 = vdwg.mxu0
      %v462 = vld [vmem:[%s299] sm:$0xff]
      %464 = vset.pattern.permute.xlu0 0
      %465 = vperm.xlu0 %464, %v462
      %v466 = vpop.permute.xlu0 %465
      %v468 = vmul.f32 %v459, %v466
      %v469 = vld [vmem:[%s303] sm:$0xff]
      %471 = vset.pattern.permute.xlu0 0
      %472 = vperm.xlu0 %471, %v469
      %v473 = vpop.permute.xlu0 %472
      %v475 = vadd.f32 %v468, %v473
      %476 = vst [vmem:[%s307] sm:$0xff] %v475
      %p477 = scmp.lt.s32.totalorder %s18, 1
      %s478 = scalar_select %p477, %s18, 1
      %s479 = smul.addr %s478, 8
      %s480 = scalar_lea.vmem %s7, %s479
      // Predicated region
      $region49: #{_lambda_.7} parent=47 // pred_check
        %p481 = pneg %p198
      $region50: #{_lambda_.7} parent=47 // pred_check_branch
        %483 = sbr.rel (%p481) target = $region52
      $region51: #{_lambda_.7} parent=47 // pred_region
        _
      $region52: #{_lambda_.7} parent=47 // pred_fallthru
        _
    $region48: #{_lambda_.7} parent=5 // pred_fallthru
      _
    %p484 = scmp.le.s32.totalorder 2, %s13
    // Predicated region
    $region53: #{_lambda_.7} parent=5 // pred_check
      %p485 = pneg %p484
    $region54: #{_lambda_.7} parent=5 // pred_check_branch
      %487 = sbr.rel (%p485) target = $region56
    $region55: #{_lambda_.7} parent=5 // pred_region
      %s488 = ssub.s32 %s13, 2
      // Predicated region
      $region57: #{_lambda_.7} parent=55 // pred_check
        %p489 = pneg %p204
      $region58: #{_lambda_.7} parent=55 // pred_check_branch
        %491 = sbr.rel (%p489) target = $region60
      $region59: #{_lambda_.7} parent=55 // pred_region
        %p492 = scmp.lt.s32.totalorder %s19, 1
        %s493 = scalar_select %p492, %s19, 1
        %s494 = smul.addr %s493, 8
        %s495 = scalar_lea.vmem %s7, %s494
      $region60: #{_lambda_.7} parent=55 // pred_fallthru
        _
    $region56: #{_lambda_.7} parent=5 // pred_fallthru
      _
  $region6: #{_lambda_.7} parent=0 // loop_footer
    %s17 = sadd.s32 1, %s13
  $region7: #{_lambda_.7} parent=0 // loop_footer_branch
    %12 = sbr.rel target = $region3
  $region8: #{_lambda_.7} parent=0 // loop_exit
    _

// kernel: _lambda_.5
$region0: #{_lambda_.5}
  #allocation0 [shape = 'u32[]', space=smem, size = 0x4, offset = 0x4, fixed_abs, tag = 'smem constant byte address 0x4 - core index']
  #allocation1 [shape = 'u32[72,128]{1,0:T(1,128)}', space=vmem, size = 0x9000, scoped, tag = 'internal scratch']
  #allocation2 [shape = 'f32[18,32]{1,0:T(8,128)}', space=vmem, size = 0x3000, scoped, tag = 'scratch operand']
  %s0 = inlined_call_operand.vmem [shape: f32[2,18,32], index: 0, kind: input, shape index: {}]
  %s1 = inlined_call_operand.vmem [shape: bf16[32,96], index: 1, kind: input, shape index: {}]
  %s2 = inlined_call_operand.vmem [shape: f32[1,96], index: 2, kind: input, shape index: {}]
  %s3 = inlined_call_operand.vmem [shape: bf16[32,32], index: 3, kind: input, shape index: {}]
  %s4 = inlined_call_operand.vmem [shape: f32[1,32], index: 4, kind: input, shape index: {}]
  %s5 = inlined_call_operand.vmem [shape: f32[1,32], index: 5, kind: input, shape index: {}]
  %s6 = inlined_call_operand.vmem [shape: f32[1,32], index: 6, kind: input, shape index: {}]
  %s7 = inlined_call_operand.vmem [shape: bf16[32,64], index: 7, kind: input, shape index: {}]
  %s8 = inlined_call_operand.vmem [shape: f32[1,64], index: 8, kind: input, shape index: {}]
  %s9 = inlined_call_operand.vmem [shape: bf16[64,32], index: 9, kind: input, shape index: {}]
  %s10 = inlined_call_operand.vmem [shape: f32[1,32], index: 10, kind: input, shape index: {}]
  %s11 = inlined_call_operand.vmem [shape: f32[1,32], index: 11, kind: input, shape index: {}]
  %s12 = inlined_call_operand.vmem [shape: f32[1,32], index: 12, kind: input, shape index: {}]
  %s13 = inlined_call_operand.vmem [shape: f32[2,18,32], index: 13, kind: output, shape index: {}]
  %s14 = sld [smem:[#allocation0]]
  $region85: #{_lambda_.5} parent=0
    _
  %s16 = ssub.s32 1, %s14
  %s17 = scalar_select 0, %s16, %s14
  loop: start=0, step=1, limit=4
  $region2: #{_lambda_.5} parent=0 // loop_pre_header
    _
  $region3: #{_lambda_.5} parent=0 // loop_header
    %s19 = sphi 0, %s23
    %p20 = scmp.ge.s32.totalorder %s19, 4
    %s29 = sphi 0, %s31
    %s32 = sphi 0, %s29
    %s33 = sphi 0, %s32
    %s49 = sphi 0, %s33
    %s53 = sphi 0, %s53
    %s55 = sphi 0, %s53
    %s56 = sphi 0, %s55
    %s70 = sphi 0, %s56
    %s74 = sphi 0, %s74
    %s76 = sphi 0, %s74
    %s77 = sphi 0, %s76
    %s91 = sphi 0, %s77
    %s95 = sphi 0, %s95
    %s97 = sphi 0, %s95
    %s98 = sphi 0, %s97
    %s112 = sphi 0, %s98
    %s116 = sphi 0, %s116
    %s118 = sphi 0, %s116
    %s119 = sphi 0, %s118
    %s133 = sphi 0, %s119
    %s137 = sphi 0, %s137
    %s139 = sphi 0, %s137
    %s140 = sphi 0, %s139
    %s154 = sphi 0, %s140
    %s158 = sphi 0, %s158
    %s160 = sphi 0, %s158
    %s161 = sphi 0, %s160
    %s175 = sphi 0, %s161
    %s179 = sphi 0, %s179
    %s181 = sphi 0, %s179
    %s182 = sphi 0, %s181
    %s196 = sphi 0, %s182
    %s200 = sphi 0, %s200
    %s202 = sphi 0, %s200
    %s203 = sphi 0, %s202
    %s217 = sphi 0, %s203
    %s221 = sphi 0, %s221
    %s223 = sphi 0, %s221
    %s224 = sphi 0, %s223
    %s238 = sphi 0, %s224
    %s242 = sphi 0, %s242
    %s244 = sphi 0, %s242
    %s245 = sphi 0, %s244
    %s259 = sphi 0, %s245
    %s263 = sphi 0, %s263
    %s265 = sphi 0, %s263
    %s266 = sphi 0, %s265
    %s280 = sphi 0, %s266
    %s284 = sphi 0, %s284
    %s286 = sphi 0, %s284
    %s287 = sphi 0, %s286
    %s301 = sphi 0, %s287
    %s307 = sphi 0, %s309
    %s310 = sphi 0, %s307
    %s311 = sphi 0, %s310
    %s327 = sphi 0, %s311
  $region4: #{_lambda_.5} parent=0 // loop_header_branch
    %22 = sbr.rel (%p20) target = $region8
  $region5: #{_lambda_.5} parent=0 // loop_body
    %s24 = ssub.s32 %s19, 1
    %s25 = ssub.s32 %s19, 2
    %s26 = sadd.s32 %s19, 1
    %s27 = ssub.s32 %s19, %s26
    %p28 = scmp.eq.s32.totalorder %s27, 0
    %s30 = sadd.s32 %s29, 1
    %s31 = scalar_select %p28, %s29, %s30
    %p34 = pneg %p28
    %p35 = scmp.eq.s32.totalorder %s19, 1
    %p36 = por %p34, %p35
    %p37 = scmp.ne.s32.totalorder %s29, %s32
    %p38 = scmp.eq.s32.totalorder %s19, 0
    %p39 = por %p37, %p38
    %p40 = scmp.ne.s32.totalorder %s29, %s32
    %p41 = scmp.eq.s32.totalorder %s24, 1
    %p42 = por %p40, %p41
    %p43 = scmp.ne.s32.totalorder %s32, %s33
    %p44 = scmp.eq.s32.totalorder %s24, 0
    %p45 = por %p43, %p44
    %p46 = scmp.ne.s32.totalorder %s32, %s33
    %p47 = scmp.eq.s32.totalorder %s25, 1
    %p48 = por %p46, %p47
    %p50 = scmp.ne.s32.totalorder %s33, %s49
    %p51 = scmp.eq.s32.totalorder %s25, 0
    %p52 = por %p50, %p51
    %s54 = sadd.s32 %s53, 1
    %p57 = scmp.eq.s32.totalorder %s19, 1
    %p58 = scmp.ne.s32.totalorder %s53, %s55
    %p59 = scmp.eq.s32.totalorder %s19, 0
    %p60 = por %p58, %p59
    %p61 = scmp.ne.s32.totalorder %s53, %s55
    %p62 = scmp.eq.s32.totalorder %s24, 1
    %p63 = por %p61, %p62
    %p64 = scmp.ne.s32.totalorder %s55, %s56
    %p65 = scmp.eq.s32.totalorder %s24, 0
    %p66 = por %p64, %p65
    %p67 = scmp.ne.s32.totalorder %s55, %s56
    %p68 = scmp.eq.s32.totalorder %s25, 1
    %p69 = por %p67, %p68
    %p71 = scmp.ne.s32.totalorder %s56, %s70
    %p72 = scmp.eq.s32.totalorder %s25, 0
    %p73 = por %p71, %p72
    %s75 = sadd.s32 %s74, 1
    %p78 = scmp.eq.s32.totalorder %s19, 1
    %p79 = scmp.ne.s32.totalorder %s74, %s76
    %p80 = scmp.eq.s32.totalorder %s19, 0
    %p81 = por %p79, %p80
    %p82 = scmp.ne.s32.totalorder %s74, %s76
    %p83 = scmp.eq.s32.totalorder %s24, 1
    %p84 = por %p82, %p83
    %p85 = scmp.ne.s32.totalorder %s76, %s77
    %p86 = scmp.eq.s32.totalorder %s24, 0
    %p87 = por %p85, %p86
    %p88 = scmp.ne.s32.totalorder %s76, %s77
    %p89 = scmp.eq.s32.totalorder %s25, 1
    %p90 = por %p88, %p89
    %p92 = scmp.ne.s32.totalorder %s77, %s91
    %p93 = scmp.eq.s32.totalorder %s25, 0
    %p94 = por %p92, %p93
    %s96 = sadd.s32 %s95, 1
    %p99 = scmp.eq.s32.totalorder %s19, 1
    %p100 = scmp.ne.s32.totalorder %s95, %s97
    %p101 = scmp.eq.s32.totalorder %s19, 0
    %p102 = por %p100, %p101
    %p103 = scmp.ne.s32.totalorder %s95, %s97
    %p104 = scmp.eq.s32.totalorder %s24, 1
    %p105 = por %p103, %p104
    %p106 = scmp.ne.s32.totalorder %s97, %s98
    %p107 = scmp.eq.s32.totalorder %s24, 0
    %p108 = por %p106, %p107
    %p109 = scmp.ne.s32.totalorder %s97, %s98
    %p110 = scmp.eq.s32.totalorder %s25, 1
    %p111 = por %p109, %p110
    %p113 = scmp.ne.s32.totalorder %s98, %s112
    %p114 = scmp.eq.s32.totalorder %s25, 0
    %p115 = por %p113, %p114
    %s117 = sadd.s32 %s116, 1
    %p120 = scmp.eq.s32.totalorder %s19, 1
    %p121 = scmp.ne.s32.totalorder %s116, %s118
    %p122 = scmp.eq.s32.totalorder %s19, 0
    %p123 = por %p121, %p122
    %p124 = scmp.ne.s32.totalorder %s116, %s118
    %p125 = scmp.eq.s32.totalorder %s24, 1
    %p126 = por %p124, %p125
    %p127 = scmp.ne.s32.totalorder %s118, %s119
    %p128 = scmp.eq.s32.totalorder %s24, 0
    %p129 = por %p127, %p128
    %p130 = scmp.ne.s32.totalorder %s118, %s119
    %p131 = scmp.eq.s32.totalorder %s25, 1
    %p132 = por %p130, %p131
    %p134 = scmp.ne.s32.totalorder %s119, %s133
    %p135 = scmp.eq.s32.totalorder %s25, 0
    %p136 = por %p134, %p135
    %s138 = sadd.s32 %s137, 1
    %p141 = scmp.eq.s32.totalorder %s19, 1
    %p142 = scmp.ne.s32.totalorder %s137, %s139
    %p143 = scmp.eq.s32.totalorder %s19, 0
    %p144 = por %p142, %p143
    %p145 = scmp.ne.s32.totalorder %s137, %s139
    %p146 = scmp.eq.s32.totalorder %s24, 1
    %p147 = por %p145, %p146
    %p148 = scmp.ne.s32.totalorder %s139, %s140
    %p149 = scmp.eq.s32.totalorder %s24, 0
    %p150 = por %p148, %p149
    %p151 = scmp.ne.s32.totalorder %s139, %s140
    %p152 = scmp.eq.s32.totalorder %s25, 1
    %p153 = por %p151, %p152
    %p155 = scmp.ne.s32.totalorder %s140, %s154
    %p156 = scmp.eq.s32.totalorder %s25, 0
    %p157 = por %p155, %p156
    %s159 = sadd.s32 %s158, 1
    %p162 = scmp.eq.s32.totalorder %s19, 1
    %p163 = scmp.ne.s32.totalorder %s158, %s160
    %p164 = scmp.eq.s32.totalorder %s19, 0
    %p165 = por %p163, %p164
    %p166 = scmp.ne.s32.totalorder %s158, %s160
    %p167 = scmp.eq.s32.totalorder %s24, 1
    %p168 = por %p166, %p167
    %p169 = scmp.ne.s32.totalorder %s160, %s161
    %p170 = scmp.eq.s32.totalorder %s24, 0
    %p171 = por %p169, %p170
    %p172 = scmp.ne.s32.totalorder %s160, %s161
    %p173 = scmp.eq.s32.totalorder %s25, 1
    %p174 = por %p172, %p173
    %p176 = scmp.ne.s32.totalorder %s161, %s175
    %p177 = scmp.eq.s32.totalorder %s25, 0
    %p178 = por %p176, %p177
    %s180 = sadd.s32 %s179, 1
    %p183 = scmp.eq.s32.totalorder %s19, 1
    %p184 = scmp.ne.s32.totalorder %s179, %s181
    %p185 = scmp.eq.s32.totalorder %s19, 0
    %p186 = por %p184, %p185
    %p187 = scmp.ne.s32.totalorder %s179, %s181
    %p188 = scmp.eq.s32.totalorder %s24, 1
    %p189 = por %p187, %p188
    %p190 = scmp.ne.s32.totalorder %s181, %s182
    %p191 = scmp.eq.s32.totalorder %s24, 0
    %p192 = por %p190, %p191
    %p193 = scmp.ne.s32.totalorder %s181, %s182
    %p194 = scmp.eq.s32.totalorder %s25, 1
    %p195 = por %p193, %p194
    %p197 = scmp.ne.s32.totalorder %s182, %s196
    %p198 = scmp.eq.s32.totalorder %s25, 0
    %p199 = por %p197, %p198
    %s201 = sadd.s32 %s200, 1
    %p204 = scmp.eq.s32.totalorder %s19, 1
    %p205 = scmp.ne.s32.totalorder %s200, %s202
    %p206 = scmp.eq.s32.totalorder %s19, 0
    %p207 = por %p205, %p206
    %p208 = scmp.ne.s32.totalorder %s200, %s202
    %p209 = scmp.eq.s32.totalorder %s24, 1
    %p210 = por %p208, %p209
    %p211 = scmp.ne.s32.totalorder %s202, %s203
    %p212 = scmp.eq.s32.totalorder %s24, 0
    %p213 = por %p211, %p212
    %p214 = scmp.ne.s32.totalorder %s202, %s203
    %p215 = scmp.eq.s32.totalorder %s25, 1
    %p216 = por %p214, %p215
    %p218 = scmp.ne.s32.totalorder %s203, %s217
    %p219 = scmp.eq.s32.totalorder %s25, 0
    %p220 = por %p218, %p219
    %s222 = sadd.s32 %s221, 1
    %p225 = scmp.eq.s32.totalorder %s19, 1
    %p226 = scmp.ne.s32.totalorder %s221, %s223
    %p227 = scmp.eq.s32.totalorder %s19, 0
    %p228 = por %p226, %p227
    %p229 = scmp.ne.s32.totalorder %s221, %s223
    %p230 = scmp.eq.s32.totalorder %s24, 1
    %p231 = por %p229, %p230
    %p232 = scmp.ne.s32.totalorder %s223, %s224
    %p233 = scmp.eq.s32.totalorder %s24, 0
    %p234 = por %p232, %p233
    %p235 = scmp.ne.s32.totalorder %s223, %s224
    %p236 = scmp.eq.s32.totalorder %s25, 1
    %p237 = por %p235, %p236
    %p239 = scmp.ne.s32.totalorder %s224, %s238
    %p240 = scmp.eq.s32.totalorder %s25, 0
    %p241 = por %p239, %p240
    %s243 = sadd.s32 %s242, 1
    %p246 = scmp.eq.s32.totalorder %s19, 1
    %p247 = scmp.ne.s32.totalorder %s242, %s244
    %p248 = scmp.eq.s32.totalorder %s19, 0
    %p249 = por %p247, %p248
    %p250 = scmp.ne.s32.totalorder %s242, %s244
    %p251 = scmp.eq.s32.totalorder %s24, 1
    %p252 = por %p250, %p251
    %p253 = scmp.ne.s32.totalorder %s244, %s245
    %p254 = scmp.eq.s32.totalorder %s24, 0
    %p255 = por %p253, %p254
    %p256 = scmp.ne.s32.totalorder %s244, %s245
    %p257 = scmp.eq.s32.totalorder %s25, 1
    %p258 = por %p256, %p257
    %p260 = scmp.ne.s32.totalorder %s245, %s259
    %p261 = scmp.eq.s32.totalorder %s25, 0
    %p262 = por %p260, %p261
    %s264 = sadd.s32 %s263, 1
    %p267 = scmp.eq.s32.totalorder %s19, 1
    %p268 = scmp.ne.s32.totalorder %s263, %s265
    %p269 = scmp.eq.s32.totalorder %s19, 0
    %p270 = por %p268, %p269
    %p271 = scmp.ne.s32.totalorder %s263, %s265
    %p272 = scmp.eq.s32.totalorder %s24, 1
    %p273 = por %p271, %p272
    %p274 = scmp.ne.s32.totalorder %s265, %s266
    %p275 = scmp.eq.s32.totalorder %s24, 0
    %p276 = por %p274, %p275
    %p277 = scmp.ne.s32.totalorder %s265, %s266
    %p278 = scmp.eq.s32.totalorder %s25, 1
    %p279 = por %p277, %p278
    %p281 = scmp.ne.s32.totalorder %s266, %s280
    %p282 = scmp.eq.s32.totalorder %s25, 0
    %p283 = por %p281, %p282
    %s285 = sadd.s32 %s284, 1
    %p288 = scmp.eq.s32.totalorder %s19, 1
    %p289 = scmp.ne.s32.totalorder %s284, %s286
    %p290 = scmp.eq.s32.totalorder %s19, 0
    %p291 = por %p289, %p290
    %p292 = scmp.ne.s32.totalorder %s284, %s286
    %p293 = scmp.eq.s32.totalorder %s24, 1
    %p294 = por %p292, %p293
    %p295 = scmp.ne.s32.totalorder %s286, %s287
    %p296 = scmp.eq.s32.totalorder %s24, 0
    %p297 = por %p295, %p296
    %p298 = scmp.ne.s32.totalorder %s286, %s287
    %p299 = scmp.eq.s32.totalorder %s25, 1
    %p300 = por %p298, %p299
    %p302 = scmp.ne.s32.totalorder %s287, %s301
    %p303 = scmp.eq.s32.totalorder %s25, 0
    %p304 = por %p302, %p303
    %s305 = ssub.s32 %s19, %s26
    %p306 = scmp.eq.s32.totalorder %s305, 0
    %s308 = sadd.s32 %s307, 1
    %s309 = scalar_select %p306, %s307, %s308
    %p312 = pneg %p306
    %p313 = scmp.eq.s32.totalorder %s19, 1
    %p314 = por %p312, %p313
    %p315 = scmp.ne.s32.totalorder %s307, %s310
    %p316 = scmp.eq.s32.totalorder %s19, 0
    %p317 = por %p315, %p316
    %p318 = scmp.ne.s32.totalorder %s307, %s310
    %p319 = scmp.eq.s32.totalorder %s24, 1
    %p320 = por %p318, %p319
    %p321 = scmp.ne.s32.totalorder %s310, %s311
    %p322 = scmp.eq.s32.totalorder %s24, 0
    %p323 = por %p321, %p322
    %p324 = scmp.ne.s32.totalorder %s310, %s311
    %p325 = scmp.eq.s32.totalorder %s25, 1
    %p326 = por %p324, %p325
    %p328 = scmp.ne.s32.totalorder %s311, %s327
    %p329 = scmp.eq.s32.totalorder %s25, 0
    %p330 = por %p328, %p329
    %p331 = scmp.le.s32.totalorder 1, %s19
    %p332 = scmp.lt.s32.totalorder %s19, 3
    %p333 = pnand %p331, %p332
    %p334 = pneg %p333
    // Predicated region
    $region9: #{_lambda_.5} parent=5 // pred_check
      _
    $region10: #{_lambda_.5} parent=5 // pred_check_branch
      %336 = sbr.rel (%p333) target = $region12
    $region11: #{_lambda_.5} parent=5 // pred_region
      %s337 = ssub.s32 %s19, 1
      // Predicated region
      $region13: #{_lambda_.5} parent=11 // pred_check
        %p338 = pneg %p66
      $region14: #{_lambda_.5} parent=11 // pred_check_branch
        %340 = sbr.rel (%p338) target = $region16
      $region15: #{_lambda_.5} parent=11 // pred_region
        _
      $region16: #{_lambda_.5} parent=11 // pred_fallthru
        _
      // Predicated region
      $region17: #{_lambda_.5} parent=11 // pred_check
        %p341 = pneg %p87
      $region18: #{_lambda_.5} parent=11 // pred_check_branch
        %343 = sbr.rel (%p341) target = $region20
      $region19: #{_lambda_.5} parent=11 // pred_region
        _
      $region20: #{_lambda_.5} parent=11 // pred_fallthru
        _
      // Predicated region
      $region21: #{_lambda_.5} parent=11 // pred_check
        %p344 = pneg %p108
      $region22: #{_lambda_.5} parent=11 // pred_check_branch
        %346 = sbr.rel (%p344) target = $region24
      $region23: #{_lambda_.5} parent=11 // pred_region
        _
      $region24: #{_lambda_.5} parent=11 // pred_fallthru
        _
      // Predicated region
      $region25: #{_lambda_.5} parent=11 // pred_check
        %p347 = pneg %p129
      $region26: #{_lambda_.5} parent=11 // pred_check_branch
        %349 = sbr.rel (%p347) target = $region28
      $region27: #{_lambda_.5} parent=11 // pred_region
        _
      $region28: #{_lambda_.5} parent=11 // pred_fallthru
        _
      // Predicated region
      $region29: #{_lambda_.5} parent=11 // pred_check
        %p350 = pneg %p150
      $region30: #{_lambda_.5} parent=11 // pred_check_branch
        %352 = sbr.rel (%p350) target = $region32
      $region31: #{_lambda_.5} parent=11 // pred_region
        _
      $region32: #{_lambda_.5} parent=11 // pred_fallthru
        _
      // Predicated region
      $region33: #{_lambda_.5} parent=11 // pred_check
        %p353 = pneg %p171
      $region34: #{_lambda_.5} parent=11 // pred_check_branch
        %355 = sbr.rel (%p353) target = $region36
      $region35: #{_lambda_.5} parent=11 // pred_region
        _
      $region36: #{_lambda_.5} parent=11 // pred_fallthru
        _
      // Predicated region
      $region37: #{_lambda_.5} parent=11 // pred_check
        %p356 = pneg %p192
      $region38: #{_lambda_.5} parent=11 // pred_check_branch
        %358 = sbr.rel (%p356) target = $region40
      $region39: #{_lambda_.5} parent=11 // pred_region
        _
      $region40: #{_lambda_.5} parent=11 // pred_fallthru
        _
      // Predicated region
      $region41: #{_lambda_.5} parent=11 // pred_check
        %p359 = pneg %p213
      $region42: #{_lambda_.5} parent=11 // pred_check_branch
        %361 = sbr.rel (%p359) target = $region44
      $region43: #{_lambda_.5} parent=11 // pred_region
        _
      $region44: #{_lambda_.5} parent=11 // pred_fallthru
        _
      // Predicated region
      $region45: #{_lambda_.5} parent=11 // pred_check
        %p362 = pneg %p234
      $region46: #{_lambda_.5} parent=11 // pred_check_branch
        %364 = sbr.rel (%p362) target = $region48
      $region47: #{_lambda_.5} parent=11 // pred_region
        _
      $region48: #{_lambda_.5} parent=11 // pred_fallthru
        _
      // Predicated region
      $region49: #{_lambda_.5} parent=11 // pred_check
        %p365 = pneg %p255
      $region50: #{_lambda_.5} parent=11 // pred_check_branch
        %367 = sbr.rel (%p365) target = $region52
      $region51: #{_lambda_.5} parent=11 // pred_region
        _
      $region52: #{_lambda_.5} parent=11 // pred_fallthru
        _
      // Predicated region
      $region53: #{_lambda_.5} parent=11 // pred_check
        %p368 = pneg %p276
      $region54: #{_lambda_.5} parent=11 // pred_check_branch
        %370 = sbr.rel (%p368) target = $region56
      $region55: #{_lambda_.5} parent=11 // pred_region
        _
      $region56: #{_lambda_.5} parent=11 // pred_fallthru
        _
      // Predicated region
      $region57: #{_lambda_.5} parent=11 // pred_check
        %p371 = pneg %p297
      $region58: #{_lambda_.5} parent=11 // pred_check_branch
        %373 = sbr.rel (%p371) target = $region60
      $region59: #{_lambda_.5} parent=11 // pred_region
        _
      $region60: #{_lambda_.5} parent=11 // pred_fallthru
        _
    $region12: #{_lambda_.5} parent=5 // pred_fallthru
      _
    %p374 = scmp.lt.s32.totalorder %s19, 2
    // Predicated region
    $region61: #{_lambda_.5} parent=5 // pred_check
      %p375 = pneg %p374
    $region62: #{_lambda_.5} parent=5 // pred_check_branch
      %377 = sbr.rel (%p375) target = $region64
    $region63: #{_lambda_.5} parent=5 // pred_region
      // Predicated region
      $region65: #{_lambda_.5} parent=63 // pred_check
        %p378 = pneg %p39
      $region66: #{_lambda_.5} parent=63 // pred_check_branch
        %380 = sbr.rel (%p378) target = $region68
      $region67: #{_lambda_.5} parent=63 // pred_region
        %p381 = scmp.lt.s32.totalorder %s19, 1
        %s382 = scalar_select %p381, %s19, 1
        %s383 = smul.addr %s382, 3
        %s384 = smul.addr %s383, 8
        %s385 = scalar_lea.vmem %s0, %s384
      $region68: #{_lambda_.5} parent=63 // pred_fallthru
        _
    $region64: #{_lambda_.5} parent=5 // pred_fallthru
      _
    %p386 = scmp.le.s32.totalorder 1, %s19
    %p387 = scmp.lt.s32.totalorder %s19, 3
    %p388 = pnand %p386, %p387
    %p389 = pneg %p388
    // Predicated region
    $region69: #{_lambda_.5} parent=5 // pred_check
      _
    $region70: #{_lambda_.5} parent=5 // pred_check_branch
      %391 = sbr.rel (%p388) target = $region72
    $region71: #{_lambda_.5} parent=5 // pred_region
      %s392 = ssub.s32 %s19, 1
      %p393 = scmp.lt.s32.totalorder %s24, 1
      %s394 = scalar_select %p393, %s24, 1
      %s395 = smul.addr %s394, 3
      %s396 = smul.addr %s395, 8
      %s397 = scalar_lea.vmem %s0, %s396
      %p398 = pneg %p45
      %p399 = pneg %p42
      %p400 = pneg %p66
      %p401 = pneg %p63
      %p402 = pneg %p87
      %p403 = pneg %p84
      %p404 = pneg %p108
      %p405 = pneg %p105
      %p406 = pneg %p129
      %p407 = pneg %p126
      %p408 = pneg %p150
      %p409 = pneg %p147
      %p410 = pneg %p171
      %p411 = pneg %p168
      %p412 = pneg %p192
      %p413 = pneg %p189
      %p414 = pneg %p213
      %p415 = pneg %p210
      %p416 = pneg %p234
      %p417 = pneg %p231
      %p418 = pneg %p255
      %p419 = pneg %p252
      %p420 = pneg %p276
      %p421 = pneg %p273
      %p422 = pneg %p297
      %p423 = pneg %p294
      %p424 = pneg %p323
      %p425 = pneg %p320
      %p426 = scmp.lt.s32.totalorder %s24, 1
      %s427 = scalar_select %p426, %s24, 1
      %s428 = smul.addr %s427, 3
      %s429 = smul.addr %s428, 8
      %s430 = scalar_lea.vmem %s13, %s429
      %p431 = scmp.lt.s32.totalorder %s24, 1
      %s432 = scalar_select %p431, %s24, 1
      %s433 = smul.addr %s432, 3
      %s434 = smul.addr %s433, 8
      %s435 = scalar_lea.vmem %s0, %s434
      %p436 = scmp.lt.s32.totalorder %s24, 1
      %s437 = scalar_select %p436, %s24, 1
      %s438 = smul.addr %s437, 3
      %s439 = smul.addr %s438, 8
      %s440 = scalar_lea.vmem %s13, %s439
      %v442 = vld [vmem:[%s435] sm:$0xff]
      %v443 = vld [vmem:[%s435 + $0x8] sm:$0xff]
      %v444 = vld [vmem:[%s435 + $0x10] sm:$0x3]
      %v445 = vpack.c.bf16 %v443, %v442
      %v446 = vpack.c.bf16 %v444, %v444
      %v447 = vld [vmem:[%s1] sm:$0xf]
      %v448 = vld [vmem:[%s1 + $0x4] sm:$0xf]
      %v449 = vld [vmem:[%s1 + $0x8] sm:$0xf]
      %v450 = vld [vmem:[%s1 + $0xc] sm:$0xf]
      %v451 = vld [vmem:[%s2] sm:$0x1]
      %v453 = vperm.slane %v451, 0
      %v459 = vunpack.c.l.b16 %v447
      %v460 = vunpack.c.l.b16 %v448
      %v461 = vunpack.c.l.b16 %v449
      %v462 = vunpack.c.l.b16 %v450
      %v463 = vpack.c.b16 %v460, %v459
      %v464 = vpack.c.b16 %v462, %v461
      %vm467 = vcmask 261120
      %v469 = vsel %vm467, %v445, 0
      %v472 = vsel %vm467, %v446, 0
      %474 = vmatpush.bf16.msra.mxu0 0
      %475 = vmatpush.bf16.msra.mxu0 0
      %476 = vmatpush.bf16.msra.mxu0 0
      %477 = vmatpush.bf16.msra.mxu0 0
      %478 = vmatpush.bf16.msra.mxu0 0
      %479 = vmatpush.bf16.msra.mxu0 0
      %480 = vmatpush.bf16.msra.mxu0 %v464
      %481 = vmatpush.bf16.msra.mxu0 %v463
      %482 = vmatmul.bf16.gmra.mxu0 %v469
      %v483 = vpop.f32.mrf.mxu0
      %v484 = vadd.f32 %v453, %v483
      %v485 = vpop.f32.mrf.mxu0
      %v486 = vadd.f32 %v453, %v485
      %487 = vmatmul.bf16.gmra.mxu0 %v472
      %v488 = vpop.f32.mrf.mxu0
      %v489 = vadd.f32 %v453, %v488
      %v490 = vpop.f32.mrf.mxu0
      %491 = vdwg.mxu0
      %495 = vrot.lane.b32.xlu0 %v484, 96
      %v496 = vpop.permute.xlu0 %495
      %497 = vrot.lane.b32.xlu0 %v486, 96
      %v498 = vpop.permute.xlu0 %497
      %499 = vrot.lane.b32.xlu0 %v489, 96
      %v500 = vpop.permute.xlu0 %499
      %504 = vxpose.xlu0.b32.start [1/16] %v496, 128
      %505 = vxpose.xlu0.b32.cont [2/16] %v498, 128
      %506 = vxpose.xlu0.b32.cont [3/16] %v500, 128
      %507 = vxpose.xlu0.b32.cont [4/16] 0.0, 128
      %508 = vxpose.xlu0.b32.cont [5/16] 0.0, 128
      %509 = vxpose.xlu0.b32.cont [6/16] 0.0, 128
      %510 = vxpose.xlu0.b32.cont [7/16] 0.0, 128
      %511 = vxpose.xlu0.b32.cont [8/16] 0.0, 128
      %512 = vxpose.xlu0.b32.cont [9/16] 0.0, 128
      %513 = vxpose.xlu0.b32.cont [10/16] 0.0, 128
      %514 = vxpose.xlu0.b32.cont [11/16] 0.0, 128
      %515 = vxpose.xlu0.b32.cont [12/16] 0.0, 128
      %516 = vxpose.xlu0.b32.cont [13/16] 0.0, 128
      %517 = vxpose.xlu0.b32.cont [14/16] 0.0, 128
      %518 = vxpose.xlu0.b32.cont [15/16] 0.0, 128
      %519 = vxpose.xlu0.b32.end [16/16] 0.0, 128
      %v520 = vpop.trf.xlu0
      %v521 = vpop.trf.xlu0
      %v522 = vpop.trf.xlu0
      %v523 = vpop.trf.xlu0
      %v524 = vpop.trf.xlu0
      %v525 = vpop.trf.xlu0
      %v526 = vpop.trf.xlu0
      %v527 = vpop.trf.xlu0
      %v528 = vpop.trf.xlu0
      %v529 = vpop.trf.xlu0
      %v530 = vpop.trf.xlu0
      %v531 = vpop.trf.xlu0
      %v532 = vpop.trf.xlu0
      %v533 = vpop.trf.xlu0
      %v534 = vpop.trf.xlu0
      %v535 = vpop.trf.xlu0
      %v536 = vpack.c.bf16 %v486, %v484
      %v537 = vpack.c.bf16 %v489, %v489
      %v538 = vpack.c.bf16 %v520, %v520
      %vm539 = vcmask 64512
      %v541 = vsel %vm539, %v536, 0
      %v544 = vsel %vm539, %v537, 0
      %vm546 = vcmask 1043456
      %v548 = vsel %vm546, %v538, 0
      %550 = vmatpush.bf16.msra.mxu0 0
      %551 = vmatpush.bf16.msra.mxu0 0
      %552 = vmatpush.bf16.msra.mxu0 0
      %553 = vmatpush.bf16.msra.mxu0 0
      %554 = vmatpush.bf16.msra.mxu0 0
      %555 = vmatpush.bf16.msra.mxu0 0
      %556 = vmatpush.bf16.msra.mxu0 0
      %557 = vmatpush.bf16.msra.mxu0 %v548
      %558 = vmatmul.bf16.gmra.mxu0 %v541
      %v559 = vpop.f32.mrf.mxu0
      %v560 = vadd.f32 0.0, %v559
      %v561 = vpop.f32.mrf.mxu0
      %v562 = vadd.f32 0.0, %v561
      %563 = vmatmul.bf16.gmra.mxu0 %v544
      %v564 = vpop.f32.mrf.mxu0
      %v565 = vadd.f32 0.0, %v564
      %v566 = vpop.f32.mrf.mxu0
      %567 = vdwg.mxu0
      %v568 = vmul.f32 %v560, 0.35355338
      %v569 = vmul.f32 %v562, 0.35355338
      %v570 = vmul.f32 %v565, 0.35355338
      %vm571 = vcmask 146432
      %v572 = vsel %vm571, %v568, -inf
      %573 = vmax.xlane.f32.xlu0 %v572
      %v574 = vpop.xlane.xlu0 %573
      %v575 = vsel %vm571, %v569, -inf
      %576 = vmax.xlane.f32.xlu0 %v575
      %v577 = vpop.xlane.xlu0 %576
      %vm578 = vcmask 140288
      %v579 = vsel %vm578, %v570, -inf
      %580 = vmax.xlane.f32.xlu0 %v579
      %v581 = vpop.xlane.xlu0 %580
      %v582 = vsub.f32 %v568, %v574
      %v583 = vsub.f32 %v569, %v577
      %v584 = vsub.f32 %v570, %v581
      %v585 = vmul.f32 %v582, 1.442695
      %v586 = vpow.pop %v585
      %v587 = vmul.f32 %v583, 1.442695
      %v588 = vpow.pop %v587
      %v589 = vmul.f32 %v584, 1.442695
      %v590 = vpow.pop %v589
      %v591 = vsel %vm571, %v586, 0.0
      %592 = vadd.xlane.f32.xlu0 %v591
      %v593 = vpop.xlane.xlu0 %592
      %v594 = vsel %vm571, %v588, 0.0
      %595 = vadd.xlane.f32.xlu0 %v594
      %v596 = vpop.xlane.xlu0 %595
      %v597 = vsel %vm578, %v590, 0.0
      %598 = vadd.xlane.f32.xlu0 %v597
      %v599 = vpop.xlane.xlu0 %598
      %v600 = vrcp.pop %v593
      %v601 = vmul.f32 %v593, %v600
      %v602 = vsub.f32 1.0, %v601
      %v603 = vmul.f32 %v600, %v602
      %v604 = vadd.f32 %v600, %v603
      %vm605 = vweird.f32 %v593
      %vm606 = vweird.f32 %v600
      %vm607 = vmor %vm605, %vm606
      %v608 = vsel %vm607, %v600, %v604
      %v609 = vand.u32 2147483647, %v593
      %vm610 = vcmp.eq.f32.partialorder %v609, 8.507059e+37
      %v611 = vand.u32 %v593, 2147483648
      %v612 = vor.u32 1.1754944e-38, %v611
      %v613 = vsel %vm610, %v612, %v608
      %v614 = vmul.f32 %v586, %v613
      %v615 = vrcp.pop %v596
      %v616 = vmul.f32 %v596, %v615
      %v617 = vsub.f32 1.0, %v616
      %v618 = vmul.f32 %v615, %v617
      %v619 = vadd.f32 %v615, %v618
      %vm620 = vweird.f32 %v596
      %vm621 = vweird.f32 %v615
      %vm622 = vmor %vm620, %vm621
      %v623 = vsel %vm622, %v615, %v619
      %v624 = vand.u32 2147483647, %v596
      %vm625 = vcmp.eq.f32.partialorder %v624, 8.507059e+37
      %v626 = vand.u32 %v596, 2147483648
      %v627 = vor.u32 1.1754944e-38, %v626
      %v628 = vsel %vm625, %v627, %v623
      %v629 = vmul.f32 %v588, %v628
      %v630 = vrcp.pop %v599
      %v631 = vmul.f32 %v599, %v630
      %v632 = vsub.f32 1.0, %v631
      %v633 = vmul.f32 %v630, %v632
      %v634 = vadd.f32 %v630, %v633
      %vm635 = vweird.f32 %v599
      %vm636 = vweird.f32 %v630
      %vm637 = vmor %vm635, %vm636
      %v638 = vsel %vm637, %v630, %v634
      %v639 = vand.u32 2147483647, %v599
      %vm640 = vcmp.eq.f32.partialorder %v639, 8.507059e+37
      %v641 = vand.u32 %v599, 2147483648
      %v642 = vor.u32 1.1754944e-38, %v641
      %v643 = vsel %vm640, %v642, %v638
      %v644 = vmul.f32 %v590, %v643
      %v645 = vpack.c.bf16 %v629, %v614
      %v646 = vpack.c.bf16 %v644, %v644
      %649 = vrot.lane.b32.xlu0 %v536, 64
      %v650 = vpop.permute.xlu0 %649
      %651 = vrot.lane.b32.xlu0 %v537, 64
      %v652 = vpop.permute.xlu0 %651
      %v655 = vsel %vm571, %v645, 0
      %v658 = vsel %vm571, %v646, 0
      %vm660 = vcmask 1040384
      %v662 = vsel %vm660, %v652, 0
      %664 = vmatpush.bf16.msra.mxu0 0
      %665 = vmatpush.bf16.msra.mxu0 0
      %666 = vmatpush.bf16.msra.mxu0 0
      %667 = vmatpush.bf16.msra.mxu0 0
      %668 = vmatpush.bf16.msra.mxu0 0
      %669 = vmatpush.bf16.msra.mxu0 0
      %670 = vmatpush.bf16.msra.mxu0 %v662
      %671 = vmatpush.bf16.msra.mxu0 %v650
      %672 = vmatmul.bf16.gmra.mxu0 %v655
      %v673 = vpop.f32.mrf.mxu0
      %v674 = vadd.f32 0.0, %v673
      %v675 = vpop.f32.mrf.mxu0
      %v676 = vadd.f32 0.0, %v675
      %677 = vmatmul.bf16.gmra.mxu0 %v658
      %v678 = vpop.f32.mrf.mxu0
      %v679 = vadd.f32 0.0, %v678
      %v680 = vpop.f32.mrf.mxu0
      %681 = vdwg.mxu0
      %682 = vst.msk [vmem:[#allocation2] sm:$0xff] %vm539, %v674
      %683 = vst.msk [vmem:[#allocation2 + $0x8] sm:$0xff] %vm539, %v676
      %vm684 = vcmask 58368
      %685 = vst.msk [vmem:[#allocation2 + $0x10] sm:$0x3] %vm684, %v679
      %v686 = vpack.c.bf16 %v521, %v521
      %687 = vrot.lane.b32.xlu0 %v536, 120
      %v688 = vpop.permute.xlu0 %687
      %689 = vrot.lane.b32.xlu0 %v537, 120
      %v690 = vpop.permute.xlu0 %689
      %v692 = vsel %vm539, %v688, 0
      %v695 = vsel %vm539, %v690, 0
      %v698 = vsel %vm546, %v686, 0
      %700 = vmatpush.bf16.msra.mxu0 0
      %701 = vmatpush.bf16.msra.mxu0 0
      %702 = vmatpush.bf16.msra.mxu0 0
      %703 = vmatpush.bf16.msra.mxu0 0
      %704 = vmatpush.bf16.msra.mxu0 0
      %705 = vmatpush.bf16.msra.mxu0 0
      %706 = vmatpush.bf16.msra.mxu0 0
      %707 = vmatpush.bf16.msra.mxu0 %v698
      %708 = vmatmul.bf16.gmra.mxu0 %v692
      %v709 = vpop.f32.mrf.mxu0
      %v710 = vadd.f32 0.0, %v709
      %v711 = vpop.f32.mrf.mxu0
      %v712 = vadd.f32 0.0, %v711
      %713 = vmatmul.bf16.gmra.mxu0 %v695
      %v714 = vpop.f32.mrf.mxu0
      %v715 = vadd.f32 0.0, %v714
      %v716 = vpop.f32.mrf.mxu0
      %717 = vdwg.mxu0
      %v718 = vmul.f32 %v710, 0.35355338
      %v719 = vmul.f32 %v712, 0.35355338
      %v720 = vmul.f32 %v715, 0.35355338
      %v721 = vsel %vm571, %v718, -inf
      %722 = vmax.xlane.f32.xlu0 %v721
      %v723 = vpop.xlane.xlu0 %722
      %v724 = vsel %vm571, %v719, -inf
      %725 = vmax.xlane.f32.xlu0 %v724
      %v726 = vpop.xlane.xlu0 %725
      %v727 = vsel %vm578, %v720, -inf
      %728 = vmax.xlane.f32.xlu0 %v727
      %v729 = vpop.xlane.xlu0 %728
      %v730 = vsub.f32 %v718, %v723
      %v731 = vsub.f32 %v719, %v726
      %v732 = vsub.f32 %v720, %v729
      %v733 = vmul.f32 %v730, 1.442695
      %v734 = vpow.pop %v733
      %v735 = vmul.f32 %v731, 1.442695
      %v736 = vpow.pop %v735
      %v737 = vmul.f32 %v732, 1.442695
      %v738 = vpow.pop %v737
      %v739 = vsel %vm571, %v734, 0.0
      %740 = vadd.xlane.f32.xlu0 %v739
      %v741 = vpop.xlane.xlu0 %740
      %v742 = vsel %vm571, %v736, 0.0
      %743 = vadd.xlane.f32.xlu0 %v742
      %v744 = vpop.xlane.xlu0 %743
      %v745 = vsel %vm578, %v738, 0.0
      %746 = vadd.xlane.f32.xlu0 %v745
      %v747 = vpop.xlane.xlu0 %746
      %v748 = vrcp.pop %v741
      %v749 = vmul.f32 %v741, %v748
      %v750 = vsub.f32 1.0, %v749
      %v751 = vmul.f32 %v748, %v750
      %v752 = vadd.f32 %v748, %v751
      %vm753 = vweird.f32 %v741
      %vm754 = vweird.f32 %v748
      %vm755 = vmor %vm753, %vm754
      %v756 = vsel %vm755, %v748, %v752
      %v757 = vand.u32 2147483647, %v741
      %vm758 = vcmp.eq.f32.partialorder %v757, 8.507059e+37
      %v759 = vand.u32 %v741, 2147483648
      %v760 = vor.u32 1.1754944e-38, %v759
      %v761 = vsel %vm758, %v760, %v756
      %v762 = vmul.f32 %v734, %v761
      %v763 = vrcp.pop %v744
      %v764 = vmul.f32 %v744, %v763
      %v765 = vsub.f32 1.0, %v764
      %v766 = vmul.f32 %v763, %v765
      %v767 = vadd.f32 %v763, %v766
      %vm768 = vweird.f32 %v744
      %vm769 = vweird.f32 %v763
      %vm770 = vmor %vm768, %vm769
      %v771 = vsel %vm770, %v763, %v767
      %v772 = vand.u32 2147483647, %v744
      %vm773 = vcmp.eq.f32.partialorder %v772, 8.507059e+37
      %v774 = vand.u32 %v744, 2147483648
      %v775 = vor.u32 1.1754944e-38, %v774
      %v776 = vsel %vm773, %v775, %v771
      %v777 = vmul.f32 %v736, %v776
      %v778 = vrcp.pop %v747
      %v779 = vmul.f32 %v747, %v778
      %v780 = vsub.f32 1.0, %v779
      %v781 = vmul.f32 %v778, %v780
      %v782 = vadd.f32 %v778, %v781
      %vm783 = vweird.f32 %v747
      %vm784 = vweird.f32 %v778
      %vm785 = vmor %vm783, %vm784
      %v786 = vsel %vm785, %v778, %v782
      %v787 = vand.u32 2147483647, %v747
      %vm788 = vcmp.eq.f32.partialorder %v787, 8.507059e+37
      %v789 = vand.u32 %v747, 2147483648
      %v790 = vor.u32 1.1754944e-38, %v789
      %v791 = vsel %vm788, %v790, %v786
      %v792 = vmul.f32 %v738, %v791
      %v793 = vpack.c.bf16 %v777, %v762
      %v794 = vpack.c.bf16 %v792, %v792
      %795 = vrot.lane.b32.xlu0 %v536, 56
      %v796 = vpop.permute.xlu0 %795
      %797 = vrot.lane.b32.xlu0 %v537, 56
      %v798 = vpop.permute.xlu0 %797
      %v801 = vsel %vm571, %v793, 0
      %v804 = vsel %vm571, %v794, 0
      %v807 = vsel %vm660, %v798, 0
      %809 = vmatpush.bf16.msra.mxu0 0
      %810 = vmatpush.bf16.msra.mxu0 0
      %811 = vmatpush.bf16.msra.mxu0 0
      %812 = vmatpush.bf16.msra.mxu0 0
      %813 = vmatpush.bf16.msra.mxu0 0
      %814 = vmatpush.bf16.msra.mxu0 0
      %815 = vmatpush.bf16.msra.mxu0 %v807
      %816 = vmatpush.bf16.msra.mxu0 %v796
      %817 = vmatmul.bf16.gmra.mxu0 %v801
      %v818 = vpop.f32.mrf.mxu0
      %v819 = vadd.f32 0.0, %v818
      %v820 = vpop.f32.mrf.mxu0
      %v821 = vadd.f32 0.0, %v820
      %822 = vmatmul.bf16.gmra.mxu0 %v804
      %v823 = vpop.f32.mrf.mxu0
      %v824 = vadd.f32 0.0, %v823
      %v825 = vpop.f32.mrf.mxu0
      %826 = vdwg.mxu0
      %830 = vrot.lane.b32.xlu0 %v819, 8
      %v831 = vpop.permute.xlu0 %830
      %832 = vrot.lane.b32.xlu0 %v821, 8
      %v833 = vpop.permute.xlu0 %832
      %834 = vrot.lane.b32.xlu0 %v824, 8
      %v835 = vpop.permute.xlu0 %834
      %vm839 = vcmask 130112
      %840 = vst.msk [vmem:[#allocation2] sm:$0xff] %vm839, %v831
      %841 = vst.msk [vmem:[#allocation2 + $0x8] sm:$0xff] %vm839, %v833
      %vm842 = vcmask 123968
      %843 = vst.msk [vmem:[#allocation2 + $0x10] sm:$0x3] %vm842, %v835
      %v844 = vpack.c.bf16 %v522, %v522
      %845 = vrot.lane.b32.xlu0 %v536, 112
      %v846 = vpop.permute.xlu0 %845
      %847 = vrot.lane.b32.xlu0 %v537, 112
      %v848 = vpop.permute.xlu0 %847
      %v850 = vsel %vm539, %v846, 0
      %v853 = vsel %vm539, %v848, 0
      %v856 = vsel %vm546, %v844, 0
      %858 = vmatpush.bf16.msra.mxu0 0
      %859 = vmatpush.bf16.msra.mxu0 0
      %860 = vmatpush.bf16.msra.mxu0 0
      %861 = vmatpush.bf16.msra.mxu0 0
      %862 = vmatpush.bf16.msra.mxu0 0
      %863 = vmatpush.bf16.msra.mxu0 0
      %864 = vmatpush.bf16.msra.mxu0 0
      %865 = vmatpush.bf16.msra.mxu0 %v856
      %866 = vmatmul.bf16.gmra.mxu0 %v850
      %v867 = vpop.f32.mrf.mxu0
      %v868 = vadd.f32 0.0, %v867
      %v869 = vpop.f32.mrf.mxu0
      %v870 = vadd.f32 0.0, %v869
      %871 = vmatmul.bf16.gmra.mxu0 %v853
      %v872 = vpop.f32.mrf.mxu0
      %v873 = vadd.f32 0.0, %v872
      %v874 = vpop.f32.mrf.mxu0
      %875 = vdwg.mxu0
      %v876 = vmul.f32 %v868, 0.35355338
      %v877 = vmul.f32 %v870, 0.35355338
      %v878 = vmul.f32 %v873, 0.35355338
      %v879 = vsel %vm571, %v876, -inf
      %880 = vmax.xlane.f32.xlu0 %v879
      %v881 = vpop.xlane.xlu0 %880
      %v882 = vsel %vm571, %v877, -inf
      %883 = vmax.xlane.f32.xlu0 %v882
      %v884 = vpop.xlane.xlu0 %883
      %v885 = vsel %vm578, %v878, -inf
      %886 = vmax.xlane.f32.xlu0 %v885
      %v887 = vpop.xlane.xlu0 %886
      %v888 = vsub.f32 %v876, %v881
      %v889 = vsub.f32 %v877, %v884
      %v890 = vsub.f32 %v878, %v887
      %v891 = vmul.f32 %v888, 1.442695
      %v892 = vpow.pop %v891
      %v893 = vmul.f32 %v889, 1.442695
      %v894 = vpow.pop %v893
      %v895 = vmul.f32 %v890, 1.442695
      %v896 = vpow.pop %v895
      %v897 = vsel %vm571, %v892, 0.0
      %898 = vadd.xlane.f32.xlu0 %v897
      %v899 = vpop.xlane.xlu0 %898
      %v900 = vsel %vm571, %v894, 0.0
      %901 = vadd.xlane.f32.xlu0 %v900
      %v902 = vpop.xlane.xlu0 %901
      %v903 = vsel %vm578, %v896, 0.0
      %904 = vadd.xlane.f32.xlu0 %v903
      %v905 = vpop.xlane.xlu0 %904
      %v906 = vrcp.pop %v899
      %v907 = vmul.f32 %v899, %v906
      %v908 = vsub.f32 1.0, %v907
      %v909 = vmul.f32 %v906, %v908
      %v910 = vadd.f32 %v906, %v909
      %vm911 = vweird.f32 %v899
      %vm912 = vweird.f32 %v906
      %vm913 = vmor %vm911, %vm912
      %v914 = vsel %vm913, %v906, %v910
      %v915 = vand.u32 2147483647, %v899
      %vm916 = vcmp.eq.f32.partialorder %v915, 8.507059e+37
      %v917 = vand.u32 %v899, 2147483648
      %v918 = vor.u32 1.1754944e-38, %v917
      %v919 = vsel %vm916, %v918, %v914
      %v920 = vmul.f32 %v892, %v919
      %v921 = vrcp.pop %v902
      %v922 = vmul.f32 %v902, %v921
      %v923 = vsub.f32 1.0, %v922
      %v924 = vmul.f32 %v921, %v923
      %v925 = vadd.f32 %v921, %v924
      %vm926 = vweird.f32 %v902
      %vm927 = vweird.f32 %v921
      %vm928 = vmor %vm926, %vm927
      %v929 = vsel %vm928, %v921, %v925
      %v930 = vand.u32 2147483647, %v902
      %vm931 = vcmp.eq.f32.partialorder %v930, 8.507059e+37
      %v932 = vand.u32 %v902, 2147483648
      %v933 = vor.u32 1.1754944e-38, %v932
      %v934 = vsel %vm931, %v933, %v929
      %v935 = vmul.f32 %v894, %v934
      %v936 = vrcp.pop %v905
      %v937 = vmul.f32 %v905, %v936
      %v938 = vsub.f32 1.0, %v937
      %v939 = vmul.f32 %v936, %v938
      %v940 = vadd.f32 %v936, %v939
      %vm941 = vweird.f32 %v905
      %vm942 = vweird.f32 %v936
      %vm943 = vmor %vm941, %vm942
      %v944 = vsel %vm943, %v936, %v940
      %v945 = vand.u32 2147483647, %v905
      %vm946 = vcmp.eq.f32.partialorder %v945, 8.507059e+37
      %v947 = vand.u32 %v905, 2147483648
      %v948 = vor.u32 1.1754944e-38, %v947
      %v949 = vsel %vm946, %v948, %v944
      %v950 = vmul.f32 %v896, %v949
      %v951 = vpack.c.bf16 %v935, %v920
      %v952 = vpack.c.bf16 %v950, %v950
      %953 = vrot.lane.b32.xlu0 %v536, 48
      %v954 = vpop.permute.xlu0 %953
      %955 = vrot.lane.b32.xlu0 %v537, 48
      %v956 = vpop.permute.xlu0 %955
      %v959 = vsel %vm571, %v951, 0
      %v962 = vsel %vm571, %v952, 0
      %v965 = vsel %vm660, %v956, 0
      %967 = vmatpush.bf16.msra.mxu0 0
      %968 = vmatpush.bf16.msra.mxu0 0
      %969 = vmatpush.bf16.msra.mxu0 0
      %970 = vmatpush.bf16.msra.mxu0 0
      %971 = vmatpush.bf16.msra.mxu0 0
      %972 = vmatpush.bf16.msra.mxu0 0
      %973 = vmatpush.bf16.msra.mxu0 %v965
      %974 = vmatpush.bf16.msra.mxu0 %v954
      %975 = vmatmul.bf16.gmra.mxu0 %v959
      %v976 = vpop.f32.mrf.mxu0
      %v977 = vadd.f32 0.0, %v976
      %v978 = vpop.f32.mrf.mxu0
      %v979 = vadd.f32 0.0, %v978
      %980 = vmatmul.bf16.gmra.mxu0 %v962
      %v981 = vpop.f32.mrf.mxu0
      %v982 = vadd.f32 0.0, %v981
      %v983 = vpop.f32.mrf.mxu0
      %984 = vdwg.mxu0
      %988 = vrot.lane.b32.xlu0 %v977, 16
      %v989 = vpop.permute.xlu0 %988
      %990 = vrot.lane.b32.xlu0 %v979, 16
      %v991 = vpop.permute.xlu0 %990
      %992 = vrot.lane.b32.xlu0 %v982, 16
      %v993 = vpop.permute.xlu0 %992
      %vm997 = vcmask 195712
      %998 = vst.msk [vmem:[#allocation2] sm:$0xff] %vm997, %v989
      %999 = vst.msk [vmem:[#allocation2 + $0x8] sm:$0xff] %vm997, %v991
      %vm1000 = vcmask 189568
      %1001 = vst.msk [vmem:[#allocation2 + $0x10] sm:$0x3] %vm1000, %v993
      %v1002 = vpack.c.bf16 %v523, %v523
      %1003 = vrot.lane.b32.xlu0 %v536, 104
      %v1004 = vpop.permute.xlu0 %1003
      %1005 = vrot.lane.b32.xlu0 %v537, 104
      %v1006 = vpop.permute.xlu0 %1005
      %v1008 = vsel %vm539, %v1004, 0
      %v1011 = vsel %vm539, %v1006, 0
      %v1014 = vsel %vm546, %v1002, 0
      %1016 = vmatpush.bf16.msra.mxu0 0
      %1017 = vmatpush.bf16.msra.mxu0 0
      %1018 = vmatpush.bf16.msra.mxu0 0
      %1019 = vmatpush.bf16.msra.mxu0 0
      %1020 = vmatpush.bf16.msra.mxu0 0
      %1021 = vmatpush.bf16.msra.mxu0 0
      %1022 = vmatpush.bf16.msra.mxu0 0
      %1023 = vmatpush.bf16.msra.mxu0 %v1014
      %1024 = vmatmul.bf16.gmra.mxu0 %v1008
      %v1025 = vpop.f32.mrf.mxu0
      %v1026 = vadd.f32 0.0, %v1025
      %v1027 = vpop.f32.mrf.mxu0
      %v1028 = vadd.f32 0.0, %v1027
      %1029 = vmatmul.bf16.gmra.mxu0 %v1011
      %v1030 = vpop.f32.mrf.mxu0
      %v1031 = vadd.f32 0.0, %v1030
      %v1032 = vpop.f32.mrf.mxu0
      %1033 = vdwg.mxu0
      %v1034 = vmul.f32 %v1026, 0.35355338
      %v1035 = vmul.f32 %v1028, 0.35355338
      %v1036 = vmul.f32 %v1031, 0.35355338
      %v1037 = vsel %vm571, %v1034, -inf
      %1038 = vmax.xlane.f32.xlu0 %v1037
      %v1039 = vpop.xlane.xlu0 %1038
      %v1040 = vsel %vm571, %v1035, -inf
      %1041 = vmax.xlane.f32.xlu0 %v1040
      %v1042 = vpop.xlane.xlu0 %1041
      %v1043 = vsel %vm578, %v1036, -inf
      %1044 = vmax.xlane.f32.xlu0 %v1043
      %v1045 = vpop.xlane.xlu0 %1044
      %v1046 = vsub.f32 %v1034, %v1039
      %v1047 = vsub.f32 %v1035, %v1042
      %v1048 = vsub.f32 %v1036, %v1045
      %v1049 = vmul.f32 %v1046, 1.442695
      %v1050 = vpow.pop %v1049
      %v1051 = vmul.f32 %v1047, 1.442695
      %v1052 = vpow.pop %v1051
      %v1053 = vmul.f32 %v1048, 1.442695
      %v1054 = vpow.pop %v1053
      %v1055 = vsel %vm571, %v1050, 0.0
      %1056 = vadd.xlane.f32.xlu0 %v1055
      %v1057 = vpop.xlane.xlu0 %1056
      %v1058 = vsel %vm571, %v1052, 0.0
      %1059 = vadd.xlane.f32.xlu0 %v1058
      %v1060 = vpop.xlane.xlu0 %1059
      %v1061 = vsel %vm578, %v1054, 0.0
      %1062 = vadd.xlane.f32.xlu0 %v1061
      %v1063 = vpop.xlane.xlu0 %1062
      %v1064 = vrcp.pop %v1057
      %v1065 = vmul.f32 %v1057, %v1064
      %v1066 = vsub.f32 1.0, %v1065
      %v1067 = vmul.f32 %v1064, %v1066
      %v1068 = vadd.f32 %v1064, %v1067
      %vm1069 = vweird.f32 %v1057
      %vm1070 = vweird.f32 %v1064
      %vm1071 = vmor %vm1069, %vm1070
      %v1072 = vsel %vm1071, %v1064, %v1068
      %v1073 = vand.u32 2147483647, %v1057
      %vm1074 = vcmp.eq.f32.partialorder %v1073, 8.507059e+37
      %v1075 = vand.u32 %v1057, 2147483648
      %v1076 = vor.u32 1.1754944e-38, %v1075
      %v1077 = vsel %vm1074, %v1076, %v1072
      %v1078 = vmul.f32 %v1050, %v1077
      %v1079 = vrcp.pop %v1060
      %v1080 = vmul.f32 %v1060, %v1079
      %v1081 = vsub.f32 1.0, %v1080
      %v1082 = vmul.f32 %v1079, %v1081
      %v1083 = vadd.f32 %v1079, %v1082
      %vm1084 = vweird.f32 %v1060
      %vm1085 = vweird.f32 %v1079
      %vm1086 = vmor %vm1084, %vm1085
      %v1087 = vsel %vm1086, %v1079, %v1083
      %v1088 = vand.u32 2147483647, %v1060
      %vm1089 = vcmp.eq.f32.partialorder %v1088, 8.507059e+37
      %v1090 = vand.u32 %v1060, 2147483648
      %v1091 = vor.u32 1.1754944e-38, %v1090
      %v1092 = vsel %vm1089, %v1091, %v1087
      %v1093 = vmul.f32 %v1052, %v1092
      %v1094 = vrcp.pop %v1063
      %v1095 = vmul.f32 %v1063, %v1094
      %v1096 = vsub.f32 1.0, %v1095
      %v1097 = vmul.f32 %v1094, %v1096
      %v1098 = vadd.f32 %v1094, %v1097
      %vm1099 = vweird.f32 %v1063
      %vm1100 = vweird.f32 %v1094
      %vm1101 = vmor %vm1099, %vm1100
      %v1102 = vsel %vm1101, %v1094, %v1098
      %v1103 = vand.u32 2147483647, %v1063
      %vm1104 = vcmp.eq.f32.partialorder %v1103, 8.507059e+37
      %v1105 = vand.u32 %v1063, 2147483648
      %v1106 = vor.u32 1.1754944e-38, %v1105
      %v1107 = vsel %vm1104, %v1106, %v1102
      %v1108 = vmul.f32 %v1054, %v1107
      %v1109 = vpack.c.bf16 %v1093, %v1078
      %v1110 = vpack.c.bf16 %v1108, %v1108
      %1111 = vrot.lane.b32.xlu0 %v536, 40
      %v1112 = vpop.permute.xlu0 %1111
      %1113 = vrot.lane.b32.xlu0 %v537, 40
      %v1114 = vpop.permute.xlu0 %1113
      %v1117 = vsel %vm571, %v1109, 0
      %v1120 = vsel %vm571, %v1110, 0
      %v1123 = vsel %vm660, %v1114, 0
      %1125 = vmatpush.bf16.msra.mxu0 0
      %1126 = vmatpush.bf16.msra.mxu0 0
      %1127 = vmatpush.bf16.msra.mxu0 0
      %1128 = vmatpush.bf16.msra.mxu0 0
      %1129 = vmatpush.bf16.msra.mxu0 0
      %1130 = vmatpush.bf16.msra.mxu0 0
      %1131 = vmatpush.bf16.msra.mxu0 %v1123
      %1132 = vmatpush.bf16.msra.mxu0 %v1112
      %1133 = vmatmul.bf16.gmra.mxu0 %v1117
      %v1134 = vpop.f32.mrf.mxu0
      %v1135 = vadd.f32 0.0, %v1134
      %v1136 = vpop.f32.mrf.mxu0
      %v1137 = vadd.f32 0.0, %v1136
      %1138 = vmatmul.bf16.gmra.mxu0 %v1120
      %v1139 = vpop.f32.mrf.mxu0
      %v1140 = vadd.f32 0.0, %v1139
      %v1141 = vpop.f32.mrf.mxu0
      %1142 = vdwg.mxu0
      %1146 = vrot.lane.b32.xlu0 %v1135, 24
      %v1147 = vpop.permute.xlu0 %1146
      %1148 = vrot.lane.b32.xlu0 %v1137, 24
      %v1149 = vpop.permute.xlu0 %1148
      %1150 = vrot.lane.b32.xlu0 %v1140, 24
      %v1151 = vpop.permute.xlu0 %1150
      %vm1155 = vcmask 261312
      %1156 = vst.msk [vmem:[#allocation2] sm:$0xff] %vm1155, %v1147
      %1157 = vst.msk [vmem:[#allocation2 + $0x8] sm:$0xff] %vm1155, %v1149
      %vm1158 = vcmask 255168
      %1159 = vst.msk [vmem:[#allocation2 + $0x10] sm:$0x3] %vm1158, %v1151
      %v1160 = vld [vmem:[#allocation2] sm:$0xff]
      %v1161 = vld [vmem:[#allocation2 + $0x8] sm:$0xff]
      %v1162 = vld [vmem:[#allocation2 + $0x10] sm:$0x3]
      %v1163 = vpack.c.bf16 %v1161, %v1160
      %v1164 = vpack.c.bf16 %v1162, %v1162
      %v1165 = vld [vmem:[%s3] sm:$0xf]
      %v1166 = vld [vmem:[%s3 + $0x4] sm:$0xf]
      %v1167 = vld [vmem:[%s3 + $0x8] sm:$0xf]
      %v1168 = vld [vmem:[%s3 + $0xc] sm:$0xf]
      %v1169 = vld [vmem:[%s4] sm:$0x1]
      %v1171 = vperm.slane %v1169, 0
      %v1177 = vunpack.c.l.b16 %v1165
      %v1178 = vunpack.c.l.b16 %v1166
      %v1179 = vunpack.c.l.b16 %v1167
      %v1180 = vunpack.c.l.b16 %v1168
      %v1181 = vpack.c.b16 %v1178, %v1177
      %v1182 = vpack.c.b16 %v1180, %v1179
      %v1186 = vsel %vm467, %v1163, 0
      %v1189 = vsel %vm467, %v1164, 0
      %1191 = vmatpush.bf16.msra.mxu0 0
      %1192 = vmatpush.bf16.msra.mxu0 0
      %1193 = vmatpush.bf16.msra.mxu0 0
      %1194 = vmatpush.bf16.msra.mxu0 0
      %1195 = vmatpush.bf16.msra.mxu0 0
      %1196 = vmatpush.bf16.msra.mxu0 0
      %1197 = vmatpush.bf16.msra.mxu0 %v1182
      %1198 = vmatpush.bf16.msra.mxu0 %v1181
      %1199 = vmatmul.bf16.gmra.mxu0 %v1186
      %v1200 = vpop.f32.mrf.mxu0
      %v1201 = vadd.f32 %v1171, %v1200
      %v1202 = vpop.f32.mrf.mxu0
      %v1203 = vadd.f32 %v1171, %v1202
      %1204 = vmatmul.bf16.gmra.mxu0 %v1189
      %v1205 = vpop.f32.mrf.mxu0
      %v1206 = vadd.f32 %v1171, %v1205
      %v1207 = vpop.f32.mrf.mxu0
      %1208 = vdwg.mxu0
      %v1209 = vadd.f32 %v442, %v1201
      %v1210 = vadd.f32 %v443, %v1203
      %v1211 = vadd.f32 %v444, %v1206
      %v1212 = vld [vmem:[%s5] sm:$0x1]
      %v1213 = vld [vmem:[%s6] sm:$0x1]
      %v1214 = vsel %vm467, %v1209, 0.0
      %1215 = vadd.xlane.f32.xlu0 %v1214
      %v1216 = vpop.xlane.xlu0 %1215
      %v1217 = vsel %vm467, %v1210, 0.0
      %1218 = vadd.xlane.f32.xlu0 %v1217
      %v1219 = vpop.xlane.xlu0 %1218
      %vm1220 = vcmask 254976
      %v1221 = vsel %vm1220, %v1211, 0.0
      %1222 = vadd.xlane.f32.xlu0 %v1221
      %v1223 = vpop.xlane.xlu0 %1222
      %v1224 = vrcp.pop 32.0
      %v1225 = vmul.f32 32.0, %v1224
      %v1226 = vsub.f32 1.0, %v1225
      %v1227 = vmul.f32 %v1224, %v1226
      %v1228 = vadd.f32 %v1224, %v1227
      %vm1229 = vweird.f32 %v1224
      %v1230 = vsel %vm1229, %v1224, %v1228
      %v1231 = vmul.f32 %v1216, %v1230
      %v1232 = vmul.f32 %v1219, %v1230
      %v1233 = vmul.f32 %v1223, %v1230
      %v1234 = vsub.f32 %v1209, %v1231
      %v1235 = vsub.f32 %v1210, %v1232
      %v1236 = vsub.f32 %v1211, %v1233
      %v1237 = vmul.f32 %v1234, %v1234
      %v1238 = vmul.f32 %v1235, %v1235
      %v1239 = vmul.f32 %v1236, %v1236
      %v1240 = vsel %vm467, %v1237, 0.0
      %1241 = vadd.xlane.f32.xlu0 %v1240
      %v1242 = vpop.xlane.xlu0 %1241
      %v1243 = vsel %vm467, %v1238, 0.0
      %1244 = vadd.xlane.f32.xlu0 %v1243
      %v1245 = vpop.xlane.xlu0 %1244
      %v1246 = vsel %vm1220, %v1239, 0.0
      %1247 = vadd.xlane.f32.xlu0 %v1246
      %v1248 = vpop.xlane.xlu0 %1247
      %v1249 = vmul.f32 %v1242, %v1230
      %v1250 = vmul.f32 %v1245, %v1230
      %v1251 = vmul.f32 %v1248, %v1230
      %v1252 = vadd.f32 %v1249, 1e-05
      %v1253 = vadd.f32 %v1250, 1e-05
      %v1254 = vadd.f32 %v1251, 1e-05
      %v1255 = vrsqrt.pop %v1252
      %v1256 = vmul.f32 %v1255, %v1252
      %v1257 = vmul.f32 %v1256, %v1255
      %v1258 = vmul.f32 0.5, %v1257
      %v1259 = vsub.f32 1.5, %v1258
      %v1260 = vmul.f32 %v1255, %v1259
      %vm1261 = vweird.f32 %v1252
      %vm1262 = vweird.f32 %v1255
      %vm1263 = vmor %vm1261, %vm1262
      %v1264 = vsel %vm1263, %v1255, %v1260
      %v1265 = vrsqrt.pop %v1253
      %v1266 = vmul.f32 %v1265, %v1253
      %v1267 = vmul.f32 %v1266, %v1265
      %v1268 = vmul.f32 0.5, %v1267
      %v1269 = vsub.f32 1.5, %v1268
      %v1270 = vmul.f32 %v1265, %v1269
      %vm1271 = vweird.f32 %v1253
      %vm1272 = vweird.f32 %v1265
      %vm1273 = vmor %vm1271, %vm1272
      %v1274 = vsel %vm1273, %v1265, %v1270
      %v1275 = vrsqrt.pop %v1254
      %v1276 = vmul.f32 %v1275, %v1254
      %v1277 = vmul.f32 %v1276, %v1275
      %v1278 = vmul.f32 0.5, %v1277
      %v1279 = vsub.f32 1.5, %v1278
      %v1280 = vmul.f32 %v1275, %v1279
      %vm1281 = vweird.f32 %v1254
      %vm1282 = vweird.f32 %v1275
      %vm1283 = vmor %vm1281, %vm1282
      %v1284 = vsel %vm1283, %v1275, %v1280
      %v1285 = vmul.f32 %v1234, %v1264
      %v1286 = vmul.f32 %v1235, %v1274
      %v1287 = vmul.f32 %v1236, %v1284
      %v1289 = vperm.slane %v1212, 0
      %v1291 = vmul.f32 %v1285, %v1289
      %v1292 = vmul.f32 %v1286, %v1289
      %v1293 = vmul.f32 %v1287, %v1289
      %v1295 = vperm.slane %v1213, 0
      %v1297 = vadd.f32 %v1291, %v1295
      %v1298 = vadd.f32 %v1292, %v1295
      %v1299 = vadd.f32 %v1293, %v1295
      %v1300 = vpack.c.bf16 %v1298, %v1297
      %v1301 = vpack.c.bf16 %v1299, %v1299
      %v1302 = vld [vmem:[%s7] sm:$0xf]
      %v1303 = vld [vmem:[%s7 + $0x4] sm:$0xf]
      %v1304 = vld [vmem:[%s7 + $0x8] sm:$0xf]
      %v1305 = vld [vmem:[%s7 + $0xc] sm:$0xf]
      %v1306 = vld [vmem:[%s8] sm:$0x1]
      %v1308 = vperm.slane %v1306, 0
      %v1314 = vunpack.c.l.b16 %v1302
      %v1315 = vunpack.c.l.b16 %v1303
      %v1316 = vunpack.c.l.b16 %v1304
      %v1317 = vunpack.c.l.b16 %v1305
      %v1318 = vpack.c.b16 %v1315, %v1314
      %v1319 = vpack.c.b16 %v1317, %v1316
      %v1323 = vsel %vm467, %v1300, 0
      %v1326 = vsel %vm467, %v1301, 0
      %1328 = vmatpush.bf16.msra.mxu0 0
      %1329 = vmatpush.bf16.msra.mxu0 0
      %1330 = vmatpush.bf16.msra.mxu0 0
      %1331 = vmatpush.bf16.msra.mxu0 0
      %1332 = vmatpush.bf16.msra.mxu0 0
      %1333 = vmatpush.bf16.msra.mxu0 0
      %1334 = vmatpush.bf16.msra.mxu0 %v1319
      %1335 = vmatpush.bf16.msra.mxu0 %v1318
      %1336 = vmatmul.bf16.gmra.mxu0 %v1323
      %v1337 = vpop.f32.mrf.mxu0
      %v1338 = vadd.f32 %v1308, %v1337
      %v1339 = vpop.f32.mrf.mxu0
      %v1340 = vadd.f32 %v1308, %v1339
      %1341 = vmatmul.bf16.gmra.mxu0 %v1326
      %v1342 = vpop.f32.mrf.mxu0
      %v1343 = vadd.f32 %v1308, %v1342
      %v1344 = vpop.f32.mrf.mxu0
      %1345 = vdwg.mxu0
      %v1346 = vmul.f32 %v1338, 0.5
      %v1347 = vmul.f32 %v1340, 0.5
      %v1348 = vmul.f32 %v1343, 0.5
      %v1349 = vmul.f32 %v1338, 0.70710677
      %v1350 = vmul.f32 %v1340, 0.70710677
      %v1351 = vmul.f32 %v1343, 0.70710677
      %v1352 = vmul.f32 %v1349, %v1349
      %v1353 = vmin.f32 16.0, %v1352
      %v1354 = vmul.f32 %v1353, 2.1237322e-06
      %v1355 = vadd.f32 %v1354, 0.00028619796
      %v1356 = vmul.f32 %v1353, %v1355
      %v1357 = vadd.f32 %v1356, 0.0036580483
      %v1358 = vmul.f32 %v1353, %v1357
      %v1359 = vadd.f32 %v1358, 0.05243302
      %v1360 = vmul.f32 %v1353, %v1359
      %v1361 = vadd.f32 %v1360, 0.18741608
      %v1362 = vmul.f32 %v1353, %v1361
      %v1363 = vadd.f32 %v1362, 1.1283791
      %v1364 = vmul.f32 %v1349, %v1363
      %v1365 = vmul.f32 %v1353, 3.8918573e-05
      %v1366 = vadd.f32 %v1365, 0.001143296
      %v1367 = vmul.f32 %v1353, %v1366
      %v1368 = vadd.f32 %v1367, 0.014752088
      %v1369 = vmul.f32 %v1353, %v1368
      %v1370 = vadd.f32 %v1369, 0.112945676
      %v1371 = vmul.f32 %v1353, %v1370
      %v1372 = vadd.f32 %v1371, 0.4994258
      %v1373 = vmul.f32 %v1353, %v1372
      %v1374 = vadd.f32 %v1373, 1.0
      %v1375 = vrcp.pop %v1374
      %v1376 = vmul.f32 %v1374, %v1375
      %v1377 = vsub.f32 1.0, %v1376
      %v1378 = vmul.f32 %v1375, %v1377
      %v1379 = vadd.f32 %v1375, %v1378
      %vm1380 = vweird.f32 %v1374
      %vm1381 = vweird.f32 %v1375
      %vm1382 = vmor %vm1380, %vm1381
      %v1383 = vsel %vm1382, %v1375, %v1379
      %v1384 = vand.u32 2147483647, %v1374
      %vm1385 = vcmp.eq.f32.partialorder %v1384, 8.507059e+37
      %v1386 = vand.u32 %v1374, 2147483648
      %v1387 = vor.u32 1.1754944e-38, %v1386
      %v1388 = vsel %vm1385, %v1387, %v1383
      %v1389 = vmul.f32 %v1364, %v1388
      %v1390 = vmin.f32 %v1389, 1.0
      %v1391 = vmax.f32 %v1390, -1.0
      %v1392 = vmul.f32 %v1350, %v1350
      %v1393 = vmin.f32 16.0, %v1392
      %v1394 = vmul.f32 %v1393, 2.1237322e-06
      %v1395 = vadd.f32 %v1394, 0.00028619796
      %v1396 = vmul.f32 %v1393, %v1395
      %v1397 = vadd.f32 %v1396, 0.0036580483
      %v1398 = vmul.f32 %v1393, %v1397
      %v1399 = vadd.f32 %v1398, 0.05243302
      %v1400 = vmul.f32 %v1393, %v1399
      %v1401 = vadd.f32 %v1400, 0.18741608
      %v1402 = vmul.f32 %v1393, %v1401
      %v1403 = vadd.f32 %v1402, 1.1283791
      %v1404 = vmul.f32 %v1350, %v1403
      %v1405 = vmul.f32 %v1393, 3.8918573e-05
      %v1406 = vadd.f32 %v1405, 0.001143296
      %v1407 = vmul.f32 %v1393, %v1406
      %v1408 = vadd.f32 %v1407, 0.014752088
      %v1409 = vmul.f32 %v1393, %v1408
      %v1410 = vadd.f32 %v1409, 0.112945676
      %v1411 = vmul.f32 %v1393, %v1410
      %v1412 = vadd.f32 %v1411, 0.4994258
      %v1413 = vmul.f32 %v1393, %v1412
      %v1414 = vadd.f32 %v1413, 1.0
      %v1415 = vrcp.pop %v1414
      %v1416 = vmul.f32 %v1414, %v1415
      %v1417 = vsub.f32 1.0, %v1416
      %v1418 = vmul.f32 %v1415, %v1417
      %v1419 = vadd.f32 %v1415, %v1418
      %vm1420 = vweird.f32 %v1414
      %vm1421 = vweird.f32 %v1415
      %vm1422 = vmor %vm1420, %vm1421
      %v1423 = vsel %vm1422, %v1415, %v1419
      %v1424 = vand.u32 2147483647, %v1414
      %vm1425 = vcmp.eq.f32.partialorder %v1424, 8.507059e+37
      %v1426 = vand.u32 %v1414, 2147483648
      %v1427 = vor.u32 1.1754944e-38, %v1426
      %v1428 = vsel %vm1425, %v1427, %v1423
      %v1429 = vmul.f32 %v1404, %v1428
      %v1430 = vmin.f32 %v1429, 1.0
      %v1431 = vmax.f32 %v1430, -1.0
      %v1432 = vmul.f32 %v1351, %v1351
      %v1433 = vmin.f32 16.0, %v1432
      %v1434 = vmul.f32 %v1433, 2.1237322e-06
      %v1435 = vadd.f32 %v1434, 0.00028619796
      %v1436 = vmul.f32 %v1433, %v1435
      %v1437 = vadd.f32 %v1436, 0.0036580483
      %v1438 = vmul.f32 %v1433, %v1437
      %v1439 = vadd.f32 %v1438, 0.05243302
      %v1440 = vmul.f32 %v1433, %v1439
      %v1441 = vadd.f32 %v1440, 0.18741608
      %v1442 = vmul.f32 %v1433, %v1441
      %v1443 = vadd.f32 %v1442, 1.1283791
      %v1444 = vmul.f32 %v1351, %v1443
      %v1445 = vmul.f32 %v1433, 3.8918573e-05
      %v1446 = vadd.f32 %v1445, 0.001143296
      %v1447 = vmul.f32 %v1433, %v1446
      %v1448 = vadd.f32 %v1447, 0.014752088
      %v1449 = vmul.f32 %v1433, %v1448
      %v1450 = vadd.f32 %v1449, 0.112945676
      %v1451 = vmul.f32 %v1433, %v1450
      %v1452 = vadd.f32 %v1451, 0.4994258
      %v1453 = vmul.f32 %v1433, %v1452
      %v1454 = vadd.f32 %v1453, 1.0
      %v1455 = vrcp.pop %v1454
      %v1456 = vmul.f32 %v1454, %v1455
      %v1457 = vsub.f32 1.0, %v1456
      %v1458 = vmul.f32 %v1455, %v1457
      %v1459 = vadd.f32 %v1455, %v1458
      %vm1460 = vweird.f32 %v1454
      %vm1461 = vweird.f32 %v1455
      %vm1462 = vmor %vm1460, %vm1461
      %v1463 = vsel %vm1462, %v1455, %v1459
      %v1464 = vand.u32 2147483647, %v1454
      %vm1465 = vcmp.eq.f32.partialorder %v1464, 8.507059e+37
      %v1466 = vand.u32 %v1454, 2147483648
      %v1467 = vor.u32 1.1754944e-38, %v1466
      %v1468 = vsel %vm1465, %v1467, %v1463
      %v1469 = vmul.f32 %v1444, %v1468
      %v1470 = vmin.f32 %v1469, 1.0
      %v1471 = vmax.f32 %v1470, -1.0
      %v1472 = vadd.f32 %v1391, 1.0
      %v1473 = vadd.f32 %v1431, 1.0
      %v1474 = vadd.f32 %v1471, 1.0
      %v1475 = vmul.f32 %v1346, %v1472
      %v1476 = vmul.f32 %v1347, %v1473
      %v1477 = vmul.f32 %v1348, %v1474
      %v1478 = vpack.c.bf16 %v1476, %v1475
      %v1479 = vpack.c.bf16 %v1477, %v1477
      %v1480 = vld [vmem:[%s9] sm:$0xf]
      %v1481 = vld [vmem:[%s9 + $0x4] sm:$0xf]
      %v1482 = vld [vmem:[%s9 + $0x8] sm:$0xf]
      %v1483 = vld [vmem:[%s9 + $0xc] sm:$0xf]
      %v1484 = vld [vmem:[%s9 + $0x10] sm:$0xf]
      %v1485 = vld [vmem:[%s9 + $0x14] sm:$0xf]
      %v1486 = vld [vmem:[%s9 + $0x18] sm:$0xf]
      %v1487 = vld [vmem:[%s9 + $0x1c] sm:$0xf]
      %v1488 = vld [vmem:[%s10] sm:$0x1]
      %v1490 = vperm.slane %v1488, 0
      %v1500 = vunpack.c.l.b16 %v1480
      %v1501 = vunpack.c.l.b16 %v1481
      %v1502 = vunpack.c.l.b16 %v1482
      %v1503 = vunpack.c.l.b16 %v1483
      %v1504 = vunpack.c.l.b16 %v1484
      %v1505 = vunpack.c.l.b16 %v1485
      %v1506 = vunpack.c.l.b16 %v1486
      %v1507 = vunpack.c.l.b16 %v1487
      %v1508 = vpack.c.b16 %v1501, %v1500
      %v1509 = vpack.c.b16 %v1503, %v1502
      %v1510 = vpack.c.b16 %v1505, %v1504
      %v1511 = vpack.c.b16 %v1507, %v1506
      %vm1516 = vcmask 523264
      %v1518 = vsel %vm1516, %v1478, 0
      %v1521 = vsel %vm1516, %v1479, 0
      %1523 = vmatpush.bf16.msra.mxu0 0
      %1524 = vmatpush.bf16.msra.mxu0 0
      %1525 = vmatpush.bf16.msra.mxu0 0
      %1526 = vmatpush.bf16.msra.mxu0 0
      %1527 = vmatpush.bf16.msra.mxu0 %v1511
      %1528 = vmatpush.bf16.msra.mxu0 %v1510
      %1529 = vmatpush.bf16.msra.mxu0 %v1509
      %1530 = vmatpush.bf16.msra.mxu0 %v1508
      %1531 = vmatmul.bf16.gmra.mxu0 %v1518
      %v1532 = vpop.f32.mrf.mxu0
      %v1533 = vadd.f32 %v1490, %v1532
      %v1534 = vpop.f32.mrf.mxu0
      %v1535 = vadd.f32 %v1490, %v1534
      %1536 = vmatmul.bf16.gmra.mxu0 %v1521
      %v1537 = vpop.f32.mrf.mxu0
      %v1538 = vadd.f32 %v1490, %v1537
      %v1539 = vpop.f32.mrf.mxu0
      %1540 = vdwg.mxu0
      %v1541 = vadd.f32 %v1297, %v1533
      %v1542 = vadd.f32 %v1298, %v1535
      %v1543 = vadd.f32 %v1299, %v1538
      %v1544 = vld [vmem:[%s11] sm:$0x1]
      %v1545 = vld [vmem:[%s12] sm:$0x1]
      %v1546 = vsel %vm467, %v1541, 0.0
      %1547 = vadd.xlane.f32.xlu0 %v1546
      %v1548 = vpop.xlane.xlu0 %1547
      %v1549 = vsel %vm467, %v1542, 0.0
      %1550 = vadd.xlane.f32.xlu0 %v1549
      %v1551 = vpop.xlane.xlu0 %1550
      %v1552 = vsel %vm1220, %v1543, 0.0
      %1553 = vadd.xlane.f32.xlu0 %v1552
      %v1554 = vpop.xlane.xlu0 %1553
      %v1555 = vmul.f32 %v1548, %v1230
      %v1556 = vmul.f32 %v1551, %v1230
      %v1557 = vmul.f32 %v1554, %v1230
      %v1558 = vsub.f32 %v1541, %v1555
      %v1559 = vsub.f32 %v1542, %v1556
      %v1560 = vsub.f32 %v1543, %v1557
      %v1561 = vmul.f32 %v1558, %v1558
      %v1562 = vmul.f32 %v1559, %v1559
      %v1563 = vmul.f32 %v1560, %v1560
      %v1564 = vsel %vm467, %v1561, 0.0
      %1565 = vadd.xlane.f32.xlu0 %v1564
      %v1566 = vpop.xlane.xlu0 %1565
      %v1567 = vsel %vm467, %v1562, 0.0
      %1568 = vadd.xlane.f32.xlu0 %v1567
      %v1569 = vpop.xlane.xlu0 %1568
      %v1570 = vsel %vm1220, %v1563, 0.0
      %1571 = vadd.xlane.f32.xlu0 %v1570
      %v1572 = vpop.xlane.xlu0 %1571
      %v1573 = vmul.f32 %v1566, %v1230
      %v1574 = vmul.f32 %v1569, %v1230
      %v1575 = vmul.f32 %v1572, %v1230
      %v1576 = vadd.f32 %v1573, 1e-05
      %v1577 = vadd.f32 %v1574, 1e-05
      %v1578 = vadd.f32 %v1575, 1e-05
      %v1579 = vrsqrt.pop %v1576
      %v1580 = vmul.f32 %v1579, %v1576
      %v1581 = vmul.f32 %v1580, %v1579
      %v1582 = vmul.f32 0.5, %v1581
      %v1583 = vsub.f32 1.5, %v1582
      %v1584 = vmul.f32 %v1579, %v1583
      %vm1585 = vweird.f32 %v1576
      %vm1586 = vweird.f32 %v1579
      %vm1587 = vmor %vm1585, %vm1586
      %v1588 = vsel %vm1587, %v1579, %v1584
      %v1589 = vrsqrt.pop %v1577
      %v1590 = vmul.f32 %v1589, %v1577
      %v1591 = vmul.f32 %v1590, %v1589
      %v1592 = vmul.f32 0.5, %v1591
      %v1593 = vsub.f32 1.5, %v1592
      %v1594 = vmul.f32 %v1589, %v1593
      %vm1595 = vweird.f32 %v1577
      %vm1596 = vweird.f32 %v1589
      %vm1597 = vmor %vm1595, %vm1596
      %v1598 = vsel %vm1597, %v1589, %v1594
      %v1599 = vrsqrt.pop %v1578
      %v1600 = vmul.f32 %v1599, %v1578
      %v1601 = vmul.f32 %v1600, %v1599
      %v1602 = vmul.f32 0.5, %v1601
      %v1603 = vsub.f32 1.5, %v1602
      %v1604 = vmul.f32 %v1599, %v1603
      %vm1605 = vweird.f32 %v1578
      %vm1606 = vweird.f32 %v1599
      %vm1607 = vmor %vm1605, %vm1606
      %v1608 = vsel %vm1607, %v1599, %v1604
      %v1609 = vmul.f32 %v1558, %v1588
      %v1610 = vmul.f32 %v1559, %v1598
      %v1611 = vmul.f32 %v1560, %v1608
      %v1613 = vperm.slane %v1544, 0
      %v1615 = vmul.f32 %v1609, %v1613
      %v1616 = vmul.f32 %v1610, %v1613
      %v1617 = vmul.f32 %v1611, %v1613
      %v1619 = vperm.slane %v1545, 0
      %v1621 = vadd.f32 %v1615, %v1619
      %v1622 = vadd.f32 %v1616, %v1619
      %v1623 = vadd.f32 %v1617, %v1619
      %1624 = vst.msk [vmem:[%s440] sm:$0xff] %vm467, %v1621
      %1625 = vst.msk [vmem:[%s440 + $0x8] sm:$0xff] %vm467, %v1622
      %1626 = vst.msk [vmem:[%s440 + $0x10] sm:$0x3] %vm1220, %v1623
      %p1627 = scmp.lt.s32.totalorder %s24, 1
      %s1628 = scalar_select %p1627, %s24, 1
      %s1629 = smul.addr %s1628, 3
      %s1630 = smul.addr %s1629, 8
      %s1631 = scalar_lea.vmem %s13, %s1630
      // Predicated region
      $region73: #{_lambda_.5} parent=71 // pred_check
        %p1632 = pneg %p320
      $region74: #{_lambda_.5} parent=71 // pred_check_branch
        %1634 = sbr.rel (%p1632) target = $region76
      $region75: #{_lambda_.5} parent=71 // pred_region
        _
      $region76: #{_lambda_.5} parent=71 // pred_fallthru
        _
    $region72: #{_lambda_.5} parent=5 // pred_fallthru
      _
    %p1635 = scmp.le.s32.totalorder 2, %s19
    // Predicated region
    $region77: #{_lambda_.5} parent=5 // pred_check
      %p1636 = pneg %p1635
    $region78: #{_lambda_.5} parent=5 // pred_check_branch
      %1638 = sbr.rel (%p1636) target = $region80
    $region79: #{_lambda_.5} parent=5 // pred_region
      %s1639 = ssub.s32 %s19, 2
      // Predicated region
      $region81: #{_lambda_.5} parent=79 // pred_check
        %p1640 = pneg %p326
      $region82: #{_lambda_.5} parent=79 // pred_check_branch
        %1642 = sbr.rel (%p1640) target = $region84
      $region83: #{_lambda_.5} parent=79 // pred_region
        %p1643 = scmp.lt.s32.totalorder %s25, 1
        %s1644 = scalar_select %p1643, %s25, 1
        %s1645 = smul.addr %s1644, 3
        %s1646 = smul.addr %s1645, 8
        %s1647 = scalar_lea.vmem %s13, %s1646
      $region84: #{_lambda_.5} parent=79 // pred_fallthru
        _
    $region80: #{_lambda_.5} parent=5 // pred_fallthru
      _
  $region6: #{_lambda_.5} parent=0 // loop_footer
    %s23 = sadd.s32 1, %s19
  $region7: #{_lambda_.5} parent=0 // loop_footer_branch
    %18 = sbr.rel target = $region3
  $region8: #{_lambda_.5} parent=0 // loop_exit
    _

// kernel: _lambda_.6
$region0: #{_lambda_.6}
  #allocation0 [shape = 'u32[]', space=smem, size = 0x4, offset = 0x4, fixed_abs, tag = 'smem constant byte address 0x4 - core index']
  #allocation1 [shape = 'u32[72,128]{1,0:T(1,128)}', space=vmem, size = 0x9000, scoped, tag = 'internal scratch']
  #allocation2 [shape = 'f32[18,32]{1,0:T(8,128)}', space=vmem, size = 0x3000, scoped, tag = 'scratch operand']
  %s0 = inlined_call_operand.vmem [shape: f32[2,18,32], index: 0, kind: input, shape index: {}]
  %s1 = inlined_call_operand.vmem [shape: bf16[32,96], index: 1, kind: input, shape index: {}]
  %s2 = inlined_call_operand.vmem [shape: f32[1,96], index: 2, kind: input, shape index: {}]
  %s3 = inlined_call_operand.vmem [shape: bf16[32,32], index: 3, kind: input, shape index: {}]
  %s4 = inlined_call_operand.vmem [shape: f32[1,32], index: 4, kind: input, shape index: {}]
  %s5 = inlined_call_operand.vmem [shape: f32[1,32], index: 5, kind: input, shape index: {}]
  %s6 = inlined_call_operand.vmem [shape: f32[1,32], index: 6, kind: input, shape index: {}]
  %s7 = inlined_call_operand.vmem [shape: bf16[32,64], index: 7, kind: input, shape index: {}]
  %s8 = inlined_call_operand.vmem [shape: f32[1,64], index: 8, kind: input, shape index: {}]
  %s9 = inlined_call_operand.vmem [shape: bf16[64,32], index: 9, kind: input, shape index: {}]
  %s10 = inlined_call_operand.vmem [shape: f32[1,32], index: 10, kind: input, shape index: {}]
  %s11 = inlined_call_operand.vmem [shape: f32[1,32], index: 11, kind: input, shape index: {}]
  %s12 = inlined_call_operand.vmem [shape: f32[1,32], index: 12, kind: input, shape index: {}]
  %s13 = inlined_call_operand.vmem [shape: f32[1,32], index: 13, kind: input, shape index: {}]
  %s14 = inlined_call_operand.vmem [shape: f32[1,32], index: 14, kind: input, shape index: {}]
  %s15 = inlined_call_operand.vmem [shape: f32[2,18,32], index: 15, kind: output, shape index: {}]
  %s16 = sld [smem:[#allocation0]]
  $region93: #{_lambda_.6} parent=0
    _
  %s18 = ssub.s32 1, %s16
  %s19 = scalar_select 0, %s18, %s16
  loop: start=0, step=1, limit=4
  $region2: #{_lambda_.6} parent=0 // loop_pre_header
    _
  $region3: #{_lambda_.6} parent=0 // loop_header
    %s21 = sphi 0, %s25
    %p22 = scmp.ge.s32.totalorder %s21, 4
    %s31 = sphi 0, %s33
    %s34 = sphi 0, %s31
    %s35 = sphi 0, %s34
    %s51 = sphi 0, %s35
    %s55 = sphi 0, %s55
    %s57 = sphi 0, %s55
    %s58 = sphi 0, %s57
    %s72 = sphi 0, %s58
    %s76 = sphi 0, %s76
    %s78 = sphi 0, %s76
    %s79 = sphi 0, %s78
    %s93 = sphi 0, %s79
    %s97 = sphi 0, %s97
    %s99 = sphi 0, %s97
    %s100 = sphi 0, %s99
    %s114 = sphi 0, %s100
    %s118 = sphi 0, %s118
    %s120 = sphi 0, %s118
    %s121 = sphi 0, %s120
    %s135 = sphi 0, %s121
    %s139 = sphi 0, %s139
    %s141 = sphi 0, %s139
    %s142 = sphi 0, %s141
    %s156 = sphi 0, %s142
    %s160 = sphi 0, %s160
    %s162 = sphi 0, %s160
    %s163 = sphi 0, %s162
    %s177 = sphi 0, %s163
    %s181 = sphi 0, %s181
    %s183 = sphi 0, %s181
    %s184 = sphi 0, %s183
    %s198 = sphi 0, %s184
    %s202 = sphi 0, %s202
    %s204 = sphi 0, %s202
    %s205 = sphi 0, %s204
    %s219 = sphi 0, %s205
    %s223 = sphi 0, %s223
    %s225 = sphi 0, %s223
    %s226 = sphi 0, %s225
    %s240 = sphi 0, %s226
    %s244 = sphi 0, %s244
    %s246 = sphi 0, %s244
    %s247 = sphi 0, %s246
    %s261 = sphi 0, %s247
    %s265 = sphi 0, %s265
    %s267 = sphi 0, %s265
    %s268 = sphi 0, %s267
    %s282 = sphi 0, %s268
    %s286 = sphi 0, %s286
    %s288 = sphi 0, %s286
    %s289 = sphi 0, %s288
    %s303 = sphi 0, %s289
    %s307 = sphi 0, %s307
    %s309 = sphi 0, %s307
    %s310 = sphi 0, %s309
    %s324 = sphi 0, %s310
    %s328 = sphi 0, %s328
    %s330 = sphi 0, %s328
    %s331 = sphi 0, %s330
    %s345 = sphi 0, %s331
    %s351 = sphi 0, %s353
    %s354 = sphi 0, %s351
    %s355 = sphi 0, %s354
    %s371 = sphi 0, %s355
  $region4: #{_lambda_.6} parent=0 // loop_header_branch
    %24 = sbr.rel (%p22) target = $region8
  $region5: #{_lambda_.6} parent=0 // loop_body
    %s26 = ssub.s32 %s21, 1
    %s27 = ssub.s32 %s21, 2
    %s28 = sadd.s32 %s21, 1
    %s29 = ssub.s32 %s21, %s28
    %p30 = scmp.eq.s32.totalorder %s29, 0
    %s32 = sadd.s32 %s31, 1
    %s33 = scalar_select %p30, %s31, %s32
    %p36 = pneg %p30
    %p37 = scmp.eq.s32.totalorder %s21, 1
    %p38 = por %p36, %p37
    %p39 = scmp.ne.s32.totalorder %s31, %s34
    %p40 = scmp.eq.s32.totalorder %s21, 0
    %p41 = por %p39, %p40
    %p42 = scmp.ne.s32.totalorder %s31, %s34
    %p43 = scmp.eq.s32.totalorder %s26, 1
    %p44 = por %p42, %p43
    %p45 = scmp.ne.s32.totalorder %s34, %s35
    %p46 = scmp.eq.s32.totalorder %s26, 0
    %p47 = por %p45, %p46
    %p48 = scmp.ne.s32.totalorder %s34, %s35
    %p49 = scmp.eq.s32.totalorder %s27, 1
    %p50 = por %p48, %p49
    %p52 = scmp.ne.s32.totalorder %s35, %s51
    %p53 = scmp.eq.s32.totalorder %s27, 0
    %p54 = por %p52, %p53
    %s56 = sadd.s32 %s55, 1
    %p59 = scmp.eq.s32.totalorder %s21, 1
    %p60 = scmp.ne.s32.totalorder %s55, %s57
    %p61 = scmp.eq.s32.totalorder %s21, 0
    %p62 = por %p60, %p61
    %p63 = scmp.ne.s32.totalorder %s55, %s57
    %p64 = scmp.eq.s32.totalorder %s26, 1
    %p65 = por %p63, %p64
    %p66 = scmp.ne.s32.totalorder %s57, %s58
    %p67 = scmp.eq.s32.totalorder %s26, 0
    %p68 = por %p66, %p67
    %p69 = scmp.ne.s32.totalorder %s57, %s58
    %p70 = scmp.eq.s32.totalorder %s27, 1
    %p71 = por %p69, %p70
    %p73 = scmp.ne.s32.totalorder %s58, %s72
    %p74 = scmp.eq.s32.totalorder %s27, 0
    %p75 = por %p73, %p74
    %s77 = sadd.s32 %s76, 1
    %p80 = scmp.eq.s32.totalorder %s21, 1
    %p81 = scmp.ne.s32.totalorder %s76, %s78
    %p82 = scmp.eq.s32.totalorder %s21, 0
    %p83 = por %p81, %p82
    %p84 = scmp.ne.s32.totalorder %s76, %s78
    %p85 = scmp.eq.s32.totalorder %s26, 1
    %p86 = por %p84, %p85
    %p87 = scmp.ne.s32.totalorder %s78, %s79
    %p88 = scmp.eq.s32.totalorder %s26, 0
    %p89 = por %p87, %p88
    %p90 = scmp.ne.s32.totalorder %s78, %s79
    %p91 = scmp.eq.s32.totalorder %s27, 1
    %p92 = por %p90, %p91
    %p94 = scmp.ne.s32.totalorder %s79, %s93
    %p95 = scmp.eq.s32.totalorder %s27, 0
    %p96 = por %p94, %p95
    %s98 = sadd.s32 %s97, 1
    %p101 = scmp.eq.s32.totalorder %s21, 1
    %p102 = scmp.ne.s32.totalorder %s97, %s99
    %p103 = scmp.eq.s32.totalorder %s21, 0
    %p104 = por %p102, %p103
    %p105 = scmp.ne.s32.totalorder %s97, %s99
    %p106 = scmp.eq.s32.totalorder %s26, 1
    %p107 = por %p105, %p106
    %p108 = scmp.ne.s32.totalorder %s99, %s100
    %p109 = scmp.eq.s32.totalorder %s26, 0
    %p110 = por %p108, %p109
    %p111 = scmp.ne.s32.totalorder %s99, %s100
    %p112 = scmp.eq.s32.totalorder %s27, 1
    %p113 = por %p111, %p112
    %p115 = scmp.ne.s32.totalorder %s100, %s114
    %p116 = scmp.eq.s32.totalorder %s27, 0
    %p117 = por %p115, %p116
    %s119 = sadd.s32 %s118, 1
    %p122 = scmp.eq.s32.totalorder %s21, 1
    %p123 = scmp.ne.s32.totalorder %s118, %s120
    %p124 = scmp.eq.s32.totalorder %s21, 0
    %p125 = por %p123, %p124
    %p126 = scmp.ne.s32.totalorder %s118, %s120
    %p127 = scmp.eq.s32.totalorder %s26, 1
    %p128 = por %p126, %p127
    %p129 = scmp.ne.s32.totalorder %s120, %s121
    %p130 = scmp.eq.s32.totalorder %s26, 0
    %p131 = por %p129, %p130
    %p132 = scmp.ne.s32.totalorder %s120, %s121
    %p133 = scmp.eq.s32.totalorder %s27, 1
    %p134 = por %p132, %p133
    %p136 = scmp.ne.s32.totalorder %s121, %s135
    %p137 = scmp.eq.s32.totalorder %s27, 0
    %p138 = por %p136, %p137
    %s140 = sadd.s32 %s139, 1
    %p143 = scmp.eq.s32.totalorder %s21, 1
    %p144 = scmp.ne.s32.totalorder %s139, %s141
    %p145 = scmp.eq.s32.totalorder %s21, 0
    %p146 = por %p144, %p145
    %p147 = scmp.ne.s32.totalorder %s139, %s141
    %p148 = scmp.eq.s32.totalorder %s26, 1
    %p149 = por %p147, %p148
    %p150 = scmp.ne.s32.totalorder %s141, %s142
    %p151 = scmp.eq.s32.totalorder %s26, 0
    %p152 = por %p150, %p151
    %p153 = scmp.ne.s32.totalorder %s141, %s142
    %p154 = scmp.eq.s32.totalorder %s27, 1
    %p155 = por %p153, %p154
    %p157 = scmp.ne.s32.totalorder %s142, %s156
    %p158 = scmp.eq.s32.totalorder %s27, 0
    %p159 = por %p157, %p158
    %s161 = sadd.s32 %s160, 1
    %p164 = scmp.eq.s32.totalorder %s21, 1
    %p165 = scmp.ne.s32.totalorder %s160, %s162
    %p166 = scmp.eq.s32.totalorder %s21, 0
    %p167 = por %p165, %p166
    %p168 = scmp.ne.s32.totalorder %s160, %s162
    %p169 = scmp.eq.s32.totalorder %s26, 1
    %p170 = por %p168, %p169
    %p171 = scmp.ne.s32.totalorder %s162, %s163
    %p172 = scmp.eq.s32.totalorder %s26, 0
    %p173 = por %p171, %p172
    %p174 = scmp.ne.s32.totalorder %s162, %s163
    %p175 = scmp.eq.s32.totalorder %s27, 1
    %p176 = por %p174, %p175
    %p178 = scmp.ne.s32.totalorder %s163, %s177
    %p179 = scmp.eq.s32.totalorder %s27, 0
    %p180 = por %p178, %p179
    %s182 = sadd.s32 %s181, 1
    %p185 = scmp.eq.s32.totalorder %s21, 1
    %p186 = scmp.ne.s32.totalorder %s181, %s183
    %p187 = scmp.eq.s32.totalorder %s21, 0
    %p188 = por %p186, %p187
    %p189 = scmp.ne.s32.totalorder %s181, %s183
    %p190 = scmp.eq.s32.totalorder %s26, 1
    %p191 = por %p189, %p190
    %p192 = scmp.ne.s32.totalorder %s183, %s184
    %p193 = scmp.eq.s32.totalorder %s26, 0
    %p194 = por %p192, %p193
    %p195 = scmp.ne.s32.totalorder %s183, %s184
    %p196 = scmp.eq.s32.totalorder %s27, 1
    %p197 = por %p195, %p196
    %p199 = scmp.ne.s32.totalorder %s184, %s198
    %p200 = scmp.eq.s32.totalorder %s27, 0
    %p201 = por %p199, %p200
    %s203 = sadd.s32 %s202, 1
    %p206 = scmp.eq.s32.totalorder %s21, 1
    %p207 = scmp.ne.s32.totalorder %s202, %s204
    %p208 = scmp.eq.s32.totalorder %s21, 0
    %p209 = por %p207, %p208
    %p210 = scmp.ne.s32.totalorder %s202, %s204
    %p211 = scmp.eq.s32.totalorder %s26, 1
    %p212 = por %p210, %p211
    %p213 = scmp.ne.s32.totalorder %s204, %s205
    %p214 = scmp.eq.s32.totalorder %s26, 0
    %p215 = por %p213, %p214
    %p216 = scmp.ne.s32.totalorder %s204, %s205
    %p217 = scmp.eq.s32.totalorder %s27, 1
    %p218 = por %p216, %p217
    %p220 = scmp.ne.s32.totalorder %s205, %s219
    %p221 = scmp.eq.s32.totalorder %s27, 0
    %p222 = por %p220, %p221
    %s224 = sadd.s32 %s223, 1
    %p227 = scmp.eq.s32.totalorder %s21, 1
    %p228 = scmp.ne.s32.totalorder %s223, %s225
    %p229 = scmp.eq.s32.totalorder %s21, 0
    %p230 = por %p228, %p229
    %p231 = scmp.ne.s32.totalorder %s223, %s225
    %p232 = scmp.eq.s32.totalorder %s26, 1
    %p233 = por %p231, %p232
    %p234 = scmp.ne.s32.totalorder %s225, %s226
    %p235 = scmp.eq.s32.totalorder %s26, 0
    %p236 = por %p234, %p235
    %p237 = scmp.ne.s32.totalorder %s225, %s226
    %p238 = scmp.eq.s32.totalorder %s27, 1
    %p239 = por %p237, %p238
    %p241 = scmp.ne.s32.totalorder %s226, %s240
    %p242 = scmp.eq.s32.totalorder %s27, 0
    %p243 = por %p241, %p242
    %s245 = sadd.s32 %s244, 1
    %p248 = scmp.eq.s32.totalorder %s21, 1
    %p249 = scmp.ne.s32.totalorder %s244, %s246
    %p250 = scmp.eq.s32.totalorder %s21, 0
    %p251 = por %p249, %p250
    %p252 = scmp.ne.s32.totalorder %s244, %s246
    %p253 = scmp.eq.s32.totalorder %s26, 1
    %p254 = por %p252, %p253
    %p255 = scmp.ne.s32.totalorder %s246, %s247
    %p256 = scmp.eq.s32.totalorder %s26, 0
    %p257 = por %p255, %p256
    %p258 = scmp.ne.s32.totalorder %s246, %s247
    %p259 = scmp.eq.s32.totalorder %s27, 1
    %p260 = por %p258, %p259
    %p262 = scmp.ne.s32.totalorder %s247, %s261
    %p263 = scmp.eq.s32.totalorder %s27, 0
    %p264 = por %p262, %p263
    %s266 = sadd.s32 %s265, 1
    %p269 = scmp.eq.s32.totalorder %s21, 1
    %p270 = scmp.ne.s32.totalorder %s265, %s267
    %p271 = scmp.eq.s32.totalorder %s21, 0
    %p272 = por %p270, %p271
    %p273 = scmp.ne.s32.totalorder %s265, %s267
    %p274 = scmp.eq.s32.totalorder %s26, 1
    %p275 = por %p273, %p274
    %p276 = scmp.ne.s32.totalorder %s267, %s268
    %p277 = scmp.eq.s32.totalorder %s26, 0
    %p278 = por %p276, %p277
    %p279 = scmp.ne.s32.totalorder %s267, %s268
    %p280 = scmp.eq.s32.totalorder %s27, 1
    %p281 = por %p279, %p280
    %p283 = scmp.ne.s32.totalorder %s268, %s282
    %p284 = scmp.eq.s32.totalorder %s27, 0
    %p285 = por %p283, %p284
    %s287 = sadd.s32 %s286, 1
    %p290 = scmp.eq.s32.totalorder %s21, 1
    %p291 = scmp.ne.s32.totalorder %s286, %s288
    %p292 = scmp.eq.s32.totalorder %s21, 0
    %p293 = por %p291, %p292
    %p294 = scmp.ne.s32.totalorder %s286, %s288
    %p295 = scmp.eq.s32.totalorder %s26, 1
    %p296 = por %p294, %p295
    %p297 = scmp.ne.s32.totalorder %s288, %s289
    %p298 = scmp.eq.s32.totalorder %s26, 0
    %p299 = por %p297, %p298
    %p300 = scmp.ne.s32.totalorder %s288, %s289
    %p301 = scmp.eq.s32.totalorder %s27, 1
    %p302 = por %p300, %p301
    %p304 = scmp.ne.s32.totalorder %s289, %s303
    %p305 = scmp.eq.s32.totalorder %s27, 0
    %p306 = por %p304, %p305
    %s308 = sadd.s32 %s307, 1
    %p311 = scmp.eq.s32.totalorder %s21, 1
    %p312 = scmp.ne.s32.totalorder %s307, %s309
    %p313 = scmp.eq.s32.totalorder %s21, 0
    %p314 = por %p312, %p313
    %p315 = scmp.ne.s32.totalorder %s307, %s309
    %p316 = scmp.eq.s32.totalorder %s26, 1
    %p317 = por %p315, %p316
    %p318 = scmp.ne.s32.totalorder %s309, %s310
    %p319 = scmp.eq.s32.totalorder %s26, 0
    %p320 = por %p318, %p319
    %p321 = scmp.ne.s32.totalorder %s309, %s310
    %p322 = scmp.eq.s32.totalorder %s27, 1
    %p323 = por %p321, %p322
    %p325 = scmp.ne.s32.totalorder %s310, %s324
    %p326 = scmp.eq.s32.totalorder %s27, 0
    %p327 = por %p325, %p326
    %s329 = sadd.s32 %s328, 1
    %p332 = scmp.eq.s32.totalorder %s21, 1
    %p333 = scmp.ne.s32.totalorder %s328, %s330
    %p334 = scmp.eq.s32.totalorder %s21, 0
    %p335 = por %p333, %p334
    %p336 = scmp.ne.s32.totalorder %s328, %s330
    %p337 = scmp.eq.s32.totalorder %s26, 1
    %p338 = por %p336, %p337
    %p339 = scmp.ne.s32.totalorder %s330, %s331
    %p340 = scmp.eq.s32.totalorder %s26, 0
    %p341 = por %p339, %p340
    %p342 = scmp.ne.s32.totalorder %s330, %s331
    %p343 = scmp.eq.s32.totalorder %s27, 1
    %p344 = por %p342, %p343
    %p346 = scmp.ne.s32.totalorder %s331, %s345
    %p347 = scmp.eq.s32.totalorder %s27, 0
    %p348 = por %p346, %p347
    %s349 = ssub.s32 %s21, %s28
    %p350 = scmp.eq.s32.totalorder %s349, 0
    %s352 = sadd.s32 %s351, 1
    %s353 = scalar_select %p350, %s351, %s352
    %p356 = pneg %p350
    %p357 = scmp.eq.s32.totalorder %s21, 1
    %p358 = por %p356, %p357
    %p359 = scmp.ne.s32.totalorder %s351, %s354
    %p360 = scmp.eq.s32.totalorder %s21, 0
    %p361 = por %p359, %p360
    %p362 = scmp.ne.s32.totalorder %s351, %s354
    %p363 = scmp.eq.s32.totalorder %s26, 1
    %p364 = por %p362, %p363
    %p365 = scmp.ne.s32.totalorder %s354, %s355
    %p366 = scmp.eq.s32.totalorder %s26, 0
    %p367 = por %p365, %p366
    %p368 = scmp.ne.s32.totalorder %s354, %s355
    %p369 = scmp.eq.s32.totalorder %s27, 1
    %p370 = por %p368, %p369
    %p372 = scmp.ne.s32.totalorder %s355, %s371
    %p373 = scmp.eq.s32.totalorder %s27, 0
    %p374 = por %p372, %p373
    %p375 = scmp.le.s32.totalorder 1, %s21
    %p376 = scmp.lt.s32.totalorder %s21, 3
    %p377 = pnand %p375, %p376
    %p378 = pneg %p377
    // Predicated region
    $region9: #{_lambda_.6} parent=5 // pred_check
      _
    $region10: #{_lambda_.6} parent=5 // pred_check_branch
      %380 = sbr.rel (%p377) target = $region12
    $region11: #{_lambda_.6} parent=5 // pred_region
      %s381 = ssub.s32 %s21, 1
      // Predicated region
      $region13: #{_lambda_.6} parent=11 // pred_check
        %p382 = pneg %p68
      $region14: #{_lambda_.6} parent=11 // pred_check_branch
        %384 = sbr.rel (%p382) target = $region16
      $region15: #{_lambda_.6} parent=11 // pred_region
        _
      $region16: #{_lambda_.6} parent=11 // pred_fallthru
        _
      // Predicated region
      $region17: #{_lambda_.6} parent=11 // pred_check
        %p385 = pneg %p89
      $region18: #{_lambda_.6} parent=11 // pred_check_branch
        %387 = sbr.rel (%p385) target = $region20
      $region19: #{_lambda_.6} parent=11 // pred_region
        _
      $region20: #{_lambda_.6} parent=11 // pred_fallthru
        _
      // Predicated region
      $region21: #{_lambda_.6} parent=11 // pred_check
        %p388 = pneg %p110
      $region22: #{_lambda_.6} parent=11 // pred_check_branch
        %390 = sbr.rel (%p388) target = $region24
      $region23: #{_lambda_.6} parent=11 // pred_region
        _
      $region24: #{_lambda_.6} parent=11 // pred_fallthru
        _
      // Predicated region
      $region25: #{_lambda_.6} parent=11 // pred_check
        %p391 = pneg %p131
      $region26: #{_lambda_.6} parent=11 // pred_check_branch
        %393 = sbr.rel (%p391) target = $region28
      $region27: #{_lambda_.6} parent=11 // pred_region
        _
      $region28: #{_lambda_.6} parent=11 // pred_fallthru
        _
      // Predicated region
      $region29: #{_lambda_.6} parent=11 // pred_check
        %p394 = pneg %p152
      $region30: #{_lambda_.6} parent=11 // pred_check_branch
        %396 = sbr.rel (%p394) target = $region32
      $region31: #{_lambda_.6} parent=11 // pred_region
        _
      $region32: #{_lambda_.6} parent=11 // pred_fallthru
        _
      // Predicated region
      $region33: #{_lambda_.6} parent=11 // pred_check
        %p397 = pneg %p173
      $region34: #{_lambda_.6} parent=11 // pred_check_branch
        %399 = sbr.rel (%p397) target = $region36
      $region35: #{_lambda_.6} parent=11 // pred_region
        _
      $region36: #{_lambda_.6} parent=11 // pred_fallthru
        _
      // Predicated region
      $region37: #{_lambda_.6} parent=11 // pred_check
        %p400 = pneg %p194
      $region38: #{_lambda_.6} parent=11 // pred_check_branch
        %402 = sbr.rel (%p400) target = $region40
      $region39: #{_lambda_.6} parent=11 // pred_region
        _
      $region40: #{_lambda_.6} parent=11 // pred_fallthru
        _
      // Predicated region
      $region41: #{_lambda_.6} parent=11 // pred_check
        %p403 = pneg %p215
      $region42: #{_lambda_.6} parent=11 // pred_check_branch
        %405 = sbr.rel (%p403) target = $region44
      $region43: #{_lambda_.6} parent=11 // pred_region
        _
      $region44: #{_lambda_.6} parent=11 // pred_fallthru
        _
      // Predicated region
      $region45: #{_lambda_.6} parent=11 // pred_check
        %p406 = pneg %p236
      $region46: #{_lambda_.6} parent=11 // pred_check_branch
        %408 = sbr.rel (%p406) target = $region48
      $region47: #{_lambda_.6} parent=11 // pred_region
        _
      $region48: #{_lambda_.6} parent=11 // pred_fallthru
        _
      // Predicated region
      $region49: #{_lambda_.6} parent=11 // pred_check
        %p409 = pneg %p257
      $region50: #{_lambda_.6} parent=11 // pred_check_branch
        %411 = sbr.rel (%p409) target = $region52
      $region51: #{_lambda_.6} parent=11 // pred_region
        _
      $region52: #{_lambda_.6} parent=11 // pred_fallthru
        _
      // Predicated region
      $region53: #{_lambda_.6} parent=11 // pred_check
        %p412 = pneg %p278
      $region54: #{_lambda_.6} parent=11 // pred_check_branch
        %414 = sbr.rel (%p412) target = $region56
      $region55: #{_lambda_.6} parent=11 // pred_region
        _
      $region56: #{_lambda_.6} parent=11 // pred_fallthru
        _
      // Predicated region
      $region57: #{_lambda_.6} parent=11 // pred_check
        %p415 = pneg %p299
      $region58: #{_lambda_.6} parent=11 // pred_check_branch
        %417 = sbr.rel (%p415) target = $region60
      $region59: #{_lambda_.6} parent=11 // pred_region
        _
      $region60: #{_lambda_.6} parent=11 // pred_fallthru
        _
      // Predicated region
      $region61: #{_lambda_.6} parent=11 // pred_check
        %p418 = pneg %p320
      $region62: #{_lambda_.6} parent=11 // pred_check_branch
        %420 = sbr.rel (%p418) target = $region64
      $region63: #{_lambda_.6} parent=11 // pred_region
        _
      $region64: #{_lambda_.6} parent=11 // pred_fallthru
        _
      // Predicated region
      $region65: #{_lambda_.6} parent=11 // pred_check
        %p421 = pneg %p341
      $region66: #{_lambda_.6} parent=11 // pred_check_branch
        %423 = sbr.rel (%p421) target = $region68
      $region67: #{_lambda_.6} parent=11 // pred_region
        _
      $region68: #{_lambda_.6} parent=11 // pred_fallthru
        _
    $region12: #{_lambda_.6} parent=5 // pred_fallthru
      _
    %p424 = scmp.lt.s32.totalorder %s21, 2
    // Predicated region
    $region69: #{_lambda_.6} parent=5 // pred_check
      %p425 = pneg %p424
    $region70: #{_lambda_.6} parent=5 // pred_check_branch
      %427 = sbr.rel (%p425) target = $region72
    $region71: #{_lambda_.6} parent=5 // pred_region
      // Predicated region
      $region73: #{_lambda_.6} parent=71 // pred_check
        %p428 = pneg %p41
      $region74: #{_lambda_.6} parent=71 // pred_check_branch
        %430 = sbr.rel (%p428) target = $region76
      $region75: #{_lambda_.6} parent=71 // pred_region
        %p431 = scmp.lt.s32.totalorder %s21, 1
        %s432 = scalar_select %p431, %s21, 1
        %s433 = smul.addr %s432, 3
        %s434 = smul.addr %s433, 8
        %s435 = scalar_lea.vmem %s0, %s434
      $region76: #{_lambda_.6} parent=71 // pred_fallthru
        _
    $region72: #{_lambda_.6} parent=5 // pred_fallthru
      _
    %p436 = scmp.le.s32.totalorder 1, %s21
    %p437 = scmp.lt.s32.totalorder %s21, 3
    %p438 = pnand %p436, %p437
    %p439 = pneg %p438
    // Predicated region
    $region77: #{_lambda_.6} parent=5 // pred_check
      _
    $region78: #{_lambda_.6} parent=5 // pred_check_branch
      %441 = sbr.rel (%p438) target = $region80
    $region79: #{_lambda_.6} parent=5 // pred_region
      %s442 = ssub.s32 %s21, 1
      %p443 = scmp.lt.s32.totalorder %s26, 1
      %s444 = scalar_select %p443, %s26, 1
      %s445 = smul.addr %s444, 3
      %s446 = smul.addr %s445, 8
      %s447 = scalar_lea.vmem %s0, %s446
      %p448 = pneg %p47
      %p449 = pneg %p44
      %p450 = pneg %p68
      %p451 = pneg %p65
      %p452 = pneg %p89
      %p453 = pneg %p86
      %p454 = pneg %p110
      %p455 = pneg %p107
      %p456 = pneg %p131
      %p457 = pneg %p128
      %p458 = pneg %p152
      %p459 = pneg %p149
      %p460 = pneg %p173
      %p461 = pneg %p170
      %p462 = pneg %p194
      %p463 = pneg %p191
      %p464 = pneg %p215
      %p465 = pneg %p212
      %p466 = pneg %p236
      %p467 = pneg %p233
      %p468 = pneg %p257
      %p469 = pneg %p254
      %p470 = pneg %p278
      %p471 = pneg %p275
      %p472 = pneg %p299
      %p473 = pneg %p296
      %p474 = pneg %p320
      %p475 = pneg %p317
      %p476 = pneg %p341
      %p477 = pneg %p338
      %p478 = pneg %p367
      %p479 = pneg %p364
      %p480 = scmp.lt.s32.totalorder %s26, 1
      %s481 = scalar_select %p480, %s26, 1
      %s482 = smul.addr %s481, 3
      %s483 = smul.addr %s482, 8
      %s484 = scalar_lea.vmem %s15, %s483
      %p485 = scmp.lt.s32.totalorder %s26, 1
      %s486 = scalar_select %p485, %s26, 1
      %s487 = smul.addr %s486, 3
      %s488 = smul.addr %s487, 8
      %s489 = scalar_lea.vmem %s0, %s488
      %p490 = scmp.lt.s32.totalorder %s26, 1
      %s491 = scalar_select %p490, %s26, 1
      %s492 = smul.addr %s491, 3
      %s493 = smul.addr %s492, 8
      %s494 = scalar_lea.vmem %s15, %s493
      %v496 = vld [vmem:[%s489] sm:$0xff]
      %v497 = vld [vmem:[%s489 + $0x8] sm:$0xff]
      %v498 = vld [vmem:[%s489 + $0x10] sm:$0x3]
      %v499 = vpack.c.bf16 %v497, %v496
      %v500 = vpack.c.bf16 %v498, %v498
      %v501 = vld [vmem:[%s1] sm:$0xf]
      %v502 = vld [vmem:[%s1 + $0x4] sm:$0xf]
      %v503 = vld [vmem:[%s1 + $0x8] sm:$0xf]
      %v504 = vld [vmem:[%s1 + $0xc] sm:$0xf]
      %v505 = vld [vmem:[%s2] sm:$0x1]
      %v507 = vperm.slane %v505, 0
      %v513 = vunpack.c.l.b16 %v501
      %v514 = vunpack.c.l.b16 %v502
      %v515 = vunpack.c.l.b16 %v503
      %v516 = vunpack.c.l.b16 %v504
      %v517 = vpack.c.b16 %v514, %v513
      %v518 = vpack.c.b16 %v516, %v515
      %vm521 = vcmask 261120
      %v523 = vsel %vm521, %v499, 0
      %v526 = vsel %vm521, %v500, 0
      %528 = vmatpush.bf16.msra.mxu0 0
      %529 = vmatpush.bf16.msra.mxu0 0
      %530 = vmatpush.bf16.msra.mxu0 0
      %531 = vmatpush.bf16.msra.mxu0 0
      %532 = vmatpush.bf16.msra.mxu0 0
      %533 = vmatpush.bf16.msra.mxu0 0
      %534 = vmatpush.bf16.msra.mxu0 %v518
      %535 = vmatpush.bf16.msra.mxu0 %v517
      %536 = vmatmul.bf16.gmra.mxu0 %v523
      %v537 = vpop.f32.mrf.mxu0
      %v538 = vadd.f32 %v507, %v537
      %v539 = vpop.f32.mrf.mxu0
      %v540 = vadd.f32 %v507, %v539
      %541 = vmatmul.bf16.gmra.mxu0 %v526
      %v542 = vpop.f32.mrf.mxu0
      %v543 = vadd.f32 %v507, %v542
      %v544 = vpop.f32.mrf.mxu0
      %545 = vdwg.mxu0
      %549 = vrot.lane.b32.xlu0 %v538, 96
      %v550 = vpop.permute.xlu0 %549
      %551 = vrot.lane.b32.xlu0 %v540, 96
      %v552 = vpop.permute.xlu0 %551
      %553 = vrot.lane.b32.xlu0 %v543, 96
      %v554 = vpop.permute.xlu0 %553
      %558 = vxpose.xlu0.b32.start [1/16] %v550, 128
      %559 = vxpose.xlu0.b32.cont [2/16] %v552, 128
      %560 = vxpose.xlu0.b32.cont [3/16] %v554, 128
      %561 = vxpose.xlu0.b32.cont [4/16] 0.0, 128
      %562 = vxpose.xlu0.b32.cont [5/16] 0.0, 128
      %563 = vxpose.xlu0.b32.cont [6/16] 0.0, 128
      %564 = vxpose.xlu0.b32.cont [7/16] 0.0, 128
      %565 = vxpose.xlu0.b32.cont [8/16] 0.0, 128
      %566 = vxpose.xlu0.b32.cont [9/16] 0.0, 128
      %567 = vxpose.xlu0.b32.cont [10/16] 0.0, 128
      %568 = vxpose.xlu0.b32.cont [11/16] 0.0, 128
      %569 = vxpose.xlu0.b32.cont [12/16] 0.0, 128
      %570 = vxpose.xlu0.b32.cont [13/16] 0.0, 128
      %571 = vxpose.xlu0.b32.cont [14/16] 0.0, 128
      %572 = vxpose.xlu0.b32.cont [15/16] 0.0, 128
      %573 = vxpose.xlu0.b32.end [16/16] 0.0, 128
      %v574 = vpop.trf.xlu0
      %v575 = vpop.trf.xlu0
      %v576 = vpop.trf.xlu0
      %v577 = vpop.trf.xlu0
      %v578 = vpop.trf.xlu0
      %v579 = vpop.trf.xlu0
      %v580 = vpop.trf.xlu0
      %v581 = vpop.trf.xlu0
      %v582 = vpop.trf.xlu0
      %v583 = vpop.trf.xlu0
      %v584 = vpop.trf.xlu0
      %v585 = vpop.trf.xlu0
      %v586 = vpop.trf.xlu0
      %v587 = vpop.trf.xlu0
      %v588 = vpop.trf.xlu0
      %v589 = vpop.trf.xlu0
      %v590 = vpack.c.bf16 %v540, %v538
      %v591 = vpack.c.bf16 %v543, %v543
      %v592 = vpack.c.bf16 %v574, %v574
      %vm593 = vcmask 64512
      %v595 = vsel %vm593, %v590, 0
      %v598 = vsel %vm593, %v591, 0
      %vm600 = vcmask 1043456
      %v602 = vsel %vm600, %v592, 0
      %604 = vmatpush.bf16.msra.mxu0 0
      %605 = vmatpush.bf16.msra.mxu0 0
      %606 = vmatpush.bf16.msra.mxu0 0
      %607 = vmatpush.bf16.msra.mxu0 0
      %608 = vmatpush.bf16.msra.mxu0 0
      %609 = vmatpush.bf16.msra.mxu0 0
      %610 = vmatpush.bf16.msra.mxu0 0
      %611 = vmatpush.bf16.msra.mxu0 %v602
      %612 = vmatmul.bf16.gmra.mxu0 %v595
      %v613 = vpop.f32.mrf.mxu0
      %v614 = vadd.f32 0.0, %v613
      %v615 = vpop.f32.mrf.mxu0
      %v616 = vadd.f32 0.0, %v615
      %617 = vmatmul.bf16.gmra.mxu0 %v598
      %v618 = vpop.f32.mrf.mxu0
      %v619 = vadd.f32 0.0, %v618
      %v620 = vpop.f32.mrf.mxu0
      %621 = vdwg.mxu0
      %v622 = vmul.f32 %v614, 0.35355338
      %v623 = vmul.f32 %v616, 0.35355338
      %v624 = vmul.f32 %v619, 0.35355338
      %vm625 = vcmask 146432
      %v626 = vsel %vm625, %v622, -inf
      %627 = vmax.xlane.f32.xlu0 %v626
      %v628 = vpop.xlane.xlu0 %627
      %v629 = vsel %vm625, %v623, -inf
      %630 = vmax.xlane.f32.xlu0 %v629
      %v631 = vpop.xlane.xlu0 %630
      %vm632 = vcmask 140288
      %v633 = vsel %vm632, %v624, -inf
      %634 = vmax.xlane.f32.xlu0 %v633
      %v635 = vpop.xlane.xlu0 %634
      %v636 = vsub.f32 %v622, %v628
      %v637 = vsub.f32 %v623, %v631
      %v638 = vsub.f32 %v624, %v635
      %v639 = vmul.f32 %v636, 1.442695
      %v640 = vpow.pop %v639
      %v641 = vmul.f32 %v637, 1.442695
      %v642 = vpow.pop %v641
      %v643 = vmul.f32 %v638, 1.442695
      %v644 = vpow.pop %v643
      %v645 = vsel %vm625, %v640, 0.0
      %646 = vadd.xlane.f32.xlu0 %v645
      %v647 = vpop.xlane.xlu0 %646
      %v648 = vsel %vm625, %v642, 0.0
      %649 = vadd.xlane.f32.xlu0 %v648
      %v650 = vpop.xlane.xlu0 %649
      %v651 = vsel %vm632, %v644, 0.0
      %652 = vadd.xlane.f32.xlu0 %v651
      %v653 = vpop.xlane.xlu0 %652
      %v654 = vrcp.pop %v647
      %v655 = vmul.f32 %v647, %v654
      %v656 = vsub.f32 1.0, %v655
      %v657 = vmul.f32 %v654, %v656
      %v658 = vadd.f32 %v654, %v657
      %vm659 = vweird.f32 %v647
      %vm660 = vweird.f32 %v654
      %vm661 = vmor %vm659, %vm660
      %v662 = vsel %vm661, %v654, %v658
      %v663 = vand.u32 2147483647, %v647
      %vm664 = vcmp.eq.f32.partialorder %v663, 8.507059e+37
      %v665 = vand.u32 %v647, 2147483648
      %v666 = vor.u32 1.1754944e-38, %v665
      %v667 = vsel %vm664, %v666, %v662
      %v668 = vmul.f32 %v640, %v667
      %v669 = vrcp.pop %v650
      %v670 = vmul.f32 %v650, %v669
      %v671 = vsub.f32 1.0, %v670
      %v672 = vmul.f32 %v669, %v671
      %v673 = vadd.f32 %v669, %v672
      %vm674 = vweird.f32 %v650
      %vm675 = vweird.f32 %v669
      %vm676 = vmor %vm674, %vm675
      %v677 = vsel %vm676, %v669, %v673
      %v678 = vand.u32 2147483647, %v650
      %vm679 = vcmp.eq.f32.partialorder %v678, 8.507059e+37
      %v680 = vand.u32 %v650, 2147483648
      %v681 = vor.u32 1.1754944e-38, %v680
      %v682 = vsel %vm679, %v681, %v677
      %v683 = vmul.f32 %v642, %v682
      %v684 = vrcp.pop %v653
      %v685 = vmul.f32 %v653, %v684
      %v686 = vsub.f32 1.0, %v685
      %v687 = vmul.f32 %v684, %v686
      %v688 = vadd.f32 %v684, %v687
      %vm689 = vweird.f32 %v653
      %vm690 = vweird.f32 %v684
      %vm691 = vmor %vm689, %vm690
      %v692 = vsel %vm691, %v684, %v688
      %v693 = vand.u32 2147483647, %v653
      %vm694 = vcmp.eq.f32.partialorder %v693, 8.507059e+37
      %v695 = vand.u32 %v653, 2147483648
      %v696 = vor.u32 1.1754944e-38, %v695
      %v697 = vsel %vm694, %v696, %v692
      %v698 = vmul.f32 %v644, %v697
      %v699 = vpack.c.bf16 %v683, %v668
      %v700 = vpack.c.bf16 %v698, %v698
      %703 = vrot.lane.b32.xlu0 %v590, 64
      %v704 = vpop.permute.xlu0 %703
      %705 = vrot.lane.b32.xlu0 %v591, 64
      %v706 = vpop.permute.xlu0 %705
      %v709 = vsel %vm625, %v699, 0
      %v712 = vsel %vm625, %v700, 0
      %vm714 = vcmask 1040384
      %v716 = vsel %vm714, %v706, 0
      %718 = vmatpush.bf16.msra.mxu0 0
      %719 = vmatpush.bf16.msra.mxu0 0
      %720 = vmatpush.bf16.msra.mxu0 0
      %721 = vmatpush.bf16.msra.mxu0 0
      %722 = vmatpush.bf16.msra.mxu0 0
      %723 = vmatpush.bf16.msra.mxu0 0
      %724 = vmatpush.bf16.msra.mxu0 %v716
      %725 = vmatpush.bf16.msra.mxu0 %v704
      %726 = vmatmul.bf16.gmra.mxu0 %v709
      %v727 = vpop.f32.mrf.mxu0
      %v728 = vadd.f32 0.0, %v727
      %v729 = vpop.f32.mrf.mxu0
      %v730 = vadd.f32 0.0, %v729
      %731 = vmatmul.bf16.gmra.mxu0 %v712
      %v732 = vpop.f32.mrf.mxu0
      %v733 = vadd.f32 0.0, %v732
      %v734 = vpop.f32.mrf.mxu0
      %735 = vdwg.mxu0
      %736 = vst.msk [vmem:[#allocation2] sm:$0xff] %vm593, %v728
      %737 = vst.msk [vmem:[#allocation2 + $0x8] sm:$0xff] %vm593, %v730
      %vm738 = vcmask 58368
      %739 = vst.msk [vmem:[#allocation2 + $0x10] sm:$0x3] %vm738, %v733
      %v740 = vpack.c.bf16 %v575, %v575
      %741 = vrot.lane.b32.xlu0 %v590, 120
      %v742 = vpop.permute.xlu0 %741
      %743 = vrot.lane.b32.xlu0 %v591, 120
      %v744 = vpop.permute.xlu0 %743
      %v746 = vsel %vm593, %v742, 0
      %v749 = vsel %vm593, %v744, 0
      %v752 = vsel %vm600, %v740, 0
      %754 = vmatpush.bf16.msra.mxu0 0
      %755 = vmatpush.bf16.msra.mxu0 0
      %756 = vmatpush.bf16.msra.mxu0 0
      %757 = vmatpush.bf16.msra.mxu0 0
      %758 = vmatpush.bf16.msra.mxu0 0
      %759 = vmatpush.bf16.msra.mxu0 0
      %760 = vmatpush.bf16.msra.mxu0 0
      %761 = vmatpush.bf16.msra.mxu0 %v752
      %762 = vmatmul.bf16.gmra.mxu0 %v746
      %v763 = vpop.f32.mrf.mxu0
      %v764 = vadd.f32 0.0, %v763
      %v765 = vpop.f32.mrf.mxu0
      %v766 = vadd.f32 0.0, %v765
      %767 = vmatmul.bf16.gmra.mxu0 %v749
      %v768 = vpop.f32.mrf.mxu0
      %v769 = vadd.f32 0.0, %v768
      %v770 = vpop.f32.mrf.mxu0
      %771 = vdwg.mxu0
      %v772 = vmul.f32 %v764, 0.35355338
      %v773 = vmul.f32 %v766, 0.35355338
      %v774 = vmul.f32 %v769, 0.35355338
      %v775 = vsel %vm625, %v772, -inf
      %776 = vmax.xlane.f32.xlu0 %v775
      %v777 = vpop.xlane.xlu0 %776
      %v778 = vsel %vm625, %v773, -inf
      %779 = vmax.xlane.f32.xlu0 %v778
      %v780 = vpop.xlane.xlu0 %779
      %v781 = vsel %vm632, %v774, -inf
      %782 = vmax.xlane.f32.xlu0 %v781
      %v783 = vpop.xlane.xlu0 %782
      %v784 = vsub.f32 %v772, %v777
      %v785 = vsub.f32 %v773, %v780
      %v786 = vsub.f32 %v774, %v783
      %v787 = vmul.f32 %v784, 1.442695
      %v788 = vpow.pop %v787
      %v789 = vmul.f32 %v785, 1.442695
      %v790 = vpow.pop %v789
      %v791 = vmul.f32 %v786, 1.442695
      %v792 = vpow.pop %v791
      %v793 = vsel %vm625, %v788, 0.0
      %794 = vadd.xlane.f32.xlu0 %v793
      %v795 = vpop.xlane.xlu0 %794
      %v796 = vsel %vm625, %v790, 0.0
      %797 = vadd.xlane.f32.xlu0 %v796
      %v798 = vpop.xlane.xlu0 %797
      %v799 = vsel %vm632, %v792, 0.0
      %800 = vadd.xlane.f32.xlu0 %v799
      %v801 = vpop.xlane.xlu0 %800
      %v802 = vrcp.pop %v795
      %v803 = vmul.f32 %v795, %v802
      %v804 = vsub.f32 1.0, %v803
      %v805 = vmul.f32 %v802, %v804
      %v806 = vadd.f32 %v802, %v805
      %vm807 = vweird.f32 %v795
      %vm808 = vweird.f32 %v802
      %vm809 = vmor %vm807, %vm808
      %v810 = vsel %vm809, %v802, %v806
      %v811 = vand.u32 2147483647, %v795
      %vm812 = vcmp.eq.f32.partialorder %v811, 8.507059e+37
      %v813 = vand.u32 %v795, 2147483648
      %v814 = vor.u32 1.1754944e-38, %v813
      %v815 = vsel %vm812, %v814, %v810
      %v816 = vmul.f32 %v788, %v815
      %v817 = vrcp.pop %v798
      %v818 = vmul.f32 %v798, %v817
      %v819 = vsub.f32 1.0, %v818
      %v820 = vmul.f32 %v817, %v819
      %v821 = vadd.f32 %v817, %v820
      %vm822 = vweird.f32 %v798
      %vm823 = vweird.f32 %v817
      %vm824 = vmor %vm822, %vm823
      %v825 = vsel %vm824, %v817, %v821
      %v826 = vand.u32 2147483647, %v798
      %vm827 = vcmp.eq.f32.partialorder %v826, 8.507059e+37
      %v828 = vand.u32 %v798, 2147483648
      %v829 = vor.u32 1.1754944e-38, %v828
      %v830 = vsel %vm827, %v829, %v825
      %v831 = vmul.f32 %v790, %v830
      %v832 = vrcp.pop %v801
      %v833 = vmul.f32 %v801, %v832
      %v834 = vsub.f32 1.0, %v833
      %v835 = vmul.f32 %v832, %v834
      %v836 = vadd.f32 %v832, %v835
      %vm837 = vweird.f32 %v801
      %vm838 = vweird.f32 %v832
      %vm839 = vmor %vm837, %vm838
      %v840 = vsel %vm839, %v832, %v836
      %v841 = vand.u32 2147483647, %v801
      %vm842 = vcmp.eq.f32.partialorder %v841, 8.507059e+37
      %v843 = vand.u32 %v801, 2147483648
      %v844 = vor.u32 1.1754944e-38, %v843
      %v845 = vsel %vm842, %v844, %v840
      %v846 = vmul.f32 %v792, %v845
      %v847 = vpack.c.bf16 %v831, %v816
      %v848 = vpack.c.bf16 %v846, %v846
      %849 = vrot.lane.b32.xlu0 %v590, 56
      %v850 = vpop.permute.xlu0 %849
      %851 = vrot.lane.b32.xlu0 %v591, 56
      %v852 = vpop.permute.xlu0 %851
      %v855 = vsel %vm625, %v847, 0
      %v858 = vsel %vm625, %v848, 0
      %v861 = vsel %vm714, %v852, 0
      %863 = vmatpush.bf16.msra.mxu0 0
      %864 = vmatpush.bf16.msra.mxu0 0
      %865 = vmatpush.bf16.msra.mxu0 0
      %866 = vmatpush.bf16.msra.mxu0 0
      %867 = vmatpush.bf16.msra.mxu0 0
      %868 = vmatpush.bf16.msra.mxu0 0
      %869 = vmatpush.bf16.msra.mxu0 %v861
      %870 = vmatpush.bf16.msra.mxu0 %v850
      %871 = vmatmul.bf16.gmra.mxu0 %v855
      %v872 = vpop.f32.mrf.mxu0
      %v873 = vadd.f32 0.0, %v872
      %v874 = vpop.f32.mrf.mxu0
      %v875 = vadd.f32 0.0, %v874
      %876 = vmatmul.bf16.gmra.mxu0 %v858
      %v877 = vpop.f32.mrf.mxu0
      %v878 = vadd.f32 0.0, %v877
      %v879 = vpop.f32.mrf.mxu0
      %880 = vdwg.mxu0
      %884 = vrot.lane.b32.xlu0 %v873, 8
      %v885 = vpop.permute.xlu0 %884
      %886 = vrot.lane.b32.xlu0 %v875, 8
      %v887 = vpop.permute.xlu0 %886
      %888 = vrot.lane.b32.xlu0 %v878, 8
      %v889 = vpop.permute.xlu0 %888
      %vm893 = vcmask 130112
      %894 = vst.msk [vmem:[#allocation2] sm:$0xff] %vm893, %v885
      %895 = vst.msk [vmem:[#allocation2 + $0x8] sm:$0xff] %vm893, %v887
      %vm896 = vcmask 123968
      %897 = vst.msk [vmem:[#allocation2 + $0x10] sm:$0x3] %vm896, %v889
      %v898 = vpack.c.bf16 %v576, %v576
      %899 = vrot.lane.b32.xlu0 %v590, 112
      %v900 = vpop.permute.xlu0 %899
      %901 = vrot.lane.b32.xlu0 %v591, 112
      %v902 = vpop.permute.xlu0 %901
      %v904 = vsel %vm593, %v900, 0
      %v907 = vsel %vm593, %v902, 0
      %v910 = vsel %vm600, %v898, 0
      %912 = vmatpush.bf16.msra.mxu0 0
      %913 = vmatpush.bf16.msra.mxu0 0
      %914 = vmatpush.bf16.msra.mxu0 0
      %915 = vmatpush.bf16.msra.mxu0 0
      %916 = vmatpush.bf16.msra.mxu0 0
      %917 = vmatpush.bf16.msra.mxu0 0
      %918 = vmatpush.bf16.msra.mxu0 0
      %919 = vmatpush.bf16.msra.mxu0 %v910
      %920 = vmatmul.bf16.gmra.mxu0 %v904
      %v921 = vpop.f32.mrf.mxu0
      %v922 = vadd.f32 0.0, %v921
      %v923 = vpop.f32.mrf.mxu0
      %v924 = vadd.f32 0.0, %v923
      %925 = vmatmul.bf16.gmra.mxu0 %v907
      %v926 = vpop.f32.mrf.mxu0
      %v927 = vadd.f32 0.0, %v926
      %v928 = vpop.f32.mrf.mxu0
      %929 = vdwg.mxu0
      %v930 = vmul.f32 %v922, 0.35355338
      %v931 = vmul.f32 %v924, 0.35355338
      %v932 = vmul.f32 %v927, 0.35355338
      %v933 = vsel %vm625, %v930, -inf
      %934 = vmax.xlane.f32.xlu0 %v933
      %v935 = vpop.xlane.xlu0 %934
      %v936 = vsel %vm625, %v931, -inf
      %937 = vmax.xlane.f32.xlu0 %v936
      %v938 = vpop.xlane.xlu0 %937
      %v939 = vsel %vm632, %v932, -inf
      %940 = vmax.xlane.f32.xlu0 %v939
      %v941 = vpop.xlane.xlu0 %940
      %v942 = vsub.f32 %v930, %v935
      %v943 = vsub.f32 %v931, %v938
      %v944 = vsub.f32 %v932, %v941
      %v945 = vmul.f32 %v942, 1.442695
      %v946 = vpow.pop %v945
      %v947 = vmul.f32 %v943, 1.442695
      %v948 = vpow.pop %v947
      %v949 = vmul.f32 %v944, 1.442695
      %v950 = vpow.pop %v949
      %v951 = vsel %vm625, %v946, 0.0
      %952 = vadd.xlane.f32.xlu0 %v951
      %v953 = vpop.xlane.xlu0 %952
      %v954 = vsel %vm625, %v948, 0.0
      %955 = vadd.xlane.f32.xlu0 %v954
      %v956 = vpop.xlane.xlu0 %955
      %v957 = vsel %vm632, %v950, 0.0
      %958 = vadd.xlane.f32.xlu0 %v957
      %v959 = vpop.xlane.xlu0 %958
      %v960 = vrcp.pop %v953
      %v961 = vmul.f32 %v953, %v960
      %v962 = vsub.f32 1.0, %v961
      %v963 = vmul.f32 %v960, %v962
      %v964 = vadd.f32 %v960, %v963
      %vm965 = vweird.f32 %v953
      %vm966 = vweird.f32 %v960
      %vm967 = vmor %vm965, %vm966
      %v968 = vsel %vm967, %v960, %v964
      %v969 = vand.u32 2147483647, %v953
      %vm970 = vcmp.eq.f32.partialorder %v969, 8.507059e+37
      %v971 = vand.u32 %v953, 2147483648
      %v972 = vor.u32 1.1754944e-38, %v971
      %v973 = vsel %vm970, %v972, %v968
      %v974 = vmul.f32 %v946, %v973
      %v975 = vrcp.pop %v956
      %v976 = vmul.f32 %v956, %v975
      %v977 = vsub.f32 1.0, %v976
      %v978 = vmul.f32 %v975, %v977
      %v979 = vadd.f32 %v975, %v978
      %vm980 = vweird.f32 %v956
      %vm981 = vweird.f32 %v975
      %vm982 = vmor %vm980, %vm981
      %v983 = vsel %vm982, %v975, %v979
      %v984 = vand.u32 2147483647, %v956
      %vm985 = vcmp.eq.f32.partialorder %v984, 8.507059e+37
      %v986 = vand.u32 %v956, 2147483648
      %v987 = vor.u32 1.1754944e-38, %v986
      %v988 = vsel %vm985, %v987, %v983
      %v989 = vmul.f32 %v948, %v988
      %v990 = vrcp.pop %v959
      %v991 = vmul.f32 %v959, %v990
      %v992 = vsub.f32 1.0, %v991
      %v993 = vmul.f32 %v990, %v992
      %v994 = vadd.f32 %v990, %v993
      %vm995 = vweird.f32 %v959
      %vm996 = vweird.f32 %v990
      %vm997 = vmor %vm995, %vm996
      %v998 = vsel %vm997, %v990, %v994
      %v999 = vand.u32 2147483647, %v959
      %vm1000 = vcmp.eq.f32.partialorder %v999, 8.507059e+37
      %v1001 = vand.u32 %v959, 2147483648
      %v1002 = vor.u32 1.1754944e-38, %v1001
      %v1003 = vsel %vm1000, %v1002, %v998
      %v1004 = vmul.f32 %v950, %v1003
      %v1005 = vpack.c.bf16 %v989, %v974
      %v1006 = vpack.c.bf16 %v1004, %v1004
      %1007 = vrot.lane.b32.xlu0 %v590, 48
      %v1008 = vpop.permute.xlu0 %1007
      %1009 = vrot.lane.b32.xlu0 %v591, 48
      %v1010 = vpop.permute.xlu0 %1009
      %v1013 = vsel %vm625, %v1005, 0
      %v1016 = vsel %vm625, %v1006, 0
      %v1019 = vsel %vm714, %v1010, 0
      %1021 = vmatpush.bf16.msra.mxu0 0
      %1022 = vmatpush.bf16.msra.mxu0 0
      %1023 = vmatpush.bf16.msra.mxu0 0
      %1024 = vmatpush.bf16.msra.mxu0 0
      %1025 = vmatpush.bf16.msra.mxu0 0
      %1026 = vmatpush.bf16.msra.mxu0 0
      %1027 = vmatpush.bf16.msra.mxu0 %v1019
      %1028 = vmatpush.bf16.msra.mxu0 %v1008
      %1029 = vmatmul.bf16.gmra.mxu0 %v1013
      %v1030 = vpop.f32.mrf.mxu0
      %v1031 = vadd.f32 0.0, %v1030
      %v1032 = vpop.f32.mrf.mxu0
      %v1033 = vadd.f32 0.0, %v1032
      %1034 = vmatmul.bf16.gmra.mxu0 %v1016
      %v1035 = vpop.f32.mrf.mxu0
      %v1036 = vadd.f32 0.0, %v1035
      %v1037 = vpop.f32.mrf.mxu0
      %1038 = vdwg.mxu0
      %1042 = vrot.lane.b32.xlu0 %v1031, 16
      %v1043 = vpop.permute.xlu0 %1042
      %1044 = vrot.lane.b32.xlu0 %v1033, 16
      %v1045 = vpop.permute.xlu0 %1044
      %1046 = vrot.lane.b32.xlu0 %v1036, 16
      %v1047 = vpop.permute.xlu0 %1046
      %vm1051 = vcmask 195712
      %1052 = vst.msk [vmem:[#allocation2] sm:$0xff] %vm1051, %v1043
      %1053 = vst.msk [vmem:[#allocation2 + $0x8] sm:$0xff] %vm1051, %v1045
      %vm1054 = vcmask 189568
      %1055 = vst.msk [vmem:[#allocation2 + $0x10] sm:$0x3] %vm1054, %v1047
      %v1056 = vpack.c.bf16 %v577, %v577
      %1057 = vrot.lane.b32.xlu0 %v590, 104
      %v1058 = vpop.permute.xlu0 %1057
      %1059 = vrot.lane.b32.xlu0 %v591, 104
      %v1060 = vpop.permute.xlu0 %1059
      %v1062 = vsel %vm593, %v1058, 0
      %v1065 = vsel %vm593, %v1060, 0
      %v1068 = vsel %vm600, %v1056, 0
      %1070 = vmatpush.bf16.msra.mxu0 0
      %1071 = vmatpush.bf16.msra.mxu0 0
      %1072 = vmatpush.bf16.msra.mxu0 0
      %1073 = vmatpush.bf16.msra.mxu0 0
      %1074 = vmatpush.bf16.msra.mxu0 0
      %1075 = vmatpush.bf16.msra.mxu0 0
      %1076 = vmatpush.bf16.msra.mxu0 0
      %1077 = vmatpush.bf16.msra.mxu0 %v1068
      %1078 = vmatmul.bf16.gmra.mxu0 %v1062
      %v1079 = vpop.f32.mrf.mxu0
      %v1080 = vadd.f32 0.0, %v1079
      %v1081 = vpop.f32.mrf.mxu0
      %v1082 = vadd.f32 0.0, %v1081
      %1083 = vmatmul.bf16.gmra.mxu0 %v1065
      %v1084 = vpop.f32.mrf.mxu0
      %v1085 = vadd.f32 0.0, %v1084
      %v1086 = vpop.f32.mrf.mxu0
      %1087 = vdwg.mxu0
      %v1088 = vmul.f32 %v1080, 0.35355338
      %v1089 = vmul.f32 %v1082, 0.35355338
      %v1090 = vmul.f32 %v1085, 0.35355338
      %v1091 = vsel %vm625, %v1088, -inf
      %1092 = vmax.xlane.f32.xlu0 %v1091
      %v1093 = vpop.xlane.xlu0 %1092
      %v1094 = vsel %vm625, %v1089, -inf
      %1095 = vmax.xlane.f32.xlu0 %v1094
      %v1096 = vpop.xlane.xlu0 %1095
      %v1097 = vsel %vm632, %v1090, -inf
      %1098 = vmax.xlane.f32.xlu0 %v1097
      %v1099 = vpop.xlane.xlu0 %1098
      %v1100 = vsub.f32 %v1088, %v1093
      %v1101 = vsub.f32 %v1089, %v1096
      %v1102 = vsub.f32 %v1090, %v1099
      %v1103 = vmul.f32 %v1100, 1.442695
      %v1104 = vpow.pop %v1103
      %v1105 = vmul.f32 %v1101, 1.442695
      %v1106 = vpow.pop %v1105
      %v1107 = vmul.f32 %v1102, 1.442695
      %v1108 = vpow.pop %v1107
      %v1109 = vsel %vm625, %v1104, 0.0
      %1110 = vadd.xlane.f32.xlu0 %v1109
      %v1111 = vpop.xlane.xlu0 %1110
      %v1112 = vsel %vm625, %v1106, 0.0
      %1113 = vadd.xlane.f32.xlu0 %v1112
      %v1114 = vpop.xlane.xlu0 %1113
      %v1115 = vsel %vm632, %v1108, 0.0
      %1116 = vadd.xlane.f32.xlu0 %v1115
      %v1117 = vpop.xlane.xlu0 %1116
      %v1118 = vrcp.pop %v1111
      %v1119 = vmul.f32 %v1111, %v1118
      %v1120 = vsub.f32 1.0, %v1119
      %v1121 = vmul.f32 %v1118, %v1120
      %v1122 = vadd.f32 %v1118, %v1121
      %vm1123 = vweird.f32 %v1111
      %vm1124 = vweird.f32 %v1118
      %vm1125 = vmor %vm1123, %vm1124
      %v1126 = vsel %vm1125, %v1118, %v1122
      %v1127 = vand.u32 2147483647, %v1111
      %vm1128 = vcmp.eq.f32.partialorder %v1127, 8.507059e+37
      %v1129 = vand.u32 %v1111, 2147483648
      %v1130 = vor.u32 1.1754944e-38, %v1129
      %v1131 = vsel %vm1128, %v1130, %v1126
      %v1132 = vmul.f32 %v1104, %v1131
      %v1133 = vrcp.pop %v1114
      %v1134 = vmul.f32 %v1114, %v1133
      %v1135 = vsub.f32 1.0, %v1134
      %v1136 = vmul.f32 %v1133, %v1135
      %v1137 = vadd.f32 %v1133, %v1136
      %vm1138 = vweird.f32 %v1114
      %vm1139 = vweird.f32 %v1133
      %vm1140 = vmor %vm1138, %vm1139
      %v1141 = vsel %vm1140, %v1133, %v1137
      %v1142 = vand.u32 2147483647, %v1114
      %vm1143 = vcmp.eq.f32.partialorder %v1142, 8.507059e+37
      %v1144 = vand.u32 %v1114, 2147483648
      %v1145 = vor.u32 1.1754944e-38, %v1144
      %v1146 = vsel %vm1143, %v1145, %v1141
      %v1147 = vmul.f32 %v1106, %v1146
      %v1148 = vrcp.pop %v1117
      %v1149 = vmul.f32 %v1117, %v1148
      %v1150 = vsub.f32 1.0, %v1149
      %v1151 = vmul.f32 %v1148, %v1150
      %v1152 = vadd.f32 %v1148, %v1151
      %vm1153 = vweird.f32 %v1117
      %vm1154 = vweird.f32 %v1148
      %vm1155 = vmor %vm1153, %vm1154
      %v1156 = vsel %vm1155, %v1148, %v1152
      %v1157 = vand.u32 2147483647, %v1117
      %vm1158 = vcmp.eq.f32.partialorder %v1157, 8.507059e+37
      %v1159 = vand.u32 %v1117, 2147483648
      %v1160 = vor.u32 1.1754944e-38, %v1159
      %v1161 = vsel %vm1158, %v1160, %v1156
      %v1162 = vmul.f32 %v1108, %v1161
      %v1163 = vpack.c.bf16 %v1147, %v1132
      %v1164 = vpack.c.bf16 %v1162, %v1162
      %1165 = vrot.lane.b32.xlu0 %v590, 40
      %v1166 = vpop.permute.xlu0 %1165
      %1167 = vrot.lane.b32.xlu0 %v591, 40
      %v1168 = vpop.permute.xlu0 %1167
      %v1171 = vsel %vm625, %v1163, 0
      %v1174 = vsel %vm625, %v1164, 0
      %v1177 = vsel %vm714, %v1168, 0
      %1179 = vmatpush.bf16.msra.mxu0 0
      %1180 = vmatpush.bf16.msra.mxu0 0
      %1181 = vmatpush.bf16.msra.mxu0 0
      %1182 = vmatpush.bf16.msra.mxu0 0
      %1183 = vmatpush.bf16.msra.mxu0 0
      %1184 = vmatpush.bf16.msra.mxu0 0
      %1185 = vmatpush.bf16.msra.mxu0 %v1177
      %1186 = vmatpush.bf16.msra.mxu0 %v1166
      %1187 = vmatmul.bf16.gmra.mxu0 %v1171
      %v1188 = vpop.f32.mrf.mxu0
      %v1189 = vadd.f32 0.0, %v1188
      %v1190 = vpop.f32.mrf.mxu0
      %v1191 = vadd.f32 0.0, %v1190
      %1192 = vmatmul.bf16.gmra.mxu0 %v1174
      %v1193 = vpop.f32.mrf.mxu0
      %v1194 = vadd.f32 0.0, %v1193
      %v1195 = vpop.f32.mrf.mxu0
      %1196 = vdwg.mxu0
      %1200 = vrot.lane.b32.xlu0 %v1189, 24
      %v1201 = vpop.permute.xlu0 %1200
      %1202 = vrot.lane.b32.xlu0 %v1191, 24
      %v1203 = vpop.permute.xlu0 %1202
      %1204 = vrot.lane.b32.xlu0 %v1194, 24
      %v1205 = vpop.permute.xlu0 %1204
      %vm1209 = vcmask 261312
      %1210 = vst.msk [vmem:[#allocation2] sm:$0xff] %vm1209, %v1201
      %1211 = vst.msk [vmem:[#allocation2 + $0x8] sm:$0xff] %vm1209, %v1203
      %vm1212 = vcmask 255168
      %1213 = vst.msk [vmem:[#allocation2 + $0x10] sm:$0x3] %vm1212, %v1205
      %v1214 = vld [vmem:[#allocation2] sm:$0xff]
      %v1215 = vld [vmem:[#allocation2 + $0x8] sm:$0xff]
      %v1216 = vld [vmem:[#allocation2 + $0x10] sm:$0x3]
      %v1217 = vpack.c.bf16 %v1215, %v1214
      %v1218 = vpack.c.bf16 %v1216, %v1216
      %v1219 = vld [vmem:[%s3] sm:$0xf]
      %v1220 = vld [vmem:[%s3 + $0x4] sm:$0xf]
      %v1221 = vld [vmem:[%s3 + $0x8] sm:$0xf]
      %v1222 = vld [vmem:[%s3 + $0xc] sm:$0xf]
      %v1223 = vld [vmem:[%s4] sm:$0x1]
      %v1225 = vperm.slane %v1223, 0
      %v1231 = vunpack.c.l.b16 %v1219
      %v1232 = vunpack.c.l.b16 %v1220
      %v1233 = vunpack.c.l.b16 %v1221
      %v1234 = vunpack.c.l.b16 %v1222
      %v1235 = vpack.c.b16 %v1232, %v1231
      %v1236 = vpack.c.b16 %v1234, %v1233
      %v1240 = vsel %vm521, %v1217, 0
      %v1243 = vsel %vm521, %v1218, 0
      %1245 = vmatpush.bf16.msra.mxu0 0
      %1246 = vmatpush.bf16.msra.mxu0 0
      %1247 = vmatpush.bf16.msra.mxu0 0
      %1248 = vmatpush.bf16.msra.mxu0 0
      %1249 = vmatpush.bf16.msra.mxu0 0
      %1250 = vmatpush.bf16.msra.mxu0 0
      %1251 = vmatpush.bf16.msra.mxu0 %v1236
      %1252 = vmatpush.bf16.msra.mxu0 %v1235
      %1253 = vmatmul.bf16.gmra.mxu0 %v1240
      %v1254 = vpop.f32.mrf.mxu0
      %v1255 = vadd.f32 %v1225, %v1254
      %v1256 = vpop.f32.mrf.mxu0
      %v1257 = vadd.f32 %v1225, %v1256
      %1258 = vmatmul.bf16.gmra.mxu0 %v1243
      %v1259 = vpop.f32.mrf.mxu0
      %v1260 = vadd.f32 %v1225, %v1259
      %v1261 = vpop.f32.mrf.mxu0
      %1262 = vdwg.mxu0
      %v1263 = vadd.f32 %v496, %v1255
      %v1264 = vadd.f32 %v497, %v1257
      %v1265 = vadd.f32 %v498, %v1260
      %v1266 = vld [vmem:[%s5] sm:$0x1]
      %v1267 = vld [vmem:[%s6] sm:$0x1]
      %v1268 = vsel %vm521, %v1263, 0.0
      %1269 = vadd.xlane.f32.xlu0 %v1268
      %v1270 = vpop.xlane.xlu0 %1269
      %v1271 = vsel %vm521, %v1264, 0.0
      %1272 = vadd.xlane.f32.xlu0 %v1271
      %v1273 = vpop.xlane.xlu0 %1272
      %vm1274 = vcmask 254976
      %v1275 = vsel %vm1274, %v1265, 0.0
      %1276 = vadd.xlane.f32.xlu0 %v1275
      %v1277 = vpop.xlane.xlu0 %1276
      %v1278 = vrcp.pop 32.0
      %v1279 = vmul.f32 32.0, %v1278
      %v1280 = vsub.f32 1.0, %v1279
      %v1281 = vmul.f32 %v1278, %v1280
      %v1282 = vadd.f32 %v1278, %v1281
      %vm1283 = vweird.f32 %v1278
      %v1284 = vsel %vm1283, %v1278, %v1282
      %v1285 = vmul.f32 %v1270, %v1284
      %v1286 = vmul.f32 %v1273, %v1284
      %v1287 = vmul.f32 %v1277, %v1284
      %v1288 = vsub.f32 %v1263, %v1285
      %v1289 = vsub.f32 %v1264, %v1286
      %v1290 = vsub.f32 %v1265, %v1287
      %v1291 = vmul.f32 %v1288, %v1288
      %v1292 = vmul.f32 %v1289, %v1289
      %v1293 = vmul.f32 %v1290, %v1290
      %v1294 = vsel %vm521, %v1291, 0.0
      %1295 = vadd.xlane.f32.xlu0 %v1294
      %v1296 = vpop.xlane.xlu0 %1295
      %v1297 = vsel %vm521, %v1292, 0.0
      %1298 = vadd.xlane.f32.xlu0 %v1297
      %v1299 = vpop.xlane.xlu0 %1298
      %v1300 = vsel %vm1274, %v1293, 0.0
      %1301 = vadd.xlane.f32.xlu0 %v1300
      %v1302 = vpop.xlane.xlu0 %1301
      %v1303 = vmul.f32 %v1296, %v1284
      %v1304 = vmul.f32 %v1299, %v1284
      %v1305 = vmul.f32 %v1302, %v1284
      %v1306 = vadd.f32 %v1303, 1e-05
      %v1307 = vadd.f32 %v1304, 1e-05
      %v1308 = vadd.f32 %v1305, 1e-05
      %v1309 = vrsqrt.pop %v1306
      %v1310 = vmul.f32 %v1309, %v1306
      %v1311 = vmul.f32 %v1310, %v1309
      %v1312 = vmul.f32 0.5, %v1311
      %v1313 = vsub.f32 1.5, %v1312
      %v1314 = vmul.f32 %v1309, %v1313
      %vm1315 = vweird.f32 %v1306
      %vm1316 = vweird.f32 %v1309
      %vm1317 = vmor %vm1315, %vm1316
      %v1318 = vsel %vm1317, %v1309, %v1314
      %v1319 = vrsqrt.pop %v1307
      %v1320 = vmul.f32 %v1319, %v1307
      %v1321 = vmul.f32 %v1320, %v1319
      %v1322 = vmul.f32 0.5, %v1321
      %v1323 = vsub.f32 1.5, %v1322
      %v1324 = vmul.f32 %v1319, %v1323
      %vm1325 = vweird.f32 %v1307
      %vm1326 = vweird.f32 %v1319
      %vm1327 = vmor %vm1325, %vm1326
      %v1328 = vsel %vm1327, %v1319, %v1324
      %v1329 = vrsqrt.pop %v1308
      %v1330 = vmul.f32 %v1329, %v1308
      %v1331 = vmul.f32 %v1330, %v1329
      %v1332 = vmul.f32 0.5, %v1331
      %v1333 = vsub.f32 1.5, %v1332
      %v1334 = vmul.f32 %v1329, %v1333
      %vm1335 = vweird.f32 %v1308
      %vm1336 = vweird.f32 %v1329
      %vm1337 = vmor %vm1335, %vm1336
      %v1338 = vsel %vm1337, %v1329, %v1334
      %v1339 = vmul.f32 %v1288, %v1318
      %v1340 = vmul.f32 %v1289, %v1328
      %v1341 = vmul.f32 %v1290, %v1338
      %v1343 = vperm.slane %v1266, 0
      %v1345 = vmul.f32 %v1339, %v1343
      %v1346 = vmul.f32 %v1340, %v1343
      %v1347 = vmul.f32 %v1341, %v1343
      %v1349 = vperm.slane %v1267, 0
      %v1351 = vadd.f32 %v1345, %v1349
      %v1352 = vadd.f32 %v1346, %v1349
      %v1353 = vadd.f32 %v1347, %v1349
      %v1354 = vpack.c.bf16 %v1352, %v1351
      %v1355 = vpack.c.bf16 %v1353, %v1353
      %v1356 = vld [vmem:[%s7] sm:$0xf]
      %v1357 = vld [vmem:[%s7 + $0x4] sm:$0xf]
      %v1358 = vld [vmem:[%s7 + $0x8] sm:$0xf]
      %v1359 = vld [vmem:[%s7 + $0xc] sm:$0xf]
      %v1360 = vld [vmem:[%s8] sm:$0x1]
      %v1362 = vperm.slane %v1360, 0
      %v1368 = vunpack.c.l.b16 %v1356
      %v1369 = vunpack.c.l.b16 %v1357
      %v1370 = vunpack.c.l.b16 %v1358
      %v1371 = vunpack.c.l.b16 %v1359
      %v1372 = vpack.c.b16 %v1369, %v1368
      %v1373 = vpack.c.b16 %v1371, %v1370
      %v1377 = vsel %vm521, %v1354, 0
      %v1380 = vsel %vm521, %v1355, 0
      %1382 = vmatpush.bf16.msra.mxu0 0
      %1383 = vmatpush.bf16.msra.mxu0 0
      %1384 = vmatpush.bf16.msra.mxu0 0
      %1385 = vmatpush.bf16.msra.mxu0 0
      %1386 = vmatpush.bf16.msra.mxu0 0
      %1387 = vmatpush.bf16.msra.mxu0 0
      %1388 = vmatpush.bf16.msra.mxu0 %v1373
      %1389 = vmatpush.bf16.msra.mxu0 %v1372
      %1390 = vmatmul.bf16.gmra.mxu0 %v1377
      %v1391 = vpop.f32.mrf.mxu0
      %v1392 = vadd.f32 %v1362, %v1391
      %v1393 = vpop.f32.mrf.mxu0
      %v1394 = vadd.f32 %v1362, %v1393
      %1395 = vmatmul.bf16.gmra.mxu0 %v1380
      %v1396 = vpop.f32.mrf.mxu0
      %v1397 = vadd.f32 %v1362, %v1396
      %v1398 = vpop.f32.mrf.mxu0
      %1399 = vdwg.mxu0
      %v1400 = vmul.f32 %v1392, 0.5
      %v1401 = vmul.f32 %v1394, 0.5
      %v1402 = vmul.f32 %v1397, 0.5
      %v1403 = vmul.f32 %v1392, 0.70710677
      %v1404 = vmul.f32 %v1394, 0.70710677
      %v1405 = vmul.f32 %v1397, 0.70710677
      %v1406 = vmul.f32 %v1403, %v1403
      %v1407 = vmin.f32 16.0, %v1406
      %v1408 = vmul.f32 %v1407, 2.1237322e-06
      %v1409 = vadd.f32 %v1408, 0.00028619796
      %v1410 = vmul.f32 %v1407, %v1409
      %v1411 = vadd.f32 %v1410, 0.0036580483
      %v1412 = vmul.f32 %v1407, %v1411
      %v1413 = vadd.f32 %v1412, 0.05243302
      %v1414 = vmul.f32 %v1407, %v1413
      %v1415 = vadd.f32 %v1414, 0.18741608
      %v1416 = vmul.f32 %v1407, %v1415
      %v1417 = vadd.f32 %v1416, 1.1283791
      %v1418 = vmul.f32 %v1403, %v1417
      %v1419 = vmul.f32 %v1407, 3.8918573e-05
      %v1420 = vadd.f32 %v1419, 0.001143296
      %v1421 = vmul.f32 %v1407, %v1420
      %v1422 = vadd.f32 %v1421, 0.014752088
      %v1423 = vmul.f32 %v1407, %v1422
      %v1424 = vadd.f32 %v1423, 0.112945676
      %v1425 = vmul.f32 %v1407, %v1424
      %v1426 = vadd.f32 %v1425, 0.4994258
      %v1427 = vmul.f32 %v1407, %v1426
      %v1428 = vadd.f32 %v1427, 1.0
      %v1429 = vrcp.pop %v1428
      %v1430 = vmul.f32 %v1428, %v1429
      %v1431 = vsub.f32 1.0, %v1430
      %v1432 = vmul.f32 %v1429, %v1431
      %v1433 = vadd.f32 %v1429, %v1432
      %vm1434 = vweird.f32 %v1428
      %vm1435 = vweird.f32 %v1429
      %vm1436 = vmor %vm1434, %vm1435
      %v1437 = vsel %vm1436, %v1429, %v1433
      %v1438 = vand.u32 2147483647, %v1428
      %vm1439 = vcmp.eq.f32.partialorder %v1438, 8.507059e+37
      %v1440 = vand.u32 %v1428, 2147483648
      %v1441 = vor.u32 1.1754944e-38, %v1440
      %v1442 = vsel %vm1439, %v1441, %v1437
      %v1443 = vmul.f32 %v1418, %v1442
      %v1444 = vmin.f32 %v1443, 1.0
      %v1445 = vmax.f32 %v1444, -1.0
      %v1446 = vmul.f32 %v1404, %v1404
      %v1447 = vmin.f32 16.0, %v1446
      %v1448 = vmul.f32 %v1447, 2.1237322e-06
      %v1449 = vadd.f32 %v1448, 0.00028619796
      %v1450 = vmul.f32 %v1447, %v1449
      %v1451 = vadd.f32 %v1450, 0.0036580483
      %v1452 = vmul.f32 %v1447, %v1451
      %v1453 = vadd.f32 %v1452, 0.05243302
      %v1454 = vmul.f32 %v1447, %v1453
      %v1455 = vadd.f32 %v1454, 0.18741608
      %v1456 = vmul.f32 %v1447, %v1455
      %v1457 = vadd.f32 %v1456, 1.1283791
      %v1458 = vmul.f32 %v1404, %v1457
      %v1459 = vmul.f32 %v1447, 3.8918573e-05
      %v1460 = vadd.f32 %v1459, 0.001143296
      %v1461 = vmul.f32 %v1447, %v1460
      %v1462 = vadd.f32 %v1461, 0.014752088
      %v1463 = vmul.f32 %v1447, %v1462
      %v1464 = vadd.f32 %v1463, 0.112945676
      %v1465 = vmul.f32 %v1447, %v1464
      %v1466 = vadd.f32 %v1465, 0.4994258
      %v1467 = vmul.f32 %v1447, %v1466
      %v1468 = vadd.f32 %v1467, 1.0
      %v1469 = vrcp.pop %v1468
      %v1470 = vmul.f32 %v1468, %v1469
      %v1471 = vsub.f32 1.0, %v1470
      %v1472 = vmul.f32 %v1469, %v1471
      %v1473 = vadd.f32 %v1469, %v1472
      %vm1474 = vweird.f32 %v1468
      %vm1475 = vweird.f32 %v1469
      %vm1476 = vmor %vm1474, %vm1475
      %v1477 = vsel %vm1476, %v1469, %v1473
      %v1478 = vand.u32 2147483647, %v1468
      %vm1479 = vcmp.eq.f32.partialorder %v1478, 8.507059e+37
      %v1480 = vand.u32 %v1468, 2147483648
      %v1481 = vor.u32 1.1754944e-38, %v1480
      %v1482 = vsel %vm1479, %v1481, %v1477
      %v1483 = vmul.f32 %v1458, %v1482
      %v1484 = vmin.f32 %v1483, 1.0
      %v1485 = vmax.f32 %v1484, -1.0
      %v1486 = vmul.f32 %v1405, %v1405
      %v1487 = vmin.f32 16.0, %v1486
      %v1488 = vmul.f32 %v1487, 2.1237322e-06
      %v1489 = vadd.f32 %v1488, 0.00028619796
      %v1490 = vmul.f32 %v1487, %v1489
      %v1491 = vadd.f32 %v1490, 0.0036580483
      %v1492 = vmul.f32 %v1487, %v1491
      %v1493 = vadd.f32 %v1492, 0.05243302
      %v1494 = vmul.f32 %v1487, %v1493
      %v1495 = vadd.f32 %v1494, 0.18741608
      %v1496 = vmul.f32 %v1487, %v1495
      %v1497 = vadd.f32 %v1496, 1.1283791
      %v1498 = vmul.f32 %v1405, %v1497
      %v1499 = vmul.f32 %v1487, 3.8918573e-05
      %v1500 = vadd.f32 %v1499, 0.001143296
      %v1501 = vmul.f32 %v1487, %v1500
      %v1502 = vadd.f32 %v1501, 0.014752088
      %v1503 = vmul.f32 %v1487, %v1502
      %v1504 = vadd.f32 %v1503, 0.112945676
      %v1505 = vmul.f32 %v1487, %v1504
      %v1506 = vadd.f32 %v1505, 0.4994258
      %v1507 = vmul.f32 %v1487, %v1506
      %v1508 = vadd.f32 %v1507, 1.0
      %v1509 = vrcp.pop %v1508
      %v1510 = vmul.f32 %v1508, %v1509
      %v1511 = vsub.f32 1.0, %v1510
      %v1512 = vmul.f32 %v1509, %v1511
      %v1513 = vadd.f32 %v1509, %v1512
      %vm1514 = vweird.f32 %v1508
      %vm1515 = vweird.f32 %v1509
      %vm1516 = vmor %vm1514, %vm1515
      %v1517 = vsel %vm1516, %v1509, %v1513
      %v1518 = vand.u32 2147483647, %v1508
      %vm1519 = vcmp.eq.f32.partialorder %v1518, 8.507059e+37
      %v1520 = vand.u32 %v1508, 2147483648
      %v1521 = vor.u32 1.1754944e-38, %v1520
      %v1522 = vsel %vm1519, %v1521, %v1517
      %v1523 = vmul.f32 %v1498, %v1522
      %v1524 = vmin.f32 %v1523, 1.0
      %v1525 = vmax.f32 %v1524, -1.0
      %v1526 = vadd.f32 %v1445, 1.0
      %v1527 = vadd.f32 %v1485, 1.0
      %v1528 = vadd.f32 %v1525, 1.0
      %v1529 = vmul.f32 %v1400, %v1526
      %v1530 = vmul.f32 %v1401, %v1527
      %v1531 = vmul.f32 %v1402, %v1528
      %v1532 = vpack.c.bf16 %v1530, %v1529
      %v1533 = vpack.c.bf16 %v1531, %v1531
      %v1534 = vld [vmem:[%s9] sm:$0xf]
      %v1535 = vld [vmem:[%s9 + $0x4] sm:$0xf]
      %v1536 = vld [vmem:[%s9 + $0x8] sm:$0xf]
      %v1537 = vld [vmem:[%s9 + $0xc] sm:$0xf]
      %v1538 = vld [vmem:[%s9 + $0x10] sm:$0xf]
      %v1539 = vld [vmem:[%s9 + $0x14] sm:$0xf]
      %v1540 = vld [vmem:[%s9 + $0x18] sm:$0xf]
      %v1541 = vld [vmem:[%s9 + $0x1c] sm:$0xf]
      %v1542 = vld [vmem:[%s10] sm:$0x1]
      %v1544 = vperm.slane %v1542, 0
      %v1554 = vunpack.c.l.b16 %v1534
      %v1555 = vunpack.c.l.b16 %v1535
      %v1556 = vunpack.c.l.b16 %v1536
      %v1557 = vunpack.c.l.b16 %v1537
      %v1558 = vunpack.c.l.b16 %v1538
      %v1559 = vunpack.c.l.b16 %v1539
      %v1560 = vunpack.c.l.b16 %v1540
      %v1561 = vunpack.c.l.b16 %v1541
      %v1562 = vpack.c.b16 %v1555, %v1554
      %v1563 = vpack.c.b16 %v1557, %v1556
      %v1564 = vpack.c.b16 %v1559, %v1558
      %v1565 = vpack.c.b16 %v1561, %v1560
      %vm1570 = vcmask 523264
      %v1572 = vsel %vm1570, %v1532, 0
      %v1575 = vsel %vm1570, %v1533, 0
      %1577 = vmatpush.bf16.msra.mxu0 0
      %1578 = vmatpush.bf16.msra.mxu0 0
      %1579 = vmatpush.bf16.msra.mxu0 0
      %1580 = vmatpush.bf16.msra.mxu0 0
      %1581 = vmatpush.bf16.msra.mxu0 %v1565
      %1582 = vmatpush.bf16.msra.mxu0 %v1564
      %1583 = vmatpush.bf16.msra.mxu0 %v1563
      %1584 = vmatpush.bf16.msra.mxu0 %v1562
      %1585 = vmatmul.bf16.gmra.mxu0 %v1572
      %v1586 = vpop.f32.mrf.mxu0
      %v1587 = vadd.f32 %v1544, %v1586
      %v1588 = vpop.f32.mrf.mxu0
      %v1589 = vadd.f32 %v1544, %v1588
      %1590 = vmatmul.bf16.gmra.mxu0 %v1575
      %v1591 = vpop.f32.mrf.mxu0
      %v1592 = vadd.f32 %v1544, %v1591
      %v1593 = vpop.f32.mrf.mxu0
      %1594 = vdwg.mxu0
      %v1595 = vadd.f32 %v1351, %v1587
      %v1596 = vadd.f32 %v1352, %v1589
      %v1597 = vadd.f32 %v1353, %v1592
      %v1598 = vld [vmem:[%s11] sm:$0x1]
      %v1599 = vld [vmem:[%s12] sm:$0x1]
      %v1600 = vsel %vm521, %v1595, 0.0
      %1601 = vadd.xlane.f32.xlu0 %v1600
      %v1602 = vpop.xlane.xlu0 %1601
      %v1603 = vsel %vm521, %v1596, 0.0
      %1604 = vadd.xlane.f32.xlu0 %v1603
      %v1605 = vpop.xlane.xlu0 %1604
      %v1606 = vsel %vm1274, %v1597, 0.0
      %1607 = vadd.xlane.f32.xlu0 %v1606
      %v1608 = vpop.xlane.xlu0 %1607
      %v1609 = vmul.f32 %v1602, %v1284
      %v1610 = vmul.f32 %v1605, %v1284
      %v1611 = vmul.f32 %v1608, %v1284
      %v1612 = vsub.f32 %v1595, %v1609
      %v1613 = vsub.f32 %v1596, %v1610
      %v1614 = vsub.f32 %v1597, %v1611
      %v1615 = vmul.f32 %v1612, %v1612
      %v1616 = vmul.f32 %v1613, %v1613
      %v1617 = vmul.f32 %v1614, %v1614
      %v1618 = vsel %vm521, %v1615, 0.0
      %1619 = vadd.xlane.f32.xlu0 %v1618
      %v1620 = vpop.xlane.xlu0 %1619
      %v1621 = vsel %vm521, %v1616, 0.0
      %1622 = vadd.xlane.f32.xlu0 %v1621
      %v1623 = vpop.xlane.xlu0 %1622
      %v1624 = vsel %vm1274, %v1617, 0.0
      %1625 = vadd.xlane.f32.xlu0 %v1624
      %v1626 = vpop.xlane.xlu0 %1625
      %v1627 = vmul.f32 %v1620, %v1284
      %v1628 = vmul.f32 %v1623, %v1284
      %v1629 = vmul.f32 %v1626, %v1284
      %v1630 = vadd.f32 %v1627, 1e-05
      %v1631 = vadd.f32 %v1628, 1e-05
      %v1632 = vadd.f32 %v1629, 1e-05
      %v1633 = vrsqrt.pop %v1630
      %v1634 = vmul.f32 %v1633, %v1630
      %v1635 = vmul.f32 %v1634, %v1633
      %v1636 = vmul.f32 0.5, %v1635
      %v1637 = vsub.f32 1.5, %v1636
      %v1638 = vmul.f32 %v1633, %v1637
      %vm1639 = vweird.f32 %v1630
      %vm1640 = vweird.f32 %v1633
      %vm1641 = vmor %vm1639, %vm1640
      %v1642 = vsel %vm1641, %v1633, %v1638
      %v1643 = vrsqrt.pop %v1631
      %v1644 = vmul.f32 %v1643, %v1631
      %v1645 = vmul.f32 %v1644, %v1643
      %v1646 = vmul.f32 0.5, %v1645
      %v1647 = vsub.f32 1.5, %v1646
      %v1648 = vmul.f32 %v1643, %v1647
      %vm1649 = vweird.f32 %v1631
      %vm1650 = vweird.f32 %v1643
      %vm1651 = vmor %vm1649, %vm1650
      %v1652 = vsel %vm1651, %v1643, %v1648
      %v1653 = vrsqrt.pop %v1632
      %v1654 = vmul.f32 %v1653, %v1632
      %v1655 = vmul.f32 %v1654, %v1653
      %v1656 = vmul.f32 0.5, %v1655
      %v1657 = vsub.f32 1.5, %v1656
      %v1658 = vmul.f32 %v1653, %v1657
      %vm1659 = vweird.f32 %v1632
      %vm1660 = vweird.f32 %v1653
      %vm1661 = vmor %vm1659, %vm1660
      %v1662 = vsel %vm1661, %v1653, %v1658
      %v1663 = vmul.f32 %v1612, %v1642
      %v1664 = vmul.f32 %v1613, %v1652
      %v1665 = vmul.f32 %v1614, %v1662
      %v1667 = vperm.slane %v1598, 0
      %v1669 = vmul.f32 %v1663, %v1667
      %v1670 = vmul.f32 %v1664, %v1667
      %v1671 = vmul.f32 %v1665, %v1667
      %v1673 = vperm.slane %v1599, 0
      %v1675 = vadd.f32 %v1669, %v1673
      %v1676 = vadd.f32 %v1670, %v1673
      %v1677 = vadd.f32 %v1671, %v1673
      %v1678 = vld [vmem:[%s13] sm:$0x1]
      %v1679 = vld [vmem:[%s14] sm:$0x1]
      %v1680 = vsel %vm521, %v1675, 0.0
      %1681 = vadd.xlane.f32.xlu0 %v1680
      %v1682 = vpop.xlane.xlu0 %1681
      %v1683 = vsel %vm521, %v1676, 0.0
      %1684 = vadd.xlane.f32.xlu0 %v1683
      %v1685 = vpop.xlane.xlu0 %1684
      %v1686 = vsel %vm1274, %v1677, 0.0
      %1687 = vadd.xlane.f32.xlu0 %v1686
      %v1688 = vpop.xlane.xlu0 %1687
      %v1689 = vmul.f32 %v1682, %v1284
      %v1690 = vmul.f32 %v1685, %v1284
      %v1691 = vmul.f32 %v1688, %v1284
      %v1692 = vsub.f32 %v1675, %v1689
      %v1693 = vsub.f32 %v1676, %v1690
      %v1694 = vsub.f32 %v1677, %v1691
      %v1695 = vmul.f32 %v1692, %v1692
      %v1696 = vmul.f32 %v1693, %v1693
      %v1697 = vmul.f32 %v1694, %v1694
      %v1698 = vsel %vm521, %v1695, 0.0
      %1699 = vadd.xlane.f32.xlu0 %v1698
      %v1700 = vpop.xlane.xlu0 %1699
      %v1701 = vsel %vm521, %v1696, 0.0
      %1702 = vadd.xlane.f32.xlu0 %v1701
      %v1703 = vpop.xlane.xlu0 %1702
      %v1704 = vsel %vm1274, %v1697, 0.0
      %1705 = vadd.xlane.f32.xlu0 %v1704
      %v1706 = vpop.xlane.xlu0 %1705
      %v1707 = vmul.f32 %v1700, %v1284
      %v1708 = vmul.f32 %v1703, %v1284
      %v1709 = vmul.f32 %v1706, %v1284
      %v1710 = vadd.f32 %v1707, 1e-05
      %v1711 = vadd.f32 %v1708, 1e-05
      %v1712 = vadd.f32 %v1709, 1e-05
      %v1713 = vrsqrt.pop %v1710
      %v1714 = vmul.f32 %v1713, %v1710
      %v1715 = vmul.f32 %v1714, %v1713
      %v1716 = vmul.f32 0.5, %v1715
      %v1717 = vsub.f32 1.5, %v1716
      %v1718 = vmul.f32 %v1713, %v1717
      %vm1719 = vweird.f32 %v1710
      %vm1720 = vweird.f32 %v1713
      %vm1721 = vmor %vm1719, %vm1720
      %v1722 = vsel %vm1721, %v1713, %v1718
      %v1723 = vrsqrt.pop %v1711
      %v1724 = vmul.f32 %v1723, %v1711
      %v1725 = vmul.f32 %v1724, %v1723
      %v1726 = vmul.f32 0.5, %v1725
      %v1727 = vsub.f32 1.5, %v1726
      %v1728 = vmul.f32 %v1723, %v1727
      %vm1729 = vweird.f32 %v1711
      %vm1730 = vweird.f32 %v1723
      %vm1731 = vmor %vm1729, %vm1730
      %v1732 = vsel %vm1731, %v1723, %v1728
      %v1733 = vrsqrt.pop %v1712
      %v1734 = vmul.f32 %v1733, %v1712
      %v1735 = vmul.f32 %v1734, %v1733
      %v1736 = vmul.f32 0.5, %v1735
      %v1737 = vsub.f32 1.5, %v1736
      %v1738 = vmul.f32 %v1733, %v1737
      %vm1739 = vweird.f32 %v1712
      %vm1740 = vweird.f32 %v1733
      %vm1741 = vmor %vm1739, %vm1740
      %v1742 = vsel %vm1741, %v1733, %v1738
      %v1743 = vmul.f32 %v1692, %v1722
      %v1744 = vmul.f32 %v1693, %v1732
      %v1745 = vmul.f32 %v1694, %v1742
      %v1747 = vperm.slane %v1678, 0
      %v1749 = vmul.f32 %v1743, %v1747
      %v1750 = vmul.f32 %v1744, %v1747
      %v1751 = vmul.f32 %v1745, %v1747
      %v1753 = vperm.slane %v1679, 0
      %v1755 = vadd.f32 %v1749, %v1753
      %v1756 = vadd.f32 %v1750, %v1753
      %v1757 = vadd.f32 %v1751, %v1753
      %1758 = vst.msk [vmem:[%s494] sm:$0xff] %vm521, %v1755
      %1759 = vst.msk [vmem:[%s494 + $0x8] sm:$0xff] %vm521, %v1756
      %1760 = vst.msk [vmem:[%s494 + $0x10] sm:$0x3] %vm1274, %v1757
      %p1761 = scmp.lt.s32.totalorder %s26, 1
      %s1762 = scalar_select %p1761, %s26, 1
      %s1763 = smul.addr %s1762, 3
      %s1764 = smul.addr %s1763, 8
      %s1765 = scalar_lea.vmem %s15, %s1764
      // Predicated region
      $region81: #{_lambda_.6} parent=79 // pred_check
        %p1766 = pneg %p364
      $region82: #{_lambda_.6} parent=79 // pred_check_branch
        %1768 = sbr.rel (%p1766) target = $region84
      $region83: #{_lambda_.6} parent=79 // pred_region
        _
      $region84: #{_lambda_.6} parent=79 // pred_fallthru
        _
    $region80: #{_lambda_.6} parent=5 // pred_fallthru
      _
    %p1769 = scmp.le.s32.totalorder 2, %s21
    // Predicated region
    $region85: #{_lambda_.6} parent=5 // pred_check
      %p1770 = pneg %p1769
    $region86: #{_lambda_.6} parent=5 // pred_check_branch
      %1772 = sbr.rel (%p1770) target = $region88
    $region87: #{_lambda_.6} parent=5 // pred_region
      %s1773 = ssub.s32 %s21, 2
      // Predicated region
      $region89: #{_lambda_.6} parent=87 // pred_check
        %p1774 = pneg %p370
      $region90: #{_lambda_.6} parent=87 // pred_check_branch
        %1776 = sbr.rel (%p1774) target = $region92
      $region91: #{_lambda_.6} parent=87 // pred_region
        %p1777 = scmp.lt.s32.totalorder %s27, 1
        %s1778 = scalar_select %p1777, %s27, 1
        %s1779 = smul.addr %s1778, 3
        %s1780 = smul.addr %s1779, 8
        %s1781 = scalar_lea.vmem %s15, %s1780
      $region92: #{_lambda_.6} parent=87 // pred_fallthru
        _
    $region88: #{_lambda_.6} parent=5 // pred_fallthru
      _
  $region6: #{_lambda_.6} parent=0 // loop_footer
    %s25 = sadd.s32 1, %s21
  $region7: #{_lambda_.6} parent=0 // loop_footer_branch
    %20 = sbr.rel target = $region3
  $region8: #{_lambda_.6} parent=0 // loop_exit
    _

</llo_original>
